<compile_context>
chip_gen: v6e
topology: v6e:2x2x1
jax: 0.10.0
libtpu: 0.0.40
codegen_flags: <defaults>
</compile_context>

<pallas_src>
from math import sqrt

import jax
import jax.numpy as jnp
import numpy as np
from jax.experimental import pallas as pl
from jax.experimental.pallas import tpu as pltpu


def _round_up(v, m):
    return -(-v // m) * m


# ----------------------------------------------------------------------------
# Fused all-layer ResidualBlock kernel (grid = (batch, layer))
# ----------------------------------------------------------------------------
def _make_fused_kernel(*, C, L, cs_c, off0, cycle, n_dil, compute_dtype):
    inv_sqrt2 = np.float32(1.0 / sqrt(2.0))

    def kernel(x0_ref, cond_ref, dstep_ref, w_y_ref, w_c_ref, b_sum_ref,
               w_out_ref, b_out_ref, skip_ref, x_state, ypad):
        layer = pl.program_id(1)

        # Per-batch init: load x once, zero the skip accumulator and the conv
        # buffer (its zero halo is never written again -> free "same" padding).
        @pl.when(layer == 0)
        def _():
            x_state[...] = x0_ref[0]                      # (L, C) f32
            skip_ref[...] = jnp.zeros_like(skip_ref)
            ypad[...] = jnp.zeros_like(ypad)

        # y = x + diffusion_step, written into the centre of the padded buffer.
        ypad[off0:off0 + L, :] = (
            x_state[...] + dstep_ref[0, 0]).astype(compute_dtype)

        def layer_body(dil):
            base = off0 - 3 * dil                          # static per branch
            # im2col on the sublane axis: 7 statically shifted (L, *) views.
            slab_y = jnp.concatenate(
                [ypad[base + j * dil: base + j * dil + L, :] for j in range(7)],
                axis=1)                                    # (L, 7*C)
            slab_c = jnp.concatenate(
                [cond_ref[0, base + j * dil: base + j * dil + L, :]
                 for j in range(7)], axis=1)               # (L, 7*cs_c)

            # Dilated conv + conditioner/phoneme/energy convs; M = L, N = 2C.
            ysum = (jnp.dot(slab_y, w_y_ref[0],
                            preferred_element_type=jnp.float32)
                    + jnp.dot(slab_c, w_c_ref[0],
                              preferred_element_type=jnp.float32)
                    + b_sum_ref[0])                        # (L, 2C) f32

            z = jax.nn.sigmoid(ysum[:, :C]) * jnp.tanh(ysum[:, C:])  # (L, C)

            # output_projection (1x1 conv): (L, C) @ (C, 2C)
            out = (jnp.dot(z.astype(compute_dtype), w_out_ref[0],
                           preferred_element_type=jnp.float32)
                   + b_out_ref[0])                         # (L, 2C) f32

            x_state[...] = (x_state[...] + out[:, :C]) * inv_sqrt2
            skip_ref[0] = skip_ref[0] + out[:, C:]

        # dilation = 2 ** (layer % cycle) is grid-index dependent; specialize
        # per distinct dilation so every slice offset stays static.
        for idx in range(n_dil):
            @pl.when(layer % cycle == idx)
            def _(dil=2 ** idx):
                layer_body(dil)

    return kernel


# ----------------------------------------------------------------------------
# Weight folding (done ONCE at model-load time, not inside the forward)
# ----------------------------------------------------------------------------
def _combine_mrb(layers):
    """Fold MRB([3,5,7]) (sum of convs / 3) into one centered 7-tap conv."""
    cout, cin, _ = layers[0][0].shape
    w = jnp.zeros((cout, cin, 7), jnp.float32)
    b = jnp.zeros((cout,), jnp.float32)
    for wi, bi in layers:
        k = wi.shape[-1]
        p = (7 - k) // 2
        w = w.at[:, :, p:p + k].add(wi)
        b = b + bi
    n = len(layers)
    return w / n, b / n


def fold_params(params, hp, *, compute_dtype=jnp.float32):
    """Pre-fold per-layer MRB weights into the kernel's matmul layout."""
    layers = params['layers']
    C = layers[0]['w_out'].shape[1]
    P = layers[0]['phoneme'][0][0].shape[1]
    cs_c = 1 + P + 1
    two_c = 2 * C
    w_y_t, w_c_t, b_sum, w_out_t, b_out = [], [], [], [], []
    for lp in layers:
        wd, bd = _combine_mrb(lp['dilated'])       # (2C, C, 7)
        wc, bc = _combine_mrb(lp['cond_proj'])     # (2C, 1, 7)
        wp, bp = _combine_mrb(lp['phoneme'])       # (1,  P, 7)
        we, be = _combine_mrb(lp['energy'])        # (1,  1, 7)
        # taps-major, transposed for the L-major matmul: row j*C + cin.
        w_y_t.append(jnp.transpose(wd, (2, 1, 0)).reshape(7 * C, two_c))
        # phoneme/energy have one output row that the reference broadcast-adds
        # to all 2C rows -> replicate across outputs and fold into one slab.
        wc_all = jnp.concatenate(
            [wc,
             jnp.broadcast_to(wp, (two_c, P, 7)),
             jnp.broadcast_to(we, (two_c, 1, 7))], axis=1)   # (2C, cs_c, 7)
        w_c_t.append(jnp.transpose(wc_all, (2, 1, 0)).reshape(7 * cs_c, two_c))
        b_sum.append((bd + bc + bp[0] + be[0])[None, :])     # (1, 2C)
        w_out_t.append(lp['w_out'][:, :, 0].T)               # (C, 2C)
        b_out.append(lp['b_out'][None, :])                   # (1, 2C)
    return {
        'w_y_t': jnp.stack(w_y_t).astype(compute_dtype),     # (nl, 7C, 2C)
        'w_c_t': jnp.stack(w_c_t).astype(compute_dtype),     # (nl, 7cs, 2C)
        'b_sum': jnp.stack(b_sum),                           # (nl, 1, 2C) f32
        'w_out_t': jnp.stack(w_out_t).astype(compute_dtype), # (nl, C, 2C)
        'b_out': jnp.stack(b_out),                           # (nl, 1, 2C) f32
        'w_diff': jnp.stack([lp['w_diff'] for lp in layers]),  # (nl, C, 512)
        'b_diff': jnp.stack([lp['b_diff'] for lp in layers]),  # (nl, C)
    }


# ----------------------------------------------------------------------------
# Fused residual stack wrapper (single pallas_call)
# ----------------------------------------------------------------------------
def residual_stack_pallas(x0_lm, cond_lm, dstep_all, folded, hp, *,
                          compute_dtype=jnp.float32):
    """x0_lm: (B, L, C) f32; cond_lm: (B, L, 1+P+1) f32;
       dstep_all: (n_layers, B, C) f32.  Returns skip_sum (B, L, C) f32."""
    B, L, C = x0_lm.shape
    cs_c = cond_lm.shape[-1]
    two_c = 2 * C
    n_layers = folded['w_y_t'].shape[0]
    cycle = hp['dilation_cycle_length']
    n_dil = min(cycle, n_layers)
    max_dil = max(2 ** (i % cycle) for i in range(n_layers))
    pad_max = 3 * max_dil
    off0 = _round_up(pad_max, 8)              # sublane-aligned start of data
    Lyp = _round_up(off0 + L + pad_max, 8)    # padded conv-buffer length

    # Layer-invariant conditioning slab: padded + cast ONCE (not per layer).
    cond_pad = jnp.pad(
        cond_lm, ((0, 0), (off0, Lyp - off0 - L), (0, 0))).astype(compute_dtype)
    dstep_all = dstep_all[:, :, None, :]      # (nl, B, 1, C)

    kernel = _make_fused_kernel(C=C, L=L, cs_c=cs_c, off0=off0, cycle=cycle,
                                n_dil=n_dil, compute_dtype=compute_dtype)

    skip_sum = pl.pallas_call(
        kernel,
        out_shape=jax.ShapeDtypeStruct((B, L, C), jnp.float32),
        grid=(B, n_layers),
        in_specs=[
            pl.BlockSpec((1, L, C), lambda b, l: (b, 0, 0)),            # x0
            pl.BlockSpec((1, Lyp, cs_c), lambda b, l: (b, 0, 0)),       # cond
            pl.BlockSpec((1, 1, 1, C), lambda b, l: (l, b, 0, 0)),      # dstep
            pl.BlockSpec((1, 7 * C, two_c), lambda b, l: (l, 0, 0)),    # w_y_t
            pl.BlockSpec((1, 7 * cs_c, two_c), lambda b, l: (l, 0, 0)), # w_c_t
            pl.BlockSpec((1, 1, two_c), lambda b, l: (l, 0, 0)),        # b_sum
            pl.BlockSpec((1, C, two_c), lambda b, l: (l, 0, 0)),        # w_out_t
            pl.BlockSpec((1, 1, two_c), lambda b, l: (l, 0, 0)),        # b_out
        ],
        out_specs=pl.BlockSpec((1, L, C), lambda b, l: (b, 0, 0)),
        scratch_shapes=[pltpu.VMEM((L, C), jnp.float32),        # resident x
                        pltpu.VMEM((Lyp, C), compute_dtype)],   # padded y buf
        compiler_params=pltpu.CompilerParams(
            dimension_semantics=("parallel", "arbitrary"),
            vmem_limit_bytes=48 * 1024 * 1024),
    )(x0_lm, cond_pad, dstep_all, folded['w_y_t'], folded['w_c_t'],
      folded['b_sum'], folded['w_out_t'], folded['b_out'])
    return skip_sum


# ----------------------------------------------------------------------------
# Full DiffAR forward (tiny glue ops stay in plain XLA)
# ----------------------------------------------------------------------------
def _silu(v):
    return v * jax.nn.sigmoid(v)


def diffar_forward_pallas(audio, conditioner, diffusion_step, phoneme, energy,
                          params, folded, hp, *, compute_dtype=jnp.float32):
    # input_projection (1x1 conv) + relu, built directly in L-major layout.
    x0 = jax.nn.relu(audio[:, :, None] * params['w_in'][:, 0, 0][None, None, :]
                     + params['b_in'][None, None, :])            # (B, L, C)

    # diffusion embedding: table lookup + 2 x (Linear + silu)
    emb = params['emb_table'][diffusion_step]                    # (B, 128)
    d = _silu(emb @ params['diff_w1'].T + params['diff_b1'])
    d = _silu(d @ params['diff_w2'].T + params['diff_b2'])       # (B, 512)

    # per-layer diffusion projections (tiny): (nl, B, C)
    dstep_all = (jnp.einsum('bk,lck->lbc', d, folded['w_diff'])
                 + folded['b_diff'][:, None, :])

    # layer-invariant conditioning slab, L-major: (B, L, 1 + P + 1)
    cond_lm = jnp.transpose(
        jnp.concatenate([conditioner, phoneme, energy], axis=1), (0, 2, 1))

    skip_sum = residual_stack_pallas(x0, cond_lm, dstep_all, folded, hp,
                                     compute_dtype=compute_dtype)  # (B, L, C)

    n_layers = folded['w_y_t'].shape[0]
    x = skip_sum / np.float32(sqrt(n_layers))
    x = jax.nn.relu(jnp.einsum('blc,oc->blo', x, params['w_skip'][:, :, 0])
                    + params['b_skip'][None, None, :])
    y = (jnp.einsum('blc,oc->blo', x, params['w_outp'][:, :, 0])
         + params['b_outp'][None, None, :])
    return jnp.transpose(y, (0, 2, 1))                           # (B, 1, L)


# ----------------------------------------------------------------------------
# Pure-JAX reference (uncombined MRB weights, lax.conv)
# ----------------------------------------------------------------------------
def _conv1d_ref(x, w, b, dilation=1):
    k = w.shape[-1]
    p = dilation * (k - 1) // 2
    out = jax.lax.conv_general_dilated(
        x, w, window_strides=(1,), padding=[(p, p)],
        rhs_dilation=(dilation,), dimension_numbers=('NCH', 'OIH', 'NCH'))
    return out + b[None, :, None]


def _mrb_ref(x, layers, dilation):
    y = 0.0
    for w, b in layers:
        y = y + _conv1d_ref(x, w, b, dilation)
    return y / len(layers)


def _residual_block_ref(x, conditioner, d, phoneme, energy, lp, dil):
    dstep = d @ lp['w_diff'].T + lp['b_diff']
    y = x + dstep[:, :, None]
    ysum = (_mrb_ref(y, lp['dilated'], dil)
            + _mrb_ref(conditioner, lp['cond_proj'], dil)
            + _mrb_ref(phoneme, lp['phoneme'], dil)
            + _mrb_ref(energy, lp['energy'], dil))
    gate, filt = jnp.split(ysum, 2, axis=1)
    z = jax.nn.sigmoid(gate) * jnp.tanh(filt)
    out = _conv1d_ref(z, lp['w_out'], lp['b_out'], 1)
    res, skip = jnp.split(out, 2, axis=1)
    return (x + res) / np.float32(sqrt(2.0)), skip


def diffar_forward_ref(audio, conditioner, diffusion_step, phoneme, energy,
                       params, hp):
    x = jax.nn.relu(_conv1d_ref(audio[:, None, :], params['w_in'], params['b_in']))
    emb = params['emb_table'][diffusion_step]
    d = _silu(emb @ params['diff_w1'].T + params['diff_b1'])
    d = _silu(d @ params['diff_w2'].T + params['diff_b2'])
    skip_sum = jnp.zeros_like(x)
    for i, lp in enumerate(params['layers']):
        dil = 2 ** (i % hp['dilation_cycle_length'])
        x, skip = _residual_block_ref(x, conditioner, d, phoneme, energy, lp, dil)
        skip_sum = skip_sum + skip
    x = skip_sum / np.float32(sqrt(len(params['layers'])))
    x = jax.nn.relu(_conv1d_ref(x, params['w_skip'], params['b_skip']))
    return _conv1d_ref(x, params['w_outp'], params['b_outp'])


# ----------------------------------------------------------------------------
# Parameter init
# ----------------------------------------------------------------------------
def _build_embedding_table(max_steps):
    steps = jnp.arange(max_steps, dtype=jnp.float32)[:, None]
    dims = jnp.arange(64, dtype=jnp.float32)[None, :]
    table = steps * 10.0 ** (dims * 4.0 / 63.0)
    return jnp.concatenate([jnp.sin(table), jnp.cos(table)], axis=1)  # (S, 128)


def init_params(key, C, P, n_layers, max_steps):
    keys = iter(jax.random.split(key, 256))

    def nrm(shape, std):
        return jax.random.normal(next(keys), shape, jnp.float32) * np.float32(std)

    def conv(cout, cin, k):                # kaiming_normal_-style fan_in init
        return nrm((cout, cin, k), np.sqrt(2.0 / (cin * k))), nrm((cout,), 0.05)

    def mrb(cout, cin):
        return [conv(cout, cin, k) for k in (3, 5, 7)]

    def linear(dout, din):
        return nrm((dout, din), 1.0 / np.sqrt(din)), nrm((dout,), 0.05)

    layers = []
    for _ in range(n_layers):
        w_diff, b_diff = linear(C, 512)
        w_out, b_out = conv(2 * C, C, 1)
        layers.append({'dilated': mrb(2 * C, C), 'cond_proj': mrb(2 * C, 1),
                       'phoneme': mrb(1, P), 'energy': mrb(1, 1),
                       'w_diff': w_diff, 'b_diff': b_diff,
                       'w_out': w_out, 'b_out': b_out})

    w_in, b_in = conv(C, 1, 1)
    diff_w1, diff_b1 = linear(512, 128)
    diff_w2, diff_b2 = linear(512, 512)
    w_skip, b_skip = conv(C, C, 1)
    # NOTE: PyTorch zero-inits the final output_projection weight; a small
    # random init is used here so the end-to-end check is non-trivial.
    w_outp, b_outp = conv(1, C, 1)
    return {'layers': layers, 'w_in': w_in, 'b_in': b_in,
            'diff_w1': diff_w1, 'diff_b1': diff_b1,
            'diff_w2': diff_w2, 'diff_b2': diff_b2,
            'w_skip': w_skip, 'b_skip': b_skip,
            'w_outp': w_outp, 'b_outp': b_outp,
            'emb_table': _build_embedding_table(max_steps)}


# ----------------------------------------------------------------------------
if __name__ == "__main__":
    B, C, L, P = 4, 8, 128, 2            # residual_channels=8, phoneme_context_dim=2
    n_layers, dil_cycle, max_steps = 4, 2, 50
    hp = {'dilation_cycle_length': dil_cycle}

    key = jax.random.PRNGKey(0)
    k_a, k_c, k_s, k_p, k_e, k_par = jax.random.split(key, 6)
    audio = jax.random.normal(k_a, (B, L), jnp.float32)
    conditioner = jax.random.normal(k_c, (B, 1, L), jnp.float32)
    diffusion_step = jax.random.randint(k_s, (B,), 0, max_steps)
    phoneme = jax.random.normal(k_p, (B, P, L), jnp.float32)
    energy = jax.random.normal(k_e, (B, 1, L), jnp.float32)
    params = init_params(k_par, C, P, n_layers, max_steps)

    # f32 path: exact check against the pure-JAX / lax.conv reference.
    folded_f32 = fold_params(params, hp, compute_dtype=jnp.float32)
    out = diffar_forward_pallas(audio, conditioner, diffusion_step, phoneme,
                                energy, params, folded_f32, hp,
                                compute_dtype=jnp.float32)
    out = jax.block_until_ready(out)
    out_ref = diffar_forward_ref(audio, conditioner, diffusion_step, phoneme,
                                 energy, params, hp)
    np.testing.assert_allclose(np.asarray(out), np.asarray(out_ref),
                               rtol=2e-3, atol=2e-3)

    # bf16 matmul operands / f32 residual carry + accumulation (production
    # path); loose sanity tolerance.
    folded_bf16 = fold_params(params, hp, compute_dtype=jnp.bfloat16)
    out_bf16 = diffar_forward_pallas(audio, conditioner, diffusion_step,
                                     phoneme, energy, params, folded_bf16, hp,
                                     compute_dtype=jnp.bfloat16)
    out_bf16 = jax.block_until_ready(out_bf16)
    np.testing.assert_allclose(np.asarray(out_bf16), np.asarray(out_ref),
                               rtol=1.5e-1, atol=1.5e-1)

    print("KERNEL_OK")
</pallas_src>

<mosaic_0001>
module attributes {stable_mosaic.version = 11 : i64} {
  func.func @kernel(%arg0: i32, %arg1: i32, %arg2: memref<1x128x8xf32, #tpu.memory_space<vmem>>, %arg3: memref<1x144x4xf32, #tpu.memory_space<vmem>>, %arg4: memref<1x1x1x8xf32, #tpu.memory_space<vmem>>, %arg5: memref<1x56x16xf32, #tpu.memory_space<vmem>>, %arg6: memref<1x28x16xf32, #tpu.memory_space<vmem>>, %arg7: memref<1x1x16xf32, #tpu.memory_space<vmem>>, %arg8: memref<1x8x16xf32, #tpu.memory_space<vmem>>, %arg9: memref<1x1x16xf32, #tpu.memory_space<vmem>>, %arg10: memref<1x128x8xf32, #tpu.memory_space<vmem>>, %arg11: memref<128x8xf32, #tpu.memory_space<vmem>>, %arg12: memref<144x8xf32, #tpu.memory_space<vmem>>) attributes {dimension_semantics = [#tpu.dimension_semantics<parallel>, #tpu.dimension_semantics<arbitrary>], iteration_bounds = array<i64: 4, 4>, scalar_prefetch = 0 : i64, scratch_operands = 2 : i64, tpu.core_type = #tpu.core_type<tc>, window_params = [{transform_indices = @transform_0, window_bounds = array<i64: 1, 128, 8>}, {transform_indices = @transform_1, window_bounds = array<i64: 1, 144, 4>}, {transform_indices = @transform_2, window_bounds = array<i64: 1, 1, 1, 8>}, {transform_indices = @transform_3, window_bounds = array<i64: 1, 56, 16>}, {transform_indices = @transform_4, window_bounds = array<i64: 1, 28, 16>}, {transform_indices = @transform_5, window_bounds = array<i64: 1, 1, 16>}, {transform_indices = @transform_6, window_bounds = array<i64: 1, 8, 16>}, {transform_indices = @transform_7, window_bounds = array<i64: 1, 1, 16>}, {transform_indices = @transform_8, window_bounds = array<i64: 1, 128, 8>}]} {
    %c0_i32 = arith.constant 0 : i32
    %0 = arith.cmpi eq, %arg1, %c0_i32 : i32
    %1 = arith.extui %0 : i1 to i32
    %c0_i32_0 = arith.constant 0 : i32
    %2 = arith.cmpi ne, %1, %c0_i32_0 : i32
    scf.if %2 {
      %c0_21 = arith.constant 0 : index
      %c0_22 = arith.constant 0 : index
      %c0_23 = arith.constant 0 : index
      %35 = vector.load %arg2[%c0_21, %c0_22, %c0_23] : memref<1x128x8xf32, #tpu.memory_space<vmem>>, vector<1x128x8xf32>
      %36 = vector.shape_cast %35 : vector<1x128x8xf32> to vector<128x8xf32>
      %c0_24 = arith.constant 0 : index
      %c0_25 = arith.constant 0 : index
      %37 = vector.load %arg11[%c0_24, %c0_25] : memref<128x8xf32, #tpu.memory_space<vmem>>, vector<128x8xf32>
      tpu.vector_store %arg11[%c0_24, %c0_25], %36 {strides = array<i32>} : memref<128x8xf32, #tpu.memory_space<vmem>>, vector<128x8xf32>,
      %cst = arith.constant 0.000000e+00 : f32
      %38 = vector.broadcast %cst : f32 to vector<1x128x8xf32>
      %c0_26 = arith.constant 0 : index
      %c0_27 = arith.constant 0 : index
      %c0_28 = arith.constant 0 : index
      %39 = vector.load %arg10[%c0_26, %c0_27, %c0_28] : memref<1x128x8xf32, #tpu.memory_space<vmem>>, vector<1x128x8xf32>
      tpu.vector_store %arg10[%c0_26, %c0_27, %c0_28], %38 {strides = array<i32>} : memref<1x128x8xf32, #tpu.memory_space<vmem>>, vector<1x128x8xf32>,
      %cst_29 = arith.constant 0.000000e+00 : f32
      %40 = vector.broadcast %cst_29 : f32 to vector<144x8xf32>
      %c0_30 = arith.constant 0 : index
      %c0_31 = arith.constant 0 : index
      %41 = vector.load %arg12[%c0_30, %c0_31] : memref<144x8xf32, #tpu.memory_space<vmem>>, vector<144x8xf32>
      tpu.vector_store %arg12[%c0_30, %c0_31], %40 {strides = array<i32>} : memref<144x8xf32, #tpu.memory_space<vmem>>, vector<144x8xf32>,
    } else {
    }
    %c0 = arith.constant 0 : index
    %c0_1 = arith.constant 0 : index
    %3 = vector.load %arg11[%c0, %c0_1] : memref<128x8xf32, #tpu.memory_space<vmem>>, vector<128x8xf32>
    %c0_2 = arith.constant 0 : index
    %c0_3 = arith.constant 0 : index
    %c0_4 = arith.constant 0 : index
    %c0_5 = arith.constant 0 : index
    %4 = vector.load %arg4[%c0_2, %c0_3, %c0_4, %c0_5] : memref<1x1x1x8xf32, #tpu.memory_space<vmem>>, vector<1x1x1x8xf32>
    %5 = vector.shape_cast %4 : vector<1x1x1x8xf32> to vector<1x8xf32>
    %6 = vector.broadcast %5 : vector<1x8xf32> to vector<128x8xf32>
    %7 = arith.addf %3, %6 : vector<128x8xf32>
    %c8 = arith.constant 8 : index
    %c0_6 = arith.constant 0 : index
    %8 = vector.load %arg12[%c8, %c0_6] : memref<144x8xf32, #tpu.memory_space<vmem>>, vector<128x8xf32>
    tpu.vector_store %arg12[%c8, %c0_6], %7 {strides = array<i32>} : memref<144x8xf32, #tpu.memory_space<vmem>>, vector<128x8xf32>,
    %c2_i32 = arith.constant 2 : i32
    %c0_i32_7 = arith.constant 0 : i32
    %9 = arith.cmpi eq, %c2_i32, %c0_i32_7 : i32
    %c1_i32 = arith.constant 1 : i32
    %10 = arith.select %9, %c1_i32, %c2_i32 : i32
    %11 = arith.remsi %arg1, %10 : i32
    %c0_i32_8 = arith.constant 0 : i32
    %12 = arith.cmpi ne, %11, %c0_i32_8 : i32
    %c0_i32_9 = arith.constant 0 : i32
    %13 = arith.cmpi slt, %11, %c0_i32_9 : i32
    %c0_i32_10 = arith.constant 0 : i32
    %14 = arith.cmpi slt, %10, %c0_i32_10 : i32
    %15 = arith.xori %13, %14 : i1
    %16 = arith.andi %15, %12 : i1
    %17 = arith.addi %11, %10 : i32
    %18 = arith.select %16, %17, %11 : i32
    %c0_i32_11 = arith.constant 0 : i32
    %19 = arith.cmpi eq, %18, %c0_i32_11 : i32
    %20 = arith.extui %19 : i1 to i32
    %c0_i32_12 = arith.constant 0 : i32
    %21 = arith.cmpi ne, %20, %c0_i32_12 : i32
    scf.if %21 {
      %c5 = arith.constant 5 : index
      %c0_21 = arith.constant 0 : index
      %35 = vector.load %arg12[%c5, %c0_21] : memref<144x8xf32, #tpu.memory_space<vmem>>, vector<128x8xf32>
      %c6 = arith.constant 6 : index
      %c0_22 = arith.constant 0 : index
      %36 = vector.load %arg12[%c6, %c0_22] : memref<144x8xf32, #tpu.memory_space<vmem>>, vector<128x8xf32>
      %c7 = arith.constant 7 : index
      %c0_23 = arith.constant 0 : index
      %37 = vector.load %arg12[%c7, %c0_23] : memref<144x8xf32, #tpu.memory_space<vmem>>, vector<128x8xf32>
      %c8_24 = arith.constant 8 : index
      %c0_25 = arith.constant 0 : index
      %38 = vector.load %arg12[%c8_24, %c0_25] : memref<144x8xf32, #tpu.memory_space<vmem>>, vector<128x8xf32>
      %c9 = arith.constant 9 : index
      %c0_26 = arith.constant 0 : index
      %39 = vector.load %arg12[%c9, %c0_26] : memref<144x8xf32, #tpu.memory_space<vmem>>, vector<128x8xf32>
      %c10 = arith.constant 10 : index
      %c0_27 = arith.constant 0 : index
      %40 = vector.load %arg12[%c10, %c0_27] : memref<144x8xf32, #tpu.memory_space<vmem>>, vector<128x8xf32>
      %c11 = arith.constant 11 : index
      %c0_28 = arith.constant 0 : index
      %41 = vector.load %arg12[%c11, %c0_28] : memref<144x8xf32, #tpu.memory_space<vmem>>, vector<128x8xf32>
      %42 = tpu.concatenate %35, %36, %37, %38, %39, %40, %41 in 1 : vector<128x8xf32>, vector<128x8xf32>, vector<128x8xf32>, vector<128x8xf32>, vector<128x8xf32>, vector<128x8xf32>, vector<128x8xf32> -> vector<128x56xf32>
      %c0_29 = arith.constant 0 : index
      %c5_30 = arith.constant 5 : index
      %c0_31 = arith.constant 0 : index
      %43 = vector.load %arg3[%c0_29, %c5_30, %c0_31] : memref<1x144x4xf32, #tpu.memory_space<vmem>>, vector<1x128x4xf32>
      %44 = vector.shape_cast %43 : vector<1x128x4xf32> to vector<128x4xf32>
      %c0_32 = arith.constant 0 : index
      %c6_33 = arith.constant 6 : index
      %c0_34 = arith.constant 0 : index
      %45 = vector.load %arg3[%c0_32, %c6_33, %c0_34] : memref<1x144x4xf32, #tpu.memory_space<vmem>>, vector<1x128x4xf32>
      %46 = vector.shape_cast %45 : vector<1x128x4xf32> to vector<128x4xf32>
      %c0_35 = arith.constant 0 : index
      %c7_36 = arith.constant 7 : index
      %c0_37 = arith.constant 0 : index
      %47 = vector.load %arg3[%c0_35, %c7_36, %c0_37] : memref<1x144x4xf32, #tpu.memory_space<vmem>>, vector<1x128x4xf32>
      %48 = vector.shape_cast %47 : vector<1x128x4xf32> to vector<128x4xf32>
      %c0_38 = arith.constant 0 : index
      %c8_39 = arith.constant 8 : index
      %c0_40 = arith.constant 0 : index
      %49 = vector.load %arg3[%c0_38, %c8_39, %c0_40] : memref<1x144x4xf32, #tpu.memory_space<vmem>>, vector<1x128x4xf32>
      %50 = vector.shape_cast %49 : vector<1x128x4xf32> to vector<128x4xf32>
      %c0_41 = arith.constant 0 : index
      %c9_42 = arith.constant 9 : index
      %c0_43 = arith.constant 0 : index
      %51 = vector.load %arg3[%c0_41, %c9_42, %c0_43] : memref<1x144x4xf32, #tpu.memory_space<vmem>>, vector<1x128x4xf32>
      %52 = vector.shape_cast %51 : vector<1x128x4xf32> to vector<128x4xf32>
      %c0_44 = arith.constant 0 : index
      %c10_45 = arith.constant 10 : index
      %c0_46 = arith.constant 0 : index
      %53 = vector.load %arg3[%c0_44, %c10_45, %c0_46] : memref<1x144x4xf32, #tpu.memory_space<vmem>>, vector<1x128x4xf32>
      %54 = vector.shape_cast %53 : vector<1x128x4xf32> to vector<128x4xf32>
      %c0_47 = arith.constant 0 : index
      %c11_48 = arith.constant 11 : index
      %c0_49 = arith.constant 0 : index
      %55 = vector.load %arg3[%c0_47, %c11_48, %c0_49] : memref<1x144x4xf32, #tpu.memory_space<vmem>>, vector<1x128x4xf32>
      %56 = vector.shape_cast %55 : vector<1x128x4xf32> to vector<128x4xf32>
      %57 = tpu.concatenate %44, %46, %48, %50, %52, %54, %56 in 1 : vector<128x4xf32>, vector<128x4xf32>, vector<128x4xf32>, vector<128x4xf32>, vector<128x4xf32>, vector<128x4xf32>, vector<128x4xf32> -> vector<128x28xf32>
      %c0_50 = arith.constant 0 : index
      %c0_51 = arith.constant 0 : index
      %c0_52 = arith.constant 0 : index
      %58 = vector.load %arg5[%c0_50, %c0_51, %c0_52] : memref<1x56x16xf32, #tpu.memory_space<vmem>>, vector<1x56x16xf32>
      %59 = vector.shape_cast %58 : vector<1x56x16xf32> to vector<56x16xf32>
      %cst = arith.constant dense<0.000000e+00> : vector<128x16xf32>
      %60 = tpu.matmul %42, %59, %cst {dimension_numbers = #tpu.dot_dimension_numbers<[1], [0], [0], [1], [0, 0, 1, 1], [], []>} : vector<128x56xf32>, vector<56x16xf32>, vector<128x16xf32> -> vector<128x16xf32>
      %c0_53 = arith.constant 0 : index
      %c0_54 = arith.constant 0 : index
      %c0_55 = arith.constant 0 : index
      %61 = vector.load %arg6[%c0_53, %c0_54, %c0_55] : memref<1x28x16xf32, #tpu.memory_space<vmem>>, vector<1x28x16xf32>
      %62 = vector.shape_cast %61 : vector<1x28x16xf32> to vector<28x16xf32>
      %cst_56 = arith.constant dense<0.000000e+00> : vector<128x16xf32>
      %63 = tpu.matmul %57, %62, %cst_56 {dimension_numbers = #tpu.dot_dimension_numbers<[1], [0], [0], [1], [0, 0, 1, 1], [], []>} : vector<128x28xf32>, vector<28x16xf32>, vector<128x16xf32> -> vector<128x16xf32>
      %64 = arith.addf %60, %63 : vector<128x16xf32>
      %c0_57 = arith.constant 0 : index
      %c0_58 = arith.constant 0 : index
      %c0_59 = arith.constant 0 : index
      %65 = vector.load %arg7[%c0_57, %c0_58, %c0_59] : memref<1x1x16xf32, #tpu.memory_space<vmem>>, vector<1x1x16xf32>
      %66 = vector.shape_cast %65 : vector<1x1x16xf32> to vector<1x16xf32>
      %67 = vector.broadcast %66 : vector<1x16xf32> to vector<128x16xf32>
      %68 = arith.addf %64, %67 : vector<128x16xf32>
      %69 = vector.extract_strided_slice %68 {offsets = [0, 0], sizes = [128, 8], strides = [1, 1]} : vector<128x16xf32> to vector<128x8xf32>
      %70 = arith.negf %69 : vector<128x8xf32>
      %71 = math.exp %70 : vector<128x8xf32>
      %cst_60 = arith.constant 1.000000e+00 : f32
      %72 = vector.broadcast %cst_60 : f32 to vector<128x8xf32>
      %73 = arith.addf %72, %71 : vector<128x8xf32>
      %74 = arith.divf %72, %73 : vector<128x8xf32>
      %75 = vector.extract_strided_slice %68 {offsets = [0, 8], sizes = [128, 8], strides = [1, 1]} : vector<128x16xf32> to vector<128x8xf32>
      %76 = math.tanh %75 : vector<128x8xf32>
      %77 = arith.mulf %74, %76 : vector<128x8xf32>
      %c0_61 = arith.constant 0 : index
      %c0_62 = arith.constant 0 : index
      %c0_63 = arith.constant 0 : index
      %78 = vector.load %arg8[%c0_61, %c0_62, %c0_63] : memref<1x8x16xf32, #tpu.memory_space<vmem>>, vector<1x8x16xf32>
      %79 = vector.shape_cast %78 : vector<1x8x16xf32> to vector<8x16xf32>
      %cst_64 = arith.constant dense<0.000000e+00> : vector<128x16xf32>
      %80 = tpu.matmul %77, %79, %cst_64 {dimension_numbers = #tpu.dot_dimension_numbers<[1], [0], [0], [1], [0, 0, 1, 1], [], []>} : vector<128x8xf32>, vector<8x16xf32>, vector<128x16xf32> -> vector<128x16xf32>
      %c0_65 = arith.constant 0 : index
      %c0_66 = arith.constant 0 : index
      %c0_67 = arith.constant 0 : index
      %81 = vector.load %arg9[%c0_65, %c0_66, %c0_67] : memref<1x1x16xf32, #tpu.memory_space<vmem>>, vector<1x1x16xf32>
      %82 = vector.shape_cast %81 : vector<1x1x16xf32> to vector<1x16xf32>
      %83 = vector.broadcast %82 : vector<1x16xf32> to vector<128x16xf32>
      %84 = arith.addf %80, %83 : vector<128x16xf32>
      %c0_68 = arith.constant 0 : index
      %c0_69 = arith.constant 0 : index
      %85 = vector.load %arg11[%c0_68, %c0_69] : memref<128x8xf32, #tpu.memory_space<vmem>>, vector<128x8xf32>
      %86 = vector.extract_strided_slice %84 {offsets = [0, 0], sizes = [128, 8], strides = [1, 1]} : vector<128x16xf32> to vector<128x8xf32>
      %87 = arith.addf %85, %86 : vector<128x8xf32>
      %cst_70 = arith.constant 0.707106769 : f32
      %88 = vector.broadcast %cst_70 : f32 to vector<128x8xf32>
      %89 = arith.mulf %87, %88 : vector<128x8xf32>
      %c0_71 = arith.constant 0 : index
      %c0_72 = arith.constant 0 : index
      %90 = vector.load %arg11[%c0_71, %c0_72] : memref<128x8xf32, #tpu.memory_space<vmem>>, vector<128x8xf32>
      tpu.vector_store %arg11[%c0_71, %c0_72], %89 {strides = array<i32>} : memref<128x8xf32, #tpu.memory_space<vmem>>, vector<128x8xf32>,
      %c0_73 = arith.constant 0 : index
      %c0_74 = arith.constant 0 : index
      %c0_75 = arith.constant 0 : index
      %91 = vector.load %arg10[%c0_73, %c0_74, %c0_75] : memref<1x128x8xf32, #tpu.memory_space<vmem>>, vector<1x128x8xf32>
      %92 = vector.shape_cast %91 : vector<1x128x8xf32> to vector<128x8xf32>
      %93 = vector.extract_strided_slice %84 {offsets = [0, 8], sizes = [128, 8], strides = [1, 1]} : vector<128x16xf32> to vector<128x8xf32>
      %94 = arith.addf %92, %93 : vector<128x8xf32>
      %c0_76 = arith.constant 0 : index
      %c0_77 = arith.constant 0 : index
      %c0_78 = arith.constant 0 : index
      %95 = vector.load %arg10[%c0_76, %c0_77, %c0_78] : memref<1x128x8xf32, #tpu.memory_space<vmem>>, vector<1x128x8xf32>
      %96 = vector.shape_cast %95 : vector<1x128x8xf32> to vector<128x8xf32>
      %97 = vector.shape_cast %94 : vector<128x8xf32> to vector<1x128x8xf32>
      tpu.vector_store %arg10[%c0_76, %c0_77, %c0_78], %97 {strides = array<i32>} : memref<1x128x8xf32, #tpu.memory_space<vmem>>, vector<1x128x8xf32>,
    } else {
    }
    %c2_i32_13 = arith.constant 2 : i32
    %c0_i32_14 = arith.constant 0 : i32
    %22 = arith.cmpi eq, %c2_i32_13, %c0_i32_14 : i32
    %c1_i32_15 = arith.constant 1 : i32
    %23 = arith.select %22, %c1_i32_15, %c2_i32_13 : i32
    %24 = arith.remsi %arg1, %23 : i32
    %c0_i32_16 = arith.constant 0 : i32
    %25 = arith.cmpi ne, %24, %c0_i32_16 : i32
    %c0_i32_17 = arith.constant 0 : i32
    %26 = arith.cmpi slt, %24, %c0_i32_17 : i32
    %c0_i32_18 = arith.constant 0 : i32
    %27 = arith.cmpi slt, %23, %c0_i32_18 : i32
    %28 = arith.xori %26, %27 : i1
    %29 = arith.andi %28, %25 : i1
    %30 = arith.addi %24, %23 : i32
    %31 = arith.select %29, %30, %24 : i32
    %c1_i32_19 = arith.constant 1 : i32
    %32 = arith.cmpi eq, %31, %c1_i32_19 : i32
    %33 = arith.extui %32 : i1 to i32
    %c0_i32_20 = arith.constant 0 : i32
    %34 = arith.cmpi ne, %33, %c0_i32_20 : i32
    scf.if %34 {
      %c2 = arith.constant 2 : index
      %c0_21 = arith.constant 0 : index
      %35 = vector.load %arg12[%c2, %c0_21] : memref<144x8xf32, #tpu.memory_space<vmem>>, vector<128x8xf32>
      %c4 = arith.constant 4 : index
      %c0_22 = arith.constant 0 : index
      %36 = vector.load %arg12[%c4, %c0_22] : memref<144x8xf32, #tpu.memory_space<vmem>>, vector<128x8xf32>
      %c6 = arith.constant 6 : index
      %c0_23 = arith.constant 0 : index
      %37 = vector.load %arg12[%c6, %c0_23] : memref<144x8xf32, #tpu.memory_space<vmem>>, vector<128x8xf32>
      %c8_24 = arith.constant 8 : index
      %c0_25 = arith.constant 0 : index
      %38 = vector.load %arg12[%c8_24, %c0_25] : memref<144x8xf32, #tpu.memory_space<vmem>>, vector<128x8xf32>
      %c10 = arith.constant 10 : index
      %c0_26 = arith.constant 0 : index
      %39 = vector.load %arg12[%c10, %c0_26] : memref<144x8xf32, #tpu.memory_space<vmem>>, vector<128x8xf32>
      %c12 = arith.constant 12 : index
      %c0_27 = arith.constant 0 : index
      %40 = vector.load %arg12[%c12, %c0_27] : memref<144x8xf32, #tpu.memory_space<vmem>>, vector<128x8xf32>
      %c14 = arith.constant 14 : index
      %c0_28 = arith.constant 0 : index
      %41 = vector.load %arg12[%c14, %c0_28] : memref<144x8xf32, #tpu.memory_space<vmem>>, vector<128x8xf32>
      %42 = tpu.concatenate %35, %36, %37, %38, %39, %40, %41 in 1 : vector<128x8xf32>, vector<128x8xf32>, vector<128x8xf32>, vector<128x8xf32>, vector<128x8xf32>, vector<128x8xf32>, vector<128x8xf32> -> vector<128x56xf32>
      %c0_29 = arith.constant 0 : index
      %c2_30 = arith.constant 2 : index
      %c0_31 = arith.constant 0 : index
      %43 = vector.load %arg3[%c0_29, %c2_30, %c0_31] : memref<1x144x4xf32, #tpu.memory_space<vmem>>, vector<1x128x4xf32>
      %44 = vector.shape_cast %43 : vector<1x128x4xf32> to vector<128x4xf32>
      %c0_32 = arith.constant 0 : index
      %c4_33 = arith.constant 4 : index
      %c0_34 = arith.constant 0 : index
      %45 = vector.load %arg3[%c0_32, %c4_33, %c0_34] : memref<1x144x4xf32, #tpu.memory_space<vmem>>, vector<1x128x4xf32>
      %46 = vector.shape_cast %45 : vector<1x128x4xf32> to vector<128x4xf32>
      %c0_35 = arith.constant 0 : index
      %c6_36 = arith.constant 6 : index
      %c0_37 = arith.constant 0 : index
      %47 = vector.load %arg3[%c0_35, %c6_36, %c0_37] : memref<1x144x4xf32, #tpu.memory_space<vmem>>, vector<1x128x4xf32>
      %48 = vector.shape_cast %47 : vector<1x128x4xf32> to vector<128x4xf32>
      %c0_38 = arith.constant 0 : index
      %c8_39 = arith.constant 8 : index
      %c0_40 = arith.constant 0 : index
      %49 = vector.load %arg3[%c0_38, %c8_39, %c0_40] : memref<1x144x4xf32, #tpu.memory_space<vmem>>, vector<1x128x4xf32>
      %50 = vector.shape_cast %49 : vector<1x128x4xf32> to vector<128x4xf32>
      %c0_41 = arith.constant 0 : index
      %c10_42 = arith.constant 10 : index
      %c0_43 = arith.constant 0 : index
      %51 = vector.load %arg3[%c0_41, %c10_42, %c0_43] : memref<1x144x4xf32, #tpu.memory_space<vmem>>, vector<1x128x4xf32>
      %52 = vector.shape_cast %51 : vector<1x128x4xf32> to vector<128x4xf32>
      %c0_44 = arith.constant 0 : index
      %c12_45 = arith.constant 12 : index
      %c0_46 = arith.constant 0 : index
      %53 = vector.load %arg3[%c0_44, %c12_45, %c0_46] : memref<1x144x4xf32, #tpu.memory_space<vmem>>, vector<1x128x4xf32>
      %54 = vector.shape_cast %53 : vector<1x128x4xf32> to vector<128x4xf32>
      %c0_47 = arith.constant 0 : index
      %c14_48 = arith.constant 14 : index
      %c0_49 = arith.constant 0 : index
      %55 = vector.load %arg3[%c0_47, %c14_48, %c0_49] : memref<1x144x4xf32, #tpu.memory_space<vmem>>, vector<1x128x4xf32>
      %56 = vector.shape_cast %55 : vector<1x128x4xf32> to vector<128x4xf32>
      %57 = tpu.concatenate %44, %46, %48, %50, %52, %54, %56 in 1 : vector<128x4xf32>, vector<128x4xf32>, vector<128x4xf32>, vector<128x4xf32>, vector<128x4xf32>, vector<128x4xf32>, vector<128x4xf32> -> vector<128x28xf32>
      %c0_50 = arith.constant 0 : index
      %c0_51 = arith.constant 0 : index
      %c0_52 = arith.constant 0 : index
      %58 = vector.load %arg5[%c0_50, %c0_51, %c0_52] : memref<1x56x16xf32, #tpu.memory_space<vmem>>, vector<1x56x16xf32>
      %59 = vector.shape_cast %58 : vector<1x56x16xf32> to vector<56x16xf32>
      %cst = arith.constant dense<0.000000e+00> : vector<128x16xf32>
      %60 = tpu.matmul %42, %59, %cst {dimension_numbers = #tpu.dot_dimension_numbers<[1], [0], [0], [1], [0, 0, 1, 1], [], []>} : vector<128x56xf32>, vector<56x16xf32>, vector<128x16xf32> -> vector<128x16xf32>
      %c0_53 = arith.constant 0 : index
      %c0_54 = arith.constant 0 : index
      %c0_55 = arith.constant 0 : index
      %61 = vector.load %arg6[%c0_53, %c0_54, %c0_55] : memref<1x28x16xf32, #tpu.memory_space<vmem>>, vector<1x28x16xf32>
      %62 = vector.shape_cast %61 : vector<1x28x16xf32> to vector<28x16xf32>
      %cst_56 = arith.constant dense<0.000000e+00> : vector<128x16xf32>
      %63 = tpu.matmul %57, %62, %cst_56 {dimension_numbers = #tpu.dot_dimension_numbers<[1], [0], [0], [1], [0, 0, 1, 1], [], []>} : vector<128x28xf32>, vector<28x16xf32>, vector<128x16xf32> -> vector<128x16xf32>
      %64 = arith.addf %60, %63 : vector<128x16xf32>
      %c0_57 = arith.constant 0 : index
      %c0_58 = arith.constant 0 : index
      %c0_59 = arith.constant 0 : index
      %65 = vector.load %arg7[%c0_57, %c0_58, %c0_59] : memref<1x1x16xf32, #tpu.memory_space<vmem>>, vector<1x1x16xf32>
      %66 = vector.shape_cast %65 : vector<1x1x16xf32> to vector<1x16xf32>
      %67 = vector.broadcast %66 : vector<1x16xf32> to vector<128x16xf32>
      %68 = arith.addf %64, %67 : vector<128x16xf32>
      %69 = vector.extract_strided_slice %68 {offsets = [0, 0], sizes = [128, 8], strides = [1, 1]} : vector<128x16xf32> to vector<128x8xf32>
      %70 = arith.negf %69 : vector<128x8xf32>
      %71 = math.exp %70 : vector<128x8xf32>
      %cst_60 = arith.constant 1.000000e+00 : f32
      %72 = vector.broadcast %cst_60 : f32 to vector<128x8xf32>
      %73 = arith.addf %72, %71 : vector<128x8xf32>
      %74 = arith.divf %72, %73 : vector<128x8xf32>
      %75 = vector.extract_strided_slice %68 {offsets = [0, 8], sizes = [128, 8], strides = [1, 1]} : vector<128x16xf32> to vector<128x8xf32>
      %76 = math.tanh %75 : vector<128x8xf32>
      %77 = arith.mulf %74, %76 : vector<128x8xf32>
      %c0_61 = arith.constant 0 : index
      %c0_62 = arith.constant 0 : index
      %c0_63 = arith.constant 0 : index
      %78 = vector.load %arg8[%c0_61, %c0_62, %c0_63] : memref<1x8x16xf32, #tpu.memory_space<vmem>>, vector<1x8x16xf32>
      %79 = vector.shape_cast %78 : vector<1x8x16xf32> to vector<8x16xf32>
      %cst_64 = arith.constant dense<0.000000e+00> : vector<128x16xf32>
      %80 = tpu.matmul %77, %79, %cst_64 {dimension_numbers = #tpu.dot_dimension_numbers<[1], [0], [0], [1], [0, 0, 1, 1], [], []>} : vector<128x8xf32>, vector<8x16xf32>, vector<128x16xf32> -> vector<128x16xf32>
      %c0_65 = arith.constant 0 : index
      %c0_66 = arith.constant 0 : index
      %c0_67 = arith.constant 0 : index
      %81 = vector.load %arg9[%c0_65, %c0_66, %c0_67] : memref<1x1x16xf32, #tpu.memory_space<vmem>>, vector<1x1x16xf32>
      %82 = vector.shape_cast %81 : vector<1x1x16xf32> to vector<1x16xf32>
      %83 = vector.broadcast %82 : vector<1x16xf32> to vector<128x16xf32>
      %84 = arith.addf %80, %83 : vector<128x16xf32>
      %c0_68 = arith.constant 0 : index
      %c0_69 = arith.constant 0 : index
      %85 = vector.load %arg11[%c0_68, %c0_69] : memref<128x8xf32, #tpu.memory_space<vmem>>, vector<128x8xf32>
      %86 = vector.extract_strided_slice %84 {offsets = [0, 0], sizes = [128, 8], strides = [1, 1]} : vector<128x16xf32> to vector<128x8xf32>
      %87 = arith.addf %85, %86 : vector<128x8xf32>
      %cst_70 = arith.constant 0.707106769 : f32
      %88 = vector.broadcast %cst_70 : f32 to vector<128x8xf32>
      %89 = arith.mulf %87, %88 : vector<128x8xf32>
      %c0_71 = arith.constant 0 : index
      %c0_72 = arith.constant 0 : index
      %90 = vector.load %arg11[%c0_71, %c0_72] : memref<128x8xf32, #tpu.memory_space<vmem>>, vector<128x8xf32>
      tpu.vector_store %arg11[%c0_71, %c0_72], %89 {strides = array<i32>} : memref<128x8xf32, #tpu.memory_space<vmem>>, vector<128x8xf32>,
      %c0_73 = arith.constant 0 : index
      %c0_74 = arith.constant 0 : index
      %c0_75 = arith.constant 0 : index
      %91 = vector.load %arg10[%c0_73, %c0_74, %c0_75] : memref<1x128x8xf32, #tpu.memory_space<vmem>>, vector<1x128x8xf32>
      %92 = vector.shape_cast %91 : vector<1x128x8xf32> to vector<128x8xf32>
      %93 = vector.extract_strided_slice %84 {offsets = [0, 8], sizes = [128, 8], strides = [1, 1]} : vector<128x16xf32> to vector<128x8xf32>
      %94 = arith.addf %92, %93 : vector<128x8xf32>
      %c0_76 = arith.constant 0 : index
      %c0_77 = arith.constant 0 : index
      %c0_78 = arith.constant 0 : index
      %95 = vector.load %arg10[%c0_76, %c0_77, %c0_78] : memref<1x128x8xf32, #tpu.memory_space<vmem>>, vector<1x128x8xf32>
      %96 = vector.shape_cast %95 : vector<1x128x8xf32> to vector<128x8xf32>
      %97 = vector.shape_cast %94 : vector<128x8xf32> to vector<1x128x8xf32>
      tpu.vector_store %arg10[%c0_76, %c0_77, %c0_78], %97 {strides = array<i32>} : memref<1x128x8xf32, #tpu.memory_space<vmem>>, vector<1x128x8xf32>,
    } else {
    }
    return
  }
  func.func @transform_0(%arg0: i32, %arg1: i32) -> (i32, i32, i32) {
    %c0_i32 = arith.constant 0 : i32
    %c0_i32_0 = arith.constant 0 : i32
    %c0_i32_1 = arith.constant 0 : i32
    return %arg0, %c0_i32, %c0_i32_0 : i32, i32, i32
  }
  func.func @transform_1(%arg0: i32, %arg1: i32) -> (i32, i32, i32) {
    %c0_i32 = arith.constant 0 : i32
    %c0_i32_0 = arith.constant 0 : i32
    %c0_i32_1 = arith.constant 0 : i32
    return %arg0, %c0_i32, %c0_i32_0 : i32, i32, i32
  }
  func.func @transform_2(%arg0: i32, %arg1: i32) -> (i32, i32, i32, i32) {
    %c0_i32 = arith.constant 0 : i32
    %c0_i32_0 = arith.constant 0 : i32
    %c0_i32_1 = arith.constant 0 : i32
    return %arg1, %arg0, %c0_i32, %c0_i32_0 : i32, i32, i32, i32
  }
  func.func @transform_3(%arg0: i32, %arg1: i32) -> (i32, i32, i32) {
    %c0_i32 = arith.constant 0 : i32
    %c0_i32_0 = arith.constant 0 : i32
    %c0_i32_1 = arith.constant 0 : i32
    return %arg1, %c0_i32, %c0_i32_0 : i32, i32, i32
  }
  func.func @transform_4(%arg0: i32, %arg1: i32) -> (i32, i32, i32) {
    %c0_i32 = arith.constant 0 : i32
    %c0_i32_0 = arith.constant 0 : i32
    %c0_i32_1 = arith.constant 0 : i32
    return %arg1, %c0_i32, %c0_i32_0 : i32, i32, i32
  }
  func.func @transform_5(%arg0: i32, %arg1: i32) -> (i32, i32, i32) {
    %c0_i32 = arith.constant 0 : i32
    %c0_i32_0 = arith.constant 0 : i32
    %c0_i32_1 = arith.constant 0 : i32
    return %arg1, %c0_i32, %c0_i32_0 : i32, i32, i32
  }
  func.func @transform_6(%arg0: i32, %arg1: i32) -> (i32, i32, i32) {
    %c0_i32 = arith.constant 0 : i32
    %c0_i32_0 = arith.constant 0 : i32
    %c0_i32_1 = arith.constant 0 : i32
    return %arg1, %c0_i32, %c0_i32_0 : i32, i32, i32
  }
  func.func @transform_7(%arg0: i32, %arg1: i32) -> (i32, i32, i32) {
    %c0_i32 = arith.constant 0 : i32
    %c0_i32_0 = arith.constant 0 : i32
    %c0_i32_1 = arith.constant 0 : i32
    return %arg1, %c0_i32, %c0_i32_0 : i32, i32, i32
  }
  func.func @transform_8(%arg0: i32, %arg1: i32) -> (i32, i32, i32) {
    %c0_i32 = arith.constant 0 : i32
    %c0_i32_0 = arith.constant 0 : i32
    %c0_i32_1 = arith.constant 0 : i32
    return %arg0, %c0_i32, %c0_i32_0 : i32, i32, i32
  }
}

</mosaic_0001>

<llo_original>
// kernel: tpu_custom_call.1
$region0: #{tpu_custom_call.1}
  #allocation0 [shape = 'u32[]', space=smem, size = 0x4, offset = 0x4, fixed_abs, tag = 'smem constant byte address 0x4 - core index']
  #allocation1 [shape = 'u32[144,128]{1,0:T(1,128)}', space=vmem, size = 0x12000, scoped, tag = 'internal scratch']
  #allocation2 [shape = 'f32[128,8]{1,0:T(8,128)}', space=vmem, size = 0x10000, scoped, tag = 'scratch operand']
  #allocation3 [shape = 'f32[144,8]{1,0:T(8,128)}', space=vmem, size = 0x12000, scoped, tag = 'scratch operand']
  %s0 = inlined_call_operand.vmem [shape: f32[4,128,8], index: 0, kind: input, shape index: {}]
  %s1 = inlined_call_operand.vmem [shape: f32[4,144,4], index: 1, kind: input, shape index: {}]
  %s2 = inlined_call_operand.vmem [shape: f32[4,4,1,8], index: 2, kind: input, shape index: {}]
  %s3 = inlined_call_operand.vmem [shape: f32[4,56,16], index: 3, kind: input, shape index: {}]
  %s4 = inlined_call_operand.vmem [shape: f32[4,28,16], index: 4, kind: input, shape index: {}]
  %s5 = inlined_call_operand.vmem [shape: f32[4,1,16], index: 5, kind: input, shape index: {}]
  %s6 = inlined_call_operand.vmem [shape: f32[4,8,16], index: 6, kind: input, shape index: {}]
  %s7 = inlined_call_operand.vmem [shape: f32[4,1,16], index: 7, kind: input, shape index: {}]
  %s8 = inlined_call_operand.vmem [shape: f32[4,128,8], index: 8, kind: output, shape index: {}]
  %s9 = sld [smem:[#allocation0]]
  $region77: #{tpu_custom_call.1} parent=0
    _
  %s11 = ssub.s32 1, %s9
  %s12 = scalar_select 0, %s11, %s9
  loop: start=0, step=1, limit=18
  $region2: #{tpu_custom_call.1} parent=0 // loop_pre_header
    _
  $region3: #{tpu_custom_call.1} parent=0 // loop_header
    %s14 = sphi 0, %s18
    %p15 = scmp.ge.s32.totalorder %s14, 18
    %s21 = sphi 0, %s33
    %s22 = sphi 0, %s29
    %s23 = sphi 0, %s21
    %s24 = sphi 0, %s22
    %s25 = sphi 0, %s23
    %s26 = sphi 0, %s24
    %s36 = sphi 0, %s38
    %s39 = sphi 0, %s36
    %s40 = sphi 0, %s39
    %s56 = sphi 0, %s40
    %s62 = sphi 0, %s64
    %s65 = sphi 0, %s62
    %s66 = sphi 0, %s65
    %s82 = sphi 0, %s66
    %s90 = sphi 0, %s92
    %s93 = sphi 0, %s90
    %s94 = sphi 0, %s93
    %s110 = sphi 0, %s94
    %s116 = sphi 0, %s118
    %s119 = sphi 0, %s116
    %s120 = sphi 0, %s119
    %s136 = sphi 0, %s120
    %s142 = sphi 0, %s144
    %s145 = sphi 0, %s142
    %s146 = sphi 0, %s145
    %s162 = sphi 0, %s146
    %s168 = sphi 0, %s170
    %s171 = sphi 0, %s168
    %s172 = sphi 0, %s171
    %s188 = sphi 0, %s172
    %s194 = sphi 0, %s196
    %s197 = sphi 0, %s194
    %s198 = sphi 0, %s197
    %s214 = sphi 0, %s198
    %s220 = sphi 0, %s222
    %s223 = sphi 0, %s220
    %s224 = sphi 0, %s223
    %s240 = sphi 0, %s224
    %s246 = sphi 0, %s248
    %s249 = sphi 0, %s246
    %s250 = sphi 0, %s249
    %s266 = sphi 0, %s250
  $region4: #{tpu_custom_call.1} parent=0 // loop_header_branch
    %17 = sbr.rel (%p15) target = $region8
  $region5: #{tpu_custom_call.1} parent=0 // loop_body
    %s19 = ssub.s32 %s14, 1
    %s20 = ssub.s32 %s14, 2
    %s27 = sadd.s32 1, %s22
    %p28 = scmp.ge.s32.totalorder %s27, 4
    %s29 = scalar_select %p28, 0, %s27
    %s30 = sadd.s32 1, %s21
    %s31 = scalar_select %p28, %s30, %s21
    %p32 = scmp.ge.s32.totalorder %s31, 4
    %s33 = scalar_select %p32, 0, %s31
    %s34 = ssub.s32 %s21, %s33
    %p35 = scmp.eq.s32.totalorder %s34, 0
    %s37 = sadd.s32 %s36, 1
    %s38 = scalar_select %p35, %s36, %s37
    %p41 = pneg %p35
    %p42 = scmp.eq.s32.totalorder %s14, 15
    %p43 = por %p41, %p42
    %p44 = scmp.ne.s32.totalorder %s36, %s39
    %p45 = scmp.eq.s32.totalorder %s14, 0
    %p46 = por %p44, %p45
    %p47 = scmp.ne.s32.totalorder %s36, %s39
    %p48 = scmp.eq.s32.totalorder %s19, 15
    %p49 = por %p47, %p48
    %p50 = scmp.ne.s32.totalorder %s39, %s40
    %p51 = scmp.eq.s32.totalorder %s19, 0
    %p52 = por %p50, %p51
    %p53 = scmp.ne.s32.totalorder %s39, %s40
    %p54 = scmp.eq.s32.totalorder %s20, 15
    %p55 = por %p53, %p54
    %p57 = scmp.ne.s32.totalorder %s40, %s56
    %p58 = scmp.eq.s32.totalorder %s20, 0
    %p59 = por %p57, %p58
    %s60 = ssub.s32 %s21, %s33
    %p61 = scmp.eq.s32.totalorder %s60, 0
    %s63 = sadd.s32 %s62, 1
    %s64 = scalar_select %p61, %s62, %s63
    %p67 = pneg %p61
    %p68 = scmp.eq.s32.totalorder %s14, 15
    %p69 = por %p67, %p68
    %p70 = scmp.ne.s32.totalorder %s62, %s65
    %p71 = scmp.eq.s32.totalorder %s14, 0
    %p72 = por %p70, %p71
    %p73 = scmp.ne.s32.totalorder %s62, %s65
    %p74 = scmp.eq.s32.totalorder %s19, 15
    %p75 = por %p73, %p74
    %p76 = scmp.ne.s32.totalorder %s65, %s66
    %p77 = scmp.eq.s32.totalorder %s19, 0
    %p78 = por %p76, %p77
    %p79 = scmp.ne.s32.totalorder %s65, %s66
    %p80 = scmp.eq.s32.totalorder %s20, 15
    %p81 = por %p79, %p80
    %p83 = scmp.ne.s32.totalorder %s66, %s82
    %p84 = scmp.eq.s32.totalorder %s20, 0
    %p85 = por %p83, %p84
    %s86 = ssub.s32 %s22, %s29
    %s87 = ssub.s32 %s21, %s33
    %s88 = sor.u32 %s86, %s87
    %p89 = scmp.eq.s32.totalorder %s88, 0
    %s91 = sadd.s32 %s90, 1
    %s92 = scalar_select %p89, %s90, %s91
    %p95 = pneg %p89
    %p96 = scmp.eq.s32.totalorder %s14, 15
    %p97 = por %p95, %p96
    %p98 = scmp.ne.s32.totalorder %s90, %s93
    %p99 = scmp.eq.s32.totalorder %s14, 0
    %p100 = por %p98, %p99
    %p101 = scmp.ne.s32.totalorder %s90, %s93
    %p102 = scmp.eq.s32.totalorder %s19, 15
    %p103 = por %p101, %p102
    %p104 = scmp.ne.s32.totalorder %s93, %s94
    %p105 = scmp.eq.s32.totalorder %s19, 0
    %p106 = por %p104, %p105
    %p107 = scmp.ne.s32.totalorder %s93, %s94
    %p108 = scmp.eq.s32.totalorder %s20, 15
    %p109 = por %p107, %p108
    %p111 = scmp.ne.s32.totalorder %s94, %s110
    %p112 = scmp.eq.s32.totalorder %s20, 0
    %p113 = por %p111, %p112
    %s114 = ssub.s32 %s22, %s29
    %p115 = scmp.eq.s32.totalorder %s114, 0
    %s117 = sadd.s32 %s116, 1
    %s118 = scalar_select %p115, %s116, %s117
    %p121 = pneg %p115
    %p122 = scmp.eq.s32.totalorder %s14, 15
    %p123 = por %p121, %p122
    %p124 = scmp.ne.s32.totalorder %s116, %s119
    %p125 = scmp.eq.s32.totalorder %s14, 0
    %p126 = por %p124, %p125
    %p127 = scmp.ne.s32.totalorder %s116, %s119
    %p128 = scmp.eq.s32.totalorder %s19, 15
    %p129 = por %p127, %p128
    %p130 = scmp.ne.s32.totalorder %s119, %s120
    %p131 = scmp.eq.s32.totalorder %s19, 0
    %p132 = por %p130, %p131
    %p133 = scmp.ne.s32.totalorder %s119, %s120
    %p134 = scmp.eq.s32.totalorder %s20, 15
    %p135 = por %p133, %p134
    %p137 = scmp.ne.s32.totalorder %s120, %s136
    %p138 = scmp.eq.s32.totalorder %s20, 0
    %p139 = por %p137, %p138
    %s140 = ssub.s32 %s22, %s29
    %p141 = scmp.eq.s32.totalorder %s140, 0
    %s143 = sadd.s32 %s142, 1
    %s144 = scalar_select %p141, %s142, %s143
    %p147 = pneg %p141
    %p148 = scmp.eq.s32.totalorder %s14, 15
    %p149 = por %p147, %p148
    %p150 = scmp.ne.s32.totalorder %s142, %s145
    %p151 = scmp.eq.s32.totalorder %s14, 0
    %p152 = por %p150, %p151
    %p153 = scmp.ne.s32.totalorder %s142, %s145
    %p154 = scmp.eq.s32.totalorder %s19, 15
    %p155 = por %p153, %p154
    %p156 = scmp.ne.s32.totalorder %s145, %s146
    %p157 = scmp.eq.s32.totalorder %s19, 0
    %p158 = por %p156, %p157
    %p159 = scmp.ne.s32.totalorder %s145, %s146
    %p160 = scmp.eq.s32.totalorder %s20, 15
    %p161 = por %p159, %p160
    %p163 = scmp.ne.s32.totalorder %s146, %s162
    %p164 = scmp.eq.s32.totalorder %s20, 0
    %p165 = por %p163, %p164
    %s166 = ssub.s32 %s22, %s29
    %p167 = scmp.eq.s32.totalorder %s166, 0
    %s169 = sadd.s32 %s168, 1
    %s170 = scalar_select %p167, %s168, %s169
    %p173 = pneg %p167
    %p174 = scmp.eq.s32.totalorder %s14, 15
    %p175 = por %p173, %p174
    %p176 = scmp.ne.s32.totalorder %s168, %s171
    %p177 = scmp.eq.s32.totalorder %s14, 0
    %p178 = por %p176, %p177
    %p179 = scmp.ne.s32.totalorder %s168, %s171
    %p180 = scmp.eq.s32.totalorder %s19, 15
    %p181 = por %p179, %p180
    %p182 = scmp.ne.s32.totalorder %s171, %s172
    %p183 = scmp.eq.s32.totalorder %s19, 0
    %p184 = por %p182, %p183
    %p185 = scmp.ne.s32.totalorder %s171, %s172
    %p186 = scmp.eq.s32.totalorder %s20, 15
    %p187 = por %p185, %p186
    %p189 = scmp.ne.s32.totalorder %s172, %s188
    %p190 = scmp.eq.s32.totalorder %s20, 0
    %p191 = por %p189, %p190
    %s192 = ssub.s32 %s22, %s29
    %p193 = scmp.eq.s32.totalorder %s192, 0
    %s195 = sadd.s32 %s194, 1
    %s196 = scalar_select %p193, %s194, %s195
    %p199 = pneg %p193
    %p200 = scmp.eq.s32.totalorder %s14, 15
    %p201 = por %p199, %p200
    %p202 = scmp.ne.s32.totalorder %s194, %s197
    %p203 = scmp.eq.s32.totalorder %s14, 0
    %p204 = por %p202, %p203
    %p205 = scmp.ne.s32.totalorder %s194, %s197
    %p206 = scmp.eq.s32.totalorder %s19, 15
    %p207 = por %p205, %p206
    %p208 = scmp.ne.s32.totalorder %s197, %s198
    %p209 = scmp.eq.s32.totalorder %s19, 0
    %p210 = por %p208, %p209
    %p211 = scmp.ne.s32.totalorder %s197, %s198
    %p212 = scmp.eq.s32.totalorder %s20, 15
    %p213 = por %p211, %p212
    %p215 = scmp.ne.s32.totalorder %s198, %s214
    %p216 = scmp.eq.s32.totalorder %s20, 0
    %p217 = por %p215, %p216
    %s218 = ssub.s32 %s22, %s29
    %p219 = scmp.eq.s32.totalorder %s218, 0
    %s221 = sadd.s32 %s220, 1
    %s222 = scalar_select %p219, %s220, %s221
    %p225 = pneg %p219
    %p226 = scmp.eq.s32.totalorder %s14, 15
    %p227 = por %p225, %p226
    %p228 = scmp.ne.s32.totalorder %s220, %s223
    %p229 = scmp.eq.s32.totalorder %s14, 0
    %p230 = por %p228, %p229
    %p231 = scmp.ne.s32.totalorder %s220, %s223
    %p232 = scmp.eq.s32.totalorder %s19, 15
    %p233 = por %p231, %p232
    %p234 = scmp.ne.s32.totalorder %s223, %s224
    %p235 = scmp.eq.s32.totalorder %s19, 0
    %p236 = por %p234, %p235
    %p237 = scmp.ne.s32.totalorder %s223, %s224
    %p238 = scmp.eq.s32.totalorder %s20, 15
    %p239 = por %p237, %p238
    %p241 = scmp.ne.s32.totalorder %s224, %s240
    %p242 = scmp.eq.s32.totalorder %s20, 0
    %p243 = por %p241, %p242
    %s244 = ssub.s32 %s21, %s33
    %p245 = scmp.eq.s32.totalorder %s244, 0
    %s247 = sadd.s32 %s246, 1
    %s248 = scalar_select %p245, %s246, %s247
    %p251 = pneg %p245
    %p252 = scmp.eq.s32.totalorder %s14, 15
    %p253 = por %p251, %p252
    %p254 = scmp.ne.s32.totalorder %s246, %s249
    %p255 = scmp.eq.s32.totalorder %s14, 0
    %p256 = por %p254, %p255
    %p257 = scmp.ne.s32.totalorder %s246, %s249
    %p258 = scmp.eq.s32.totalorder %s19, 15
    %p259 = por %p257, %p258
    %p260 = scmp.ne.s32.totalorder %s249, %s250
    %p261 = scmp.eq.s32.totalorder %s19, 0
    %p262 = por %p260, %p261
    %p263 = scmp.ne.s32.totalorder %s249, %s250
    %p264 = scmp.eq.s32.totalorder %s20, 15
    %p265 = por %p263, %p264
    %p267 = scmp.ne.s32.totalorder %s250, %s266
    %p268 = scmp.eq.s32.totalorder %s20, 0
    %p269 = por %p267, %p268
    %p270 = scmp.le.s32.totalorder 1, %s14
    %p271 = scmp.lt.s32.totalorder %s14, 17
    %p272 = pnand %p270, %p271
    %p273 = pneg %p272
    // Predicated region
    $region9: #{tpu_custom_call.1} parent=5 // pred_check
      _
    $region10: #{tpu_custom_call.1} parent=5 // pred_check_branch
      %275 = sbr.rel (%p272) target = $region12
    $region11: #{tpu_custom_call.1} parent=5 // pred_region
      %s276 = ssub.s32 %s14, 1
    $region12: #{tpu_custom_call.1} parent=5 // pred_fallthru
      _
    %p277 = scmp.lt.s32.totalorder %s14, 16
    // Predicated region
    $region13: #{tpu_custom_call.1} parent=5 // pred_check
      %p278 = pneg %p277
    $region14: #{tpu_custom_call.1} parent=5 // pred_check_branch
      %280 = sbr.rel (%p278) target = $region16
    $region15: #{tpu_custom_call.1} parent=5 // pred_region
      // Predicated region
      $region17: #{tpu_custom_call.1} parent=15 // pred_check
        %p281 = pneg %p46
      $region18: #{tpu_custom_call.1} parent=15 // pred_check_branch
        %283 = sbr.rel (%p281) target = $region20
      $region19: #{tpu_custom_call.1} parent=15 // pred_region
        %p284 = scmp.lt.s32.totalorder %s21, 3
        %s285 = scalar_select %p284, %s21, 3
        %s286 = smul.addr %s285, 16
        %s287 = smul.addr %s286, 8
        %s288 = scalar_lea.vmem %s0, %s287
      $region20: #{tpu_custom_call.1} parent=15 // pred_fallthru
        _
      // Predicated region
      $region21: #{tpu_custom_call.1} parent=15 // pred_check
        %p289 = pneg %p72
      $region22: #{tpu_custom_call.1} parent=15 // pred_check_branch
        %291 = sbr.rel (%p289) target = $region24
      $region23: #{tpu_custom_call.1} parent=15 // pred_region
        %p292 = scmp.lt.s32.totalorder %s21, 3
        %s293 = scalar_select %p292, %s21, 3
        %s294 = smul.addr %s293, 18
        %s295 = smul.addr %s294, 8
        %s296 = scalar_lea.vmem %s1, %s295
      $region24: #{tpu_custom_call.1} parent=15 // pred_fallthru
        _
      // Predicated region
      $region25: #{tpu_custom_call.1} parent=15 // pred_check
        %p297 = pneg %p100
      $region26: #{tpu_custom_call.1} parent=15 // pred_check_branch
        %299 = sbr.rel (%p297) target = $region28
      $region27: #{tpu_custom_call.1} parent=15 // pred_region
        %p300 = scmp.lt.s32.totalorder %s22, 3
        %s301 = scalar_select %p300, %s22, 3
        %p302 = scmp.lt.s32.totalorder %s21, 3
        %s303 = scalar_select %p302, %s21, 3
        %s304 = smul.addr %s301, 4
        %s305 = sadd.s32 %s303, %s304
        %s306 = scalar_lea.vmem %s2, %s305
      $region28: #{tpu_custom_call.1} parent=15 // pred_fallthru
        _
      // Predicated region
      $region29: #{tpu_custom_call.1} parent=15 // pred_check
        %p307 = pneg %p126
      $region30: #{tpu_custom_call.1} parent=15 // pred_check_branch
        %309 = sbr.rel (%p307) target = $region32
      $region31: #{tpu_custom_call.1} parent=15 // pred_region
        %p310 = scmp.lt.s32.totalorder %s22, 3
        %s311 = scalar_select %p310, %s22, 3
        %s312 = smul.addr %s311, 7
        %s313 = smul.addr %s312, 8
        %s314 = scalar_lea.vmem %s3, %s313
      $region32: #{tpu_custom_call.1} parent=15 // pred_fallthru
        _
      // Predicated region
      $region33: #{tpu_custom_call.1} parent=15 // pred_check
        %p315 = pneg %p152
      $region34: #{tpu_custom_call.1} parent=15 // pred_check_branch
        %317 = sbr.rel (%p315) target = $region36
      $region35: #{tpu_custom_call.1} parent=15 // pred_region
        %p318 = scmp.lt.s32.totalorder %s22, 3
        %s319 = scalar_select %p318, %s22, 3
        %s320 = smul.addr %s319, 4
        %s321 = smul.addr %s320, 8
        %s322 = scalar_lea.vmem %s4, %s321
      $region36: #{tpu_custom_call.1} parent=15 // pred_fallthru
        _
      // Predicated region
      $region37: #{tpu_custom_call.1} parent=15 // pred_check
        %p323 = pneg %p178
      $region38: #{tpu_custom_call.1} parent=15 // pred_check_branch
        %325 = sbr.rel (%p323) target = $region40
      $region39: #{tpu_custom_call.1} parent=15 // pred_region
        %p326 = scmp.lt.s32.totalorder %s22, 3
        %s327 = scalar_select %p326, %s22, 3
        %s328 = scalar_lea.vmem %s5, %s327
      $region40: #{tpu_custom_call.1} parent=15 // pred_fallthru
        _
      // Predicated region
      $region41: #{tpu_custom_call.1} parent=15 // pred_check
        %p329 = pneg %p204
      $region42: #{tpu_custom_call.1} parent=15 // pred_check_branch
        %331 = sbr.rel (%p329) target = $region44
      $region43: #{tpu_custom_call.1} parent=15 // pred_region
        %p332 = scmp.lt.s32.totalorder %s22, 3
        %s333 = scalar_select %p332, %s22, 3
        %s334 = smul.addr %s333, 8
        %s335 = scalar_lea.vmem %s6, %s334
      $region44: #{tpu_custom_call.1} parent=15 // pred_fallthru
        _
      // Predicated region
      $region45: #{tpu_custom_call.1} parent=15 // pred_check
        %p336 = pneg %p230
      $region46: #{tpu_custom_call.1} parent=15 // pred_check_branch
        %338 = sbr.rel (%p336) target = $region48
      $region47: #{tpu_custom_call.1} parent=15 // pred_region
        %p339 = scmp.lt.s32.totalorder %s22, 3
        %s340 = scalar_select %p339, %s22, 3
        %s341 = scalar_lea.vmem %s7, %s340
      $region48: #{tpu_custom_call.1} parent=15 // pred_fallthru
        _
    $region16: #{tpu_custom_call.1} parent=5 // pred_fallthru
      _
    %p342 = scmp.le.s32.totalorder 1, %s14
    %p343 = scmp.lt.s32.totalorder %s14, 17
    %p344 = pnand %p342, %p343
    %p345 = pneg %p344
    // Predicated region
    $region49: #{tpu_custom_call.1} parent=5 // pred_check
      _
    $region50: #{tpu_custom_call.1} parent=5 // pred_check_branch
      %347 = sbr.rel (%p344) target = $region52
    $region51: #{tpu_custom_call.1} parent=5 // pred_region
      %s348 = ssub.s32 %s14, 1
      %p349 = scmp.lt.s32.totalorder %s23, 3
      %s350 = scalar_select %p349, %s23, 3
      %s351 = smul.addr %s350, 16
      %s352 = smul.addr %s351, 8
      %s353 = scalar_lea.vmem %s0, %s352
      %p354 = pneg %p52
      %p355 = pneg %p49
      %p356 = scmp.lt.s32.totalorder %s23, 3
      %s357 = scalar_select %p356, %s23, 3
      %s358 = smul.addr %s357, 18
      %s359 = smul.addr %s358, 8
      %s360 = scalar_lea.vmem %s1, %s359
      %p361 = pneg %p78
      %p362 = pneg %p75
      %p363 = scmp.lt.s32.totalorder %s24, 3
      %s364 = scalar_select %p363, %s24, 3
      %p365 = scmp.lt.s32.totalorder %s23, 3
      %s366 = scalar_select %p365, %s23, 3
      %s367 = smul.addr %s364, 4
      %s368 = sadd.s32 %s366, %s367
      %s369 = scalar_lea.vmem %s2, %s368
      %p370 = pneg %p106
      %p371 = pneg %p103
      %p372 = scmp.lt.s32.totalorder %s24, 3
      %s373 = scalar_select %p372, %s24, 3
      %s374 = smul.addr %s373, 7
      %s375 = smul.addr %s374, 8
      %s376 = scalar_lea.vmem %s3, %s375
      %p377 = pneg %p132
      %p378 = pneg %p129
      %p379 = scmp.lt.s32.totalorder %s24, 3
      %s380 = scalar_select %p379, %s24, 3
      %s381 = smul.addr %s380, 4
      %s382 = smul.addr %s381, 8
      %s383 = scalar_lea.vmem %s4, %s382
      %p384 = pneg %p158
      %p385 = pneg %p155
      %p386 = scmp.lt.s32.totalorder %s24, 3
      %s387 = scalar_select %p386, %s24, 3
      %s388 = scalar_lea.vmem %s5, %s387
      %p389 = pneg %p184
      %p390 = pneg %p181
      %p391 = scmp.lt.s32.totalorder %s24, 3
      %s392 = scalar_select %p391, %s24, 3
      %s393 = smul.addr %s392, 8
      %s394 = scalar_lea.vmem %s6, %s393
      %p395 = pneg %p210
      %p396 = pneg %p207
      %p397 = scmp.lt.s32.totalorder %s24, 3
      %s398 = scalar_select %p397, %s24, 3
      %s399 = scalar_lea.vmem %s7, %s398
      %p400 = pneg %p236
      %p401 = pneg %p233
      %p402 = pneg %p262
      %p403 = pneg %p259
      %p404 = scmp.lt.s32.totalorder %s23, 3
      %s405 = scalar_select %p404, %s23, 3
      %s406 = smul.addr %s405, 16
      %s407 = smul.addr %s406, 8
      %s408 = scalar_lea.vmem %s8, %s407
      %p409 = scmp.lt.s32.totalorder %s23, 3
      %s410 = scalar_select %p409, %s23, 3
      %s411 = smul.addr %s410, 16
      %s412 = smul.addr %s411, 8
      %s413 = scalar_lea.vmem %s0, %s412
      %p414 = scmp.lt.s32.totalorder %s23, 3
      %s415 = scalar_select %p414, %s23, 3
      %s416 = smul.addr %s415, 18
      %s417 = smul.addr %s416, 8
      %s418 = scalar_lea.vmem %s1, %s417
      %p419 = scmp.lt.s32.totalorder %s24, 3
      %s420 = scalar_select %p419, %s24, 3
      %p421 = scmp.lt.s32.totalorder %s23, 3
      %s422 = scalar_select %p421, %s23, 3
      %s423 = smul.addr %s420, 4
      %s424 = sadd.s32 %s422, %s423
      %s425 = scalar_lea.vmem %s2, %s424
      %p426 = scmp.lt.s32.totalorder %s24, 3
      %s427 = scalar_select %p426, %s24, 3
      %s428 = smul.addr %s427, 7
      %s429 = smul.addr %s428, 8
      %s430 = scalar_lea.vmem %s3, %s429
      %p431 = scmp.lt.s32.totalorder %s24, 3
      %s432 = scalar_select %p431, %s24, 3
      %s433 = smul.addr %s432, 4
      %s434 = smul.addr %s433, 8
      %s435 = scalar_lea.vmem %s4, %s434
      %p436 = scmp.lt.s32.totalorder %s24, 3
      %s437 = scalar_select %p436, %s24, 3
      %s438 = scalar_lea.vmem %s5, %s437
      %p439 = scmp.lt.s32.totalorder %s24, 3
      %s440 = scalar_select %p439, %s24, 3
      %s441 = smul.addr %s440, 8
      %s442 = scalar_lea.vmem %s6, %s441
      %p443 = scmp.lt.s32.totalorder %s24, 3
      %s444 = scalar_select %p443, %s24, 3
      %s445 = scalar_lea.vmem %s7, %s444
      %p446 = scmp.lt.s32.totalorder %s23, 3
      %s447 = scalar_select %p446, %s23, 3
      %s448 = smul.addr %s447, 16
      %s449 = smul.addr %s448, 8
      %s450 = scalar_lea.vmem %s8, %s449
      %p451 = scmp.eq.s32.totalorder %s24, 0
      // Predicated region
      $region53: #{tpu_custom_call.1} parent=51 // pred_check
        %p452 = pneg %p451
      $region54: #{tpu_custom_call.1} parent=51 // pred_check_branch
        %454 = sbr.rel (%p452) target = $region56
      $region55: #{tpu_custom_call.1} parent=51 // pred_region
        %v455 = vld [vmem:[%s413] sm:$0xff]
        %v456 = vld [vmem:[%s413 + $0x8] sm:$0xff]
        %v457 = vld [vmem:[%s413 + $0x10] sm:$0xff]
        %v458 = vld [vmem:[%s413 + $0x18] sm:$0xff]
        %v459 = vld [vmem:[%s413 + $0x20] sm:$0xff]
        %v460 = vld [vmem:[%s413 + $0x28] sm:$0xff]
        %v461 = vld [vmem:[%s413 + $0x30] sm:$0xff]
        %v462 = vld [vmem:[%s413 + $0x38] sm:$0xff]
        %v463 = vld [vmem:[%s413 + $0x40] sm:$0xff]
        %v464 = vld [vmem:[%s413 + $0x48] sm:$0xff]
        %v465 = vld [vmem:[%s413 + $0x50] sm:$0xff]
        %v466 = vld [vmem:[%s413 + $0x58] sm:$0xff]
        %v467 = vld [vmem:[%s413 + $0x60] sm:$0xff]
        %v468 = vld [vmem:[%s413 + $0x68] sm:$0xff]
        %v469 = vld [vmem:[%s413 + $0x70] sm:$0xff]
        %v470 = vld [vmem:[%s413 + $0x78] sm:$0xff]
        %vm471 = vcmask 64512
        %472 = vst.msk [vmem:[#allocation2] sm:$0xff] %vm471, %v455
        %473 = vst.msk [vmem:[#allocation2 + $0x8] sm:$0xff] %vm471, %v456
        %474 = vst.msk [vmem:[#allocation2 + $0x10] sm:$0xff] %vm471, %v457
        %475 = vst.msk [vmem:[#allocation2 + $0x18] sm:$0xff] %vm471, %v458
        %476 = vst.msk [vmem:[#allocation2 + $0x20] sm:$0xff] %vm471, %v459
        %477 = vst.msk [vmem:[#allocation2 + $0x28] sm:$0xff] %vm471, %v460
        %478 = vst.msk [vmem:[#allocation2 + $0x30] sm:$0xff] %vm471, %v461
        %479 = vst.msk [vmem:[#allocation2 + $0x38] sm:$0xff] %vm471, %v462
        %480 = vst.msk [vmem:[#allocation2 + $0x40] sm:$0xff] %vm471, %v463
        %481 = vst.msk [vmem:[#allocation2 + $0x48] sm:$0xff] %vm471, %v464
        %482 = vst.msk [vmem:[#allocation2 + $0x50] sm:$0xff] %vm471, %v465
        %483 = vst.msk [vmem:[#allocation2 + $0x58] sm:$0xff] %vm471, %v466
        %484 = vst.msk [vmem:[#allocation2 + $0x60] sm:$0xff] %vm471, %v467
        %485 = vst.msk [vmem:[#allocation2 + $0x68] sm:$0xff] %vm471, %v468
        %486 = vst.msk [vmem:[#allocation2 + $0x70] sm:$0xff] %vm471, %v469
        %487 = vst.msk [vmem:[#allocation2 + $0x78] sm:$0xff] %vm471, %v470
        %488 = vst.msk [vmem:[%s450] sm:$0xff] %vm471, 0.0
        %489 = vst.msk [vmem:[%s450 + $0x8] sm:$0xff] %vm471, 0.0
        %490 = vst.msk [vmem:[%s450 + $0x10] sm:$0xff] %vm471, 0.0
        %491 = vst.msk [vmem:[%s450 + $0x18] sm:$0xff] %vm471, 0.0
        %492 = vst.msk [vmem:[%s450 + $0x20] sm:$0xff] %vm471, 0.0
        %493 = vst.msk [vmem:[%s450 + $0x28] sm:$0xff] %vm471, 0.0
        %494 = vst.msk [vmem:[%s450 + $0x30] sm:$0xff] %vm471, 0.0
        %495 = vst.msk [vmem:[%s450 + $0x38] sm:$0xff] %vm471, 0.0
        %496 = vst.msk [vmem:[%s450 + $0x40] sm:$0xff] %vm471, 0.0
        %497 = vst.msk [vmem:[%s450 + $0x48] sm:$0xff] %vm471, 0.0
        %498 = vst.msk [vmem:[%s450 + $0x50] sm:$0xff] %vm471, 0.0
        %499 = vst.msk [vmem:[%s450 + $0x58] sm:$0xff] %vm471, 0.0
        %500 = vst.msk [vmem:[%s450 + $0x60] sm:$0xff] %vm471, 0.0
        %501 = vst.msk [vmem:[%s450 + $0x68] sm:$0xff] %vm471, 0.0
        %502 = vst.msk [vmem:[%s450 + $0x70] sm:$0xff] %vm471, 0.0
        %503 = vst.msk [vmem:[%s450 + $0x78] sm:$0xff] %vm471, 0.0
        %504 = vst.msk [vmem:[#allocation3] sm:$0xff] %vm471, 0.0
        %505 = vst.msk [vmem:[#allocation3 + $0x8] sm:$0xff] %vm471, 0.0
        %506 = vst.msk [vmem:[#allocation3 + $0x10] sm:$0xff] %vm471, 0.0
        %507 = vst.msk [vmem:[#allocation3 + $0x18] sm:$0xff] %vm471, 0.0
        %508 = vst.msk [vmem:[#allocation3 + $0x20] sm:$0xff] %vm471, 0.0
        %509 = vst.msk [vmem:[#allocation3 + $0x28] sm:$0xff] %vm471, 0.0
        %510 = vst.msk [vmem:[#allocation3 + $0x30] sm:$0xff] %vm471, 0.0
        %511 = vst.msk [vmem:[#allocation3 + $0x38] sm:$0xff] %vm471, 0.0
        %512 = vst.msk [vmem:[#allocation3 + $0x40] sm:$0xff] %vm471, 0.0
        %513 = vst.msk [vmem:[#allocation3 + $0x48] sm:$0xff] %vm471, 0.0
        %514 = vst.msk [vmem:[#allocation3 + $0x50] sm:$0xff] %vm471, 0.0
        %515 = vst.msk [vmem:[#allocation3 + $0x58] sm:$0xff] %vm471, 0.0
        %516 = vst.msk [vmem:[#allocation3 + $0x60] sm:$0xff] %vm471, 0.0
        %517 = vst.msk [vmem:[#allocation3 + $0x68] sm:$0xff] %vm471, 0.0
        %518 = vst.msk [vmem:[#allocation3 + $0x70] sm:$0xff] %vm471, 0.0
        %519 = vst.msk [vmem:[#allocation3 + $0x78] sm:$0xff] %vm471, 0.0
        %520 = vst.msk [vmem:[#allocation3 + $0x80] sm:$0xff] %vm471, 0.0
        %521 = vst.msk [vmem:[#allocation3 + $0x88] sm:$0xff] %vm471, 0.0
      $region56: #{tpu_custom_call.1} parent=51 // pred_fallthru
        _
      %v522 = vld [vmem:[#allocation2] sm:$0xff]
      %v523 = vld [vmem:[#allocation2 + $0x8] sm:$0xff]
      %v524 = vld [vmem:[#allocation2 + $0x10] sm:$0xff]
      %v525 = vld [vmem:[#allocation2 + $0x18] sm:$0xff]
      %v526 = vld [vmem:[#allocation2 + $0x20] sm:$0xff]
      %v527 = vld [vmem:[#allocation2 + $0x28] sm:$0xff]
      %v528 = vld [vmem:[#allocation2 + $0x30] sm:$0xff]
      %v529 = vld [vmem:[#allocation2 + $0x38] sm:$0xff]
      %v530 = vld [vmem:[#allocation2 + $0x40] sm:$0xff]
      %v531 = vld [vmem:[#allocation2 + $0x48] sm:$0xff]
      %v532 = vld [vmem:[#allocation2 + $0x50] sm:$0xff]
      %v533 = vld [vmem:[#allocation2 + $0x58] sm:$0xff]
      %v534 = vld [vmem:[#allocation2 + $0x60] sm:$0xff]
      %v535 = vld [vmem:[#allocation2 + $0x68] sm:$0xff]
      %v536 = vld [vmem:[#allocation2 + $0x70] sm:$0xff]
      %v537 = vld [vmem:[#allocation2 + $0x78] sm:$0xff]
      %v538 = vld [vmem:[%s425] sm:$0x1]
      %v540 = vlaneseq
      %v541 = vshrl.u32 %v540, 7
      %v542 = vsub.s32 0, %v541
      %v543 = vrot.slane %v538, %v542
      %v545 = vadd.f32 %v522, %v543
      %v546 = vadd.f32 %v523, %v543
      %v547 = vadd.f32 %v524, %v543
      %v548 = vadd.f32 %v525, %v543
      %v549 = vadd.f32 %v526, %v543
      %v550 = vadd.f32 %v527, %v543
      %v551 = vadd.f32 %v528, %v543
      %v552 = vadd.f32 %v529, %v543
      %v553 = vadd.f32 %v530, %v543
      %v554 = vadd.f32 %v531, %v543
      %v555 = vadd.f32 %v532, %v543
      %v556 = vadd.f32 %v533, %v543
      %v557 = vadd.f32 %v534, %v543
      %v558 = vadd.f32 %v535, %v543
      %v559 = vadd.f32 %v536, %v543
      %v560 = vadd.f32 %v537, %v543
      %vm561 = vcmask 64512
      %562 = vst.msk [vmem:[#allocation3 + $0x8] sm:$0xff] %vm561, %v545
      %563 = vst.msk [vmem:[#allocation3 + $0x10] sm:$0xff] %vm561, %v546
      %564 = vst.msk [vmem:[#allocation3 + $0x18] sm:$0xff] %vm561, %v547
      %565 = vst.msk [vmem:[#allocation3 + $0x20] sm:$0xff] %vm561, %v548
      %566 = vst.msk [vmem:[#allocation3 + $0x28] sm:$0xff] %vm561, %v549
      %567 = vst.msk [vmem:[#allocation3 + $0x30] sm:$0xff] %vm561, %v550
      %568 = vst.msk [vmem:[#allocation3 + $0x38] sm:$0xff] %vm561, %v551
      %569 = vst.msk [vmem:[#allocation3 + $0x40] sm:$0xff] %vm561, %v552
      %570 = vst.msk [vmem:[#allocation3 + $0x48] sm:$0xff] %vm561, %v553
      %571 = vst.msk [vmem:[#allocation3 + $0x50] sm:$0xff] %vm561, %v554
      %572 = vst.msk [vmem:[#allocation3 + $0x58] sm:$0xff] %vm561, %v555
      %573 = vst.msk [vmem:[#allocation3 + $0x60] sm:$0xff] %vm561, %v556
      %574 = vst.msk [vmem:[#allocation3 + $0x68] sm:$0xff] %vm561, %v557
      %575 = vst.msk [vmem:[#allocation3 + $0x70] sm:$0xff] %vm561, %v558
      %576 = vst.msk [vmem:[#allocation3 + $0x78] sm:$0xff] %vm561, %v559
      %577 = vst.msk [vmem:[#allocation3 + $0x80] sm:$0xff] %vm561, %v560
      %p578 = scmp.lt.s32.totalorder %s24, 0
      %s579 = ssub.s32 0, %s24
      %s580 = scalar_select %p578, %s579, %s24
      %s581 = sand.u32 %s580, 1
      %s582 = ssub.s32 0, %s581
      %s583 = scalar_select %p578, %s582, %s581
      %p584 = scmp.ne.s32.totalorder %s583, 0
      %p585 = scmp.lt.s32.totalorder %s583, 0
      %p586 = pnand %p585, %p584
      %p587 = pneg %p586
      %s588 = sadd.s32 %s583, 2
      %s589 = scalar_select %p587, %s588, %s583
      %p590 = scmp.eq.s32.totalorder %s589, 0
      // Predicated region
      $region57: #{tpu_custom_call.1} parent=51 // pred_check
        %p591 = pneg %p590
      $region58: #{tpu_custom_call.1} parent=51 // pred_check_branch
        %593 = sbr.rel (%p591) target = $region60
      $region59: #{tpu_custom_call.1} parent=51 // pred_region
        %v594 = vld [vmem:[#allocation3 + $0x5] sm:$0xff]
        %v595 = vld [vmem:[#allocation3 + $0xd] sm:$0xff]
        %v596 = vld [vmem:[#allocation3 + $0x15] sm:$0xff]
        %v597 = vld [vmem:[#allocation3 + $0x1d] sm:$0xff]
        %v598 = vld [vmem:[#allocation3 + $0x25] sm:$0xff]
        %v599 = vld [vmem:[#allocation3 + $0x2d] sm:$0xff]
        %v600 = vld [vmem:[#allocation3 + $0x35] sm:$0xff]
        %v601 = vld [vmem:[#allocation3 + $0x3d] sm:$0xff]
        %v602 = vld [vmem:[#allocation3 + $0x45] sm:$0xff]
        %v603 = vld [vmem:[#allocation3 + $0x4d] sm:$0xff]
        %v604 = vld [vmem:[#allocation3 + $0x55] sm:$0xff]
        %v605 = vld [vmem:[#allocation3 + $0x5d] sm:$0xff]
        %v606 = vld [vmem:[#allocation3 + $0x65] sm:$0xff]
        %v607 = vld [vmem:[#allocation3 + $0x6d] sm:$0xff]
        %v608 = vld [vmem:[#allocation3 + $0x75] sm:$0xff]
        %v609 = vld [vmem:[#allocation3 + $0x7d] sm:$0xff]
        %v610 = vld [vmem:[#allocation3 + $0x6] sm:$0xff]
        %v611 = vld [vmem:[#allocation3 + $0xe] sm:$0xff]
        %v612 = vld [vmem:[#allocation3 + $0x16] sm:$0xff]
        %v613 = vld [vmem:[#allocation3 + $0x1e] sm:$0xff]
        %v614 = vld [vmem:[#allocation3 + $0x26] sm:$0xff]
        %v615 = vld [vmem:[#allocation3 + $0x2e] sm:$0xff]
        %v616 = vld [vmem:[#allocation3 + $0x36] sm:$0xff]
        %v617 = vld [vmem:[#allocation3 + $0x3e] sm:$0xff]
        %v618 = vld [vmem:[#allocation3 + $0x46] sm:$0xff]
        %v619 = vld [vmem:[#allocation3 + $0x4e] sm:$0xff]
        %v620 = vld [vmem:[#allocation3 + $0x56] sm:$0xff]
        %v621 = vld [vmem:[#allocation3 + $0x5e] sm:$0xff]
        %v622 = vld [vmem:[#allocation3 + $0x66] sm:$0xff]
        %v623 = vld [vmem:[#allocation3 + $0x6e] sm:$0xff]
        %v624 = vld [vmem:[#allocation3 + $0x76] sm:$0xff]
        %v625 = vld [vmem:[#allocation3 + $0x7e] sm:$0xff]
        %v626 = vld [vmem:[#allocation3 + $0x7] sm:$0xff]
        %v627 = vld [vmem:[#allocation3 + $0xf] sm:$0xff]
        %v628 = vld [vmem:[#allocation3 + $0x17] sm:$0xff]
        %v629 = vld [vmem:[#allocation3 + $0x1f] sm:$0xff]
        %v630 = vld [vmem:[#allocation3 + $0x27] sm:$0xff]
        %v631 = vld [vmem:[#allocation3 + $0x2f] sm:$0xff]
        %v632 = vld [vmem:[#allocation3 + $0x37] sm:$0xff]
        %v633 = vld [vmem:[#allocation3 + $0x3f] sm:$0xff]
        %v634 = vld [vmem:[#allocation3 + $0x47] sm:$0xff]
        %v635 = vld [vmem:[#allocation3 + $0x4f] sm:$0xff]
        %v636 = vld [vmem:[#allocation3 + $0x57] sm:$0xff]
        %v637 = vld [vmem:[#allocation3 + $0x5f] sm:$0xff]
        %v638 = vld [vmem:[#allocation3 + $0x67] sm:$0xff]
        %v639 = vld [vmem:[#allocation3 + $0x6f] sm:$0xff]
        %v640 = vld [vmem:[#allocation3 + $0x77] sm:$0xff]
        %v641 = vld [vmem:[#allocation3 + $0x7f] sm:$0xff]
        %v642 = vld [vmem:[#allocation3 + $0x8] sm:$0xff]
        %v643 = vld [vmem:[#allocation3 + $0x10] sm:$0xff]
        %v644 = vld [vmem:[#allocation3 + $0x18] sm:$0xff]
        %v645 = vld [vmem:[#allocation3 + $0x20] sm:$0xff]
        %v646 = vld [vmem:[#allocation3 + $0x28] sm:$0xff]
        %v647 = vld [vmem:[#allocation3 + $0x30] sm:$0xff]
        %v648 = vld [vmem:[#allocation3 + $0x38] sm:$0xff]
        %v649 = vld [vmem:[#allocation3 + $0x40] sm:$0xff]
        %v650 = vld [vmem:[#allocation3 + $0x48] sm:$0xff]
        %v651 = vld [vmem:[#allocation3 + $0x50] sm:$0xff]
        %v652 = vld [vmem:[#allocation3 + $0x58] sm:$0xff]
        %v653 = vld [vmem:[#allocation3 + $0x60] sm:$0xff]
        %v654 = vld [vmem:[#allocation3 + $0x68] sm:$0xff]
        %v655 = vld [vmem:[#allocation3 + $0x70] sm:$0xff]
        %v656 = vld [vmem:[#allocation3 + $0x78] sm:$0xff]
        %v657 = vld [vmem:[#allocation3 + $0x80] sm:$0xff]
        %v658 = vld [vmem:[#allocation3 + $0x9] sm:$0xff]
        %v659 = vld [vmem:[#allocation3 + $0x11] sm:$0xff]
        %v660 = vld [vmem:[#allocation3 + $0x19] sm:$0xff]
        %v661 = vld [vmem:[#allocation3 + $0x21] sm:$0xff]
        %v662 = vld [vmem:[#allocation3 + $0x29] sm:$0xff]
        %v663 = vld [vmem:[#allocation3 + $0x31] sm:$0xff]
        %v664 = vld [vmem:[#allocation3 + $0x39] sm:$0xff]
        %v665 = vld [vmem:[#allocation3 + $0x41] sm:$0xff]
        %v666 = vld [vmem:[#allocation3 + $0x49] sm:$0xff]
        %v667 = vld [vmem:[#allocation3 + $0x51] sm:$0xff]
        %v668 = vld [vmem:[#allocation3 + $0x59] sm:$0xff]
        %v669 = vld [vmem:[#allocation3 + $0x61] sm:$0xff]
        %v670 = vld [vmem:[#allocation3 + $0x69] sm:$0xff]
        %v671 = vld [vmem:[#allocation3 + $0x71] sm:$0xff]
        %v672 = vld [vmem:[#allocation3 + $0x79] sm:$0xff]
        %v673 = vld [vmem:[#allocation3 + $0x81] sm:$0xff]
        %v674 = vld [vmem:[#allocation3 + $0xa] sm:$0xff]
        %v675 = vld [vmem:[#allocation3 + $0x12] sm:$0xff]
        %v676 = vld [vmem:[#allocation3 + $0x1a] sm:$0xff]
        %v677 = vld [vmem:[#allocation3 + $0x22] sm:$0xff]
        %v678 = vld [vmem:[#allocation3 + $0x2a] sm:$0xff]
        %v679 = vld [vmem:[#allocation3 + $0x32] sm:$0xff]
        %v680 = vld [vmem:[#allocation3 + $0x3a] sm:$0xff]
        %v681 = vld [vmem:[#allocation3 + $0x42] sm:$0xff]
        %v682 = vld [vmem:[#allocation3 + $0x4a] sm:$0xff]
        %v683 = vld [vmem:[#allocation3 + $0x52] sm:$0xff]
        %v684 = vld [vmem:[#allocation3 + $0x5a] sm:$0xff]
        %v685 = vld [vmem:[#allocation3 + $0x62] sm:$0xff]
        %v686 = vld [vmem:[#allocation3 + $0x6a] sm:$0xff]
        %v687 = vld [vmem:[#allocation3 + $0x72] sm:$0xff]
        %v688 = vld [vmem:[#allocation3 + $0x7a] sm:$0xff]
        %v689 = vld [vmem:[#allocation3 + $0x82] sm:$0xff]
        %v690 = vld [vmem:[#allocation3 + $0xb] sm:$0xff]
        %v691 = vld [vmem:[#allocation3 + $0x13] sm:$0xff]
        %v692 = vld [vmem:[#allocation3 + $0x1b] sm:$0xff]
        %v693 = vld [vmem:[#allocation3 + $0x23] sm:$0xff]
        %v694 = vld [vmem:[#allocation3 + $0x2b] sm:$0xff]
        %v695 = vld [vmem:[#allocation3 + $0x33] sm:$0xff]
        %v696 = vld [vmem:[#allocation3 + $0x3b] sm:$0xff]
        %v697 = vld [vmem:[#allocation3 + $0x43] sm:$0xff]
        %v698 = vld [vmem:[#allocation3 + $0x4b] sm:$0xff]
        %v699 = vld [vmem:[#allocation3 + $0x53] sm:$0xff]
        %v700 = vld [vmem:[#allocation3 + $0x5b] sm:$0xff]
        %v701 = vld [vmem:[#allocation3 + $0x63] sm:$0xff]
        %v702 = vld [vmem:[#allocation3 + $0x6b] sm:$0xff]
        %v703 = vld [vmem:[#allocation3 + $0x73] sm:$0xff]
        %v704 = vld [vmem:[#allocation3 + $0x7b] sm:$0xff]
        %v705 = vld [vmem:[#allocation3 + $0x83] sm:$0xff]
        %722 = vrot.lane.b32.xlu0 %v610, 8
        %v723 = vpop.permute.xlu0 %722
        %724 = vrot.lane.b32.xlu0 %v611, 8
        %v725 = vpop.permute.xlu0 %724
        %726 = vrot.lane.b32.xlu0 %v612, 8
        %v727 = vpop.permute.xlu0 %726
        %728 = vrot.lane.b32.xlu0 %v613, 8
        %v729 = vpop.permute.xlu0 %728
        %730 = vrot.lane.b32.xlu0 %v614, 8
        %v731 = vpop.permute.xlu0 %730
        %732 = vrot.lane.b32.xlu0 %v615, 8
        %v733 = vpop.permute.xlu0 %732
        %734 = vrot.lane.b32.xlu0 %v616, 8
        %v735 = vpop.permute.xlu0 %734
        %736 = vrot.lane.b32.xlu0 %v617, 8
        %v737 = vpop.permute.xlu0 %736
        %738 = vrot.lane.b32.xlu0 %v618, 8
        %v739 = vpop.permute.xlu0 %738
        %740 = vrot.lane.b32.xlu0 %v619, 8
        %v741 = vpop.permute.xlu0 %740
        %742 = vrot.lane.b32.xlu0 %v620, 8
        %v743 = vpop.permute.xlu0 %742
        %744 = vrot.lane.b32.xlu0 %v621, 8
        %v745 = vpop.permute.xlu0 %744
        %746 = vrot.lane.b32.xlu0 %v622, 8
        %v747 = vpop.permute.xlu0 %746
        %748 = vrot.lane.b32.xlu0 %v623, 8
        %v749 = vpop.permute.xlu0 %748
        %750 = vrot.lane.b32.xlu0 %v624, 8
        %v751 = vpop.permute.xlu0 %750
        %752 = vrot.lane.b32.xlu0 %v625, 8
        %v753 = vpop.permute.xlu0 %752
        %786 = vrot.lane.b32.xlu0 %v626, 16
        %v787 = vpop.permute.xlu0 %786
        %788 = vrot.lane.b32.xlu0 %v627, 16
        %v789 = vpop.permute.xlu0 %788
        %790 = vrot.lane.b32.xlu0 %v628, 16
        %v791 = vpop.permute.xlu0 %790
        %792 = vrot.lane.b32.xlu0 %v629, 16
        %v793 = vpop.permute.xlu0 %792
        %794 = vrot.lane.b32.xlu0 %v630, 16
        %v795 = vpop.permute.xlu0 %794
        %796 = vrot.lane.b32.xlu0 %v631, 16
        %v797 = vpop.permute.xlu0 %796
        %798 = vrot.lane.b32.xlu0 %v632, 16
        %v799 = vpop.permute.xlu0 %798
        %800 = vrot.lane.b32.xlu0 %v633, 16
        %v801 = vpop.permute.xlu0 %800
        %802 = vrot.lane.b32.xlu0 %v634, 16
        %v803 = vpop.permute.xlu0 %802
        %804 = vrot.lane.b32.xlu0 %v635, 16
        %v805 = vpop.permute.xlu0 %804
        %806 = vrot.lane.b32.xlu0 %v636, 16
        %v807 = vpop.permute.xlu0 %806
        %808 = vrot.lane.b32.xlu0 %v637, 16
        %v809 = vpop.permute.xlu0 %808
        %810 = vrot.lane.b32.xlu0 %v638, 16
        %v811 = vpop.permute.xlu0 %810
        %812 = vrot.lane.b32.xlu0 %v639, 16
        %v813 = vpop.permute.xlu0 %812
        %814 = vrot.lane.b32.xlu0 %v640, 16
        %v815 = vpop.permute.xlu0 %814
        %816 = vrot.lane.b32.xlu0 %v641, 16
        %v817 = vpop.permute.xlu0 %816
        %850 = vrot.lane.b32.xlu0 %v642, 24
        %v851 = vpop.permute.xlu0 %850
        %852 = vrot.lane.b32.xlu0 %v643, 24
        %v853 = vpop.permute.xlu0 %852
        %854 = vrot.lane.b32.xlu0 %v644, 24
        %v855 = vpop.permute.xlu0 %854
        %856 = vrot.lane.b32.xlu0 %v645, 24
        %v857 = vpop.permute.xlu0 %856
        %858 = vrot.lane.b32.xlu0 %v646, 24
        %v859 = vpop.permute.xlu0 %858
        %860 = vrot.lane.b32.xlu0 %v647, 24
        %v861 = vpop.permute.xlu0 %860
        %862 = vrot.lane.b32.xlu0 %v648, 24
        %v863 = vpop.permute.xlu0 %862
        %864 = vrot.lane.b32.xlu0 %v649, 24
        %v865 = vpop.permute.xlu0 %864
        %866 = vrot.lane.b32.xlu0 %v650, 24
        %v867 = vpop.permute.xlu0 %866
        %868 = vrot.lane.b32.xlu0 %v651, 24
        %v869 = vpop.permute.xlu0 %868
        %870 = vrot.lane.b32.xlu0 %v652, 24
        %v871 = vpop.permute.xlu0 %870
        %872 = vrot.lane.b32.xlu0 %v653, 24
        %v873 = vpop.permute.xlu0 %872
        %874 = vrot.lane.b32.xlu0 %v654, 24
        %v875 = vpop.permute.xlu0 %874
        %876 = vrot.lane.b32.xlu0 %v655, 24
        %v877 = vpop.permute.xlu0 %876
        %878 = vrot.lane.b32.xlu0 %v656, 24
        %v879 = vpop.permute.xlu0 %878
        %880 = vrot.lane.b32.xlu0 %v657, 24
        %v881 = vpop.permute.xlu0 %880
        %914 = vrot.lane.b32.xlu0 %v658, 32
        %v915 = vpop.permute.xlu0 %914
        %916 = vrot.lane.b32.xlu0 %v659, 32
        %v917 = vpop.permute.xlu0 %916
        %918 = vrot.lane.b32.xlu0 %v660, 32
        %v919 = vpop.permute.xlu0 %918
        %920 = vrot.lane.b32.xlu0 %v661, 32
        %v921 = vpop.permute.xlu0 %920
        %922 = vrot.lane.b32.xlu0 %v662, 32
        %v923 = vpop.permute.xlu0 %922
        %924 = vrot.lane.b32.xlu0 %v663, 32
        %v925 = vpop.permute.xlu0 %924
        %926 = vrot.lane.b32.xlu0 %v664, 32
        %v927 = vpop.permute.xlu0 %926
        %928 = vrot.lane.b32.xlu0 %v665, 32
        %v929 = vpop.permute.xlu0 %928
        %930 = vrot.lane.b32.xlu0 %v666, 32
        %v931 = vpop.permute.xlu0 %930
        %932 = vrot.lane.b32.xlu0 %v667, 32
        %v933 = vpop.permute.xlu0 %932
        %934 = vrot.lane.b32.xlu0 %v668, 32
        %v935 = vpop.permute.xlu0 %934
        %936 = vrot.lane.b32.xlu0 %v669, 32
        %v937 = vpop.permute.xlu0 %936
        %938 = vrot.lane.b32.xlu0 %v670, 32
        %v939 = vpop.permute.xlu0 %938
        %940 = vrot.lane.b32.xlu0 %v671, 32
        %v941 = vpop.permute.xlu0 %940
        %942 = vrot.lane.b32.xlu0 %v672, 32
        %v943 = vpop.permute.xlu0 %942
        %944 = vrot.lane.b32.xlu0 %v673, 32
        %v945 = vpop.permute.xlu0 %944
        %978 = vrot.lane.b32.xlu0 %v674, 40
        %v979 = vpop.permute.xlu0 %978
        %980 = vrot.lane.b32.xlu0 %v675, 40
        %v981 = vpop.permute.xlu0 %980
        %982 = vrot.lane.b32.xlu0 %v676, 40
        %v983 = vpop.permute.xlu0 %982
        %984 = vrot.lane.b32.xlu0 %v677, 40
        %v985 = vpop.permute.xlu0 %984
        %986 = vrot.lane.b32.xlu0 %v678, 40
        %v987 = vpop.permute.xlu0 %986
        %988 = vrot.lane.b32.xlu0 %v679, 40
        %v989 = vpop.permute.xlu0 %988
        %990 = vrot.lane.b32.xlu0 %v680, 40
        %v991 = vpop.permute.xlu0 %990
        %992 = vrot.lane.b32.xlu0 %v681, 40
        %v993 = vpop.permute.xlu0 %992
        %994 = vrot.lane.b32.xlu0 %v682, 40
        %v995 = vpop.permute.xlu0 %994
        %996 = vrot.lane.b32.xlu0 %v683, 40
        %v997 = vpop.permute.xlu0 %996
        %998 = vrot.lane.b32.xlu0 %v684, 40
        %v999 = vpop.permute.xlu0 %998
        %1000 = vrot.lane.b32.xlu0 %v685, 40
        %v1001 = vpop.permute.xlu0 %1000
        %1002 = vrot.lane.b32.xlu0 %v686, 40
        %v1003 = vpop.permute.xlu0 %1002
        %1004 = vrot.lane.b32.xlu0 %v687, 40
        %v1005 = vpop.permute.xlu0 %1004
        %1006 = vrot.lane.b32.xlu0 %v688, 40
        %v1007 = vpop.permute.xlu0 %1006
        %1008 = vrot.lane.b32.xlu0 %v689, 40
        %v1009 = vpop.permute.xlu0 %1008
        %1042 = vrot.lane.b32.xlu0 %v690, 48
        %v1043 = vpop.permute.xlu0 %1042
        %1044 = vrot.lane.b32.xlu0 %v691, 48
        %v1045 = vpop.permute.xlu0 %1044
        %1046 = vrot.lane.b32.xlu0 %v692, 48
        %v1047 = vpop.permute.xlu0 %1046
        %1048 = vrot.lane.b32.xlu0 %v693, 48
        %v1049 = vpop.permute.xlu0 %1048
        %1050 = vrot.lane.b32.xlu0 %v694, 48
        %v1051 = vpop.permute.xlu0 %1050
        %1052 = vrot.lane.b32.xlu0 %v695, 48
        %v1053 = vpop.permute.xlu0 %1052
        %1054 = vrot.lane.b32.xlu0 %v696, 48
        %v1055 = vpop.permute.xlu0 %1054
        %1056 = vrot.lane.b32.xlu0 %v697, 48
        %v1057 = vpop.permute.xlu0 %1056
        %1058 = vrot.lane.b32.xlu0 %v698, 48
        %v1059 = vpop.permute.xlu0 %1058
        %1060 = vrot.lane.b32.xlu0 %v699, 48
        %v1061 = vpop.permute.xlu0 %1060
        %1062 = vrot.lane.b32.xlu0 %v700, 48
        %v1063 = vpop.permute.xlu0 %1062
        %1064 = vrot.lane.b32.xlu0 %v701, 48
        %v1065 = vpop.permute.xlu0 %1064
        %1066 = vrot.lane.b32.xlu0 %v702, 48
        %v1067 = vpop.permute.xlu0 %1066
        %1068 = vrot.lane.b32.xlu0 %v703, 48
        %v1069 = vpop.permute.xlu0 %1068
        %1070 = vrot.lane.b32.xlu0 %v704, 48
        %v1071 = vpop.permute.xlu0 %1070
        %1072 = vrot.lane.b32.xlu0 %v705, 48
        %v1073 = vpop.permute.xlu0 %1072
        %v1090 = vsel %vm561, %v594, %v723
        %v1091 = vsel %vm561, %v595, %v725
        %v1092 = vsel %vm561, %v596, %v727
        %v1093 = vsel %vm561, %v597, %v729
        %v1094 = vsel %vm561, %v598, %v731
        %v1095 = vsel %vm561, %v599, %v733
        %v1096 = vsel %vm561, %v600, %v735
        %v1097 = vsel %vm561, %v601, %v737
        %v1098 = vsel %vm561, %v602, %v739
        %v1099 = vsel %vm561, %v603, %v741
        %v1100 = vsel %vm561, %v604, %v743
        %v1101 = vsel %vm561, %v605, %v745
        %v1102 = vsel %vm561, %v606, %v747
        %v1103 = vsel %vm561, %v607, %v749
        %v1104 = vsel %vm561, %v608, %v751
        %v1105 = vsel %vm561, %v609, %v753
        %vm1106 = vcmask 130048
        %v1107 = vsel %vm1106, %v1090, %v787
        %v1108 = vsel %vm1106, %v1091, %v789
        %v1109 = vsel %vm1106, %v1092, %v791
        %v1110 = vsel %vm1106, %v1093, %v793
        %v1111 = vsel %vm1106, %v1094, %v795
        %v1112 = vsel %vm1106, %v1095, %v797
        %v1113 = vsel %vm1106, %v1096, %v799
        %v1114 = vsel %vm1106, %v1097, %v801
        %v1115 = vsel %vm1106, %v1098, %v803
        %v1116 = vsel %vm1106, %v1099, %v805
        %v1117 = vsel %vm1106, %v1100, %v807
        %v1118 = vsel %vm1106, %v1101, %v809
        %v1119 = vsel %vm1106, %v1102, %v811
        %v1120 = vsel %vm1106, %v1103, %v813
        %v1121 = vsel %vm1106, %v1104, %v815
        %v1122 = vsel %vm1106, %v1105, %v817
        %vm1123 = vcmask 195584
        %v1124 = vsel %vm1123, %v1107, %v851
        %v1125 = vsel %vm1123, %v1108, %v853
        %v1126 = vsel %vm1123, %v1109, %v855
        %v1127 = vsel %vm1123, %v1110, %v857
        %v1128 = vsel %vm1123, %v1111, %v859
        %v1129 = vsel %vm1123, %v1112, %v861
        %v1130 = vsel %vm1123, %v1113, %v863
        %v1131 = vsel %vm1123, %v1114, %v865
        %v1132 = vsel %vm1123, %v1115, %v867
        %v1133 = vsel %vm1123, %v1116, %v869
        %v1134 = vsel %vm1123, %v1117, %v871
        %v1135 = vsel %vm1123, %v1118, %v873
        %v1136 = vsel %vm1123, %v1119, %v875
        %v1137 = vsel %vm1123, %v1120, %v877
        %v1138 = vsel %vm1123, %v1121, %v879
        %v1139 = vsel %vm1123, %v1122, %v881
        %vm1140 = vcmask 261120
        %v1141 = vsel %vm1140, %v1124, %v915
        %v1142 = vsel %vm1140, %v1125, %v917
        %v1143 = vsel %vm1140, %v1126, %v919
        %v1144 = vsel %vm1140, %v1127, %v921
        %v1145 = vsel %vm1140, %v1128, %v923
        %v1146 = vsel %vm1140, %v1129, %v925
        %v1147 = vsel %vm1140, %v1130, %v927
        %v1148 = vsel %vm1140, %v1131, %v929
        %v1149 = vsel %vm1140, %v1132, %v931
        %v1150 = vsel %vm1140, %v1133, %v933
        %v1151 = vsel %vm1140, %v1134, %v935
        %v1152 = vsel %vm1140, %v1135, %v937
        %v1153 = vsel %vm1140, %v1136, %v939
        %v1154 = vsel %vm1140, %v1137, %v941
        %v1155 = vsel %vm1140, %v1138, %v943
        %v1156 = vsel %vm1140, %v1139, %v945
        %vm1157 = vcmask 326656
        %v1158 = vsel %vm1157, %v1141, %v979
        %v1159 = vsel %vm1157, %v1142, %v981
        %v1160 = vsel %vm1157, %v1143, %v983
        %v1161 = vsel %vm1157, %v1144, %v985
        %v1162 = vsel %vm1157, %v1145, %v987
        %v1163 = vsel %vm1157, %v1146, %v989
        %v1164 = vsel %vm1157, %v1147, %v991
        %v1165 = vsel %vm1157, %v1148, %v993
        %v1166 = vsel %vm1157, %v1149, %v995
        %v1167 = vsel %vm1157, %v1150, %v997
        %v1168 = vsel %vm1157, %v1151, %v999
        %v1169 = vsel %vm1157, %v1152, %v1001
        %v1170 = vsel %vm1157, %v1153, %v1003
        %v1171 = vsel %vm1157, %v1154, %v1005
        %v1172 = vsel %vm1157, %v1155, %v1007
        %v1173 = vsel %vm1157, %v1156, %v1009
        %vm1174 = vcmask 392192
        %v1175 = vsel %vm1174, %v1158, %v1043
        %v1176 = vsel %vm1174, %v1159, %v1045
        %v1177 = vsel %vm1174, %v1160, %v1047
        %v1178 = vsel %vm1174, %v1161, %v1049
        %v1179 = vsel %vm1174, %v1162, %v1051
        %v1180 = vsel %vm1174, %v1163, %v1053
        %v1181 = vsel %vm1174, %v1164, %v1055
        %v1182 = vsel %vm1174, %v1165, %v1057
        %v1183 = vsel %vm1174, %v1166, %v1059
        %v1184 = vsel %vm1174, %v1167, %v1061
        %v1185 = vsel %vm1174, %v1168, %v1063
        %v1186 = vsel %vm1174, %v1169, %v1065
        %v1187 = vsel %vm1174, %v1170, %v1067
        %v1188 = vsel %vm1174, %v1171, %v1069
        %v1189 = vsel %vm1174, %v1172, %v1071
        %v1190 = vsel %vm1174, %v1173, %v1073
        %v1191 = vld [vmem:[%s418 + $0x5] sm:$0xff]
        %v1192 = vld [vmem:[%s418 + $0xd] sm:$0xff]
        %v1193 = vld [vmem:[%s418 + $0x15] sm:$0xff]
        %v1194 = vld [vmem:[%s418 + $0x1d] sm:$0xff]
        %v1195 = vld [vmem:[%s418 + $0x25] sm:$0xff]
        %v1196 = vld [vmem:[%s418 + $0x2d] sm:$0xff]
        %v1197 = vld [vmem:[%s418 + $0x35] sm:$0xff]
        %v1198 = vld [vmem:[%s418 + $0x3d] sm:$0xff]
        %v1199 = vld [vmem:[%s418 + $0x45] sm:$0xff]
        %v1200 = vld [vmem:[%s418 + $0x4d] sm:$0xff]
        %v1201 = vld [vmem:[%s418 + $0x55] sm:$0xff]
        %v1202 = vld [vmem:[%s418 + $0x5d] sm:$0xff]
        %v1203 = vld [vmem:[%s418 + $0x65] sm:$0xff]
        %v1204 = vld [vmem:[%s418 + $0x6d] sm:$0xff]
        %v1205 = vld [vmem:[%s418 + $0x75] sm:$0xff]
        %v1206 = vld [vmem:[%s418 + $0x7d] sm:$0xff]
        %v1207 = vld [vmem:[%s418 + $0x6] sm:$0xff]
        %v1208 = vld [vmem:[%s418 + $0xe] sm:$0xff]
        %v1209 = vld [vmem:[%s418 + $0x16] sm:$0xff]
        %v1210 = vld [vmem:[%s418 + $0x1e] sm:$0xff]
        %v1211 = vld [vmem:[%s418 + $0x26] sm:$0xff]
        %v1212 = vld [vmem:[%s418 + $0x2e] sm:$0xff]
        %v1213 = vld [vmem:[%s418 + $0x36] sm:$0xff]
        %v1214 = vld [vmem:[%s418 + $0x3e] sm:$0xff]
        %v1215 = vld [vmem:[%s418 + $0x46] sm:$0xff]
        %v1216 = vld [vmem:[%s418 + $0x4e] sm:$0xff]
        %v1217 = vld [vmem:[%s418 + $0x56] sm:$0xff]
        %v1218 = vld [vmem:[%s418 + $0x5e] sm:$0xff]
        %v1219 = vld [vmem:[%s418 + $0x66] sm:$0xff]
        %v1220 = vld [vmem:[%s418 + $0x6e] sm:$0xff]
        %v1221 = vld [vmem:[%s418 + $0x76] sm:$0xff]
        %v1222 = vld [vmem:[%s418 + $0x7e] sm:$0xff]
        %v1223 = vld [vmem:[%s418 + $0x7] sm:$0xff]
        %v1224 = vld [vmem:[%s418 + $0xf] sm:$0xff]
        %v1225 = vld [vmem:[%s418 + $0x17] sm:$0xff]
        %v1226 = vld [vmem:[%s418 + $0x1f] sm:$0xff]
        %v1227 = vld [vmem:[%s418 + $0x27] sm:$0xff]
        %v1228 = vld [vmem:[%s418 + $0x2f] sm:$0xff]
        %v1229 = vld [vmem:[%s418 + $0x37] sm:$0xff]
        %v1230 = vld [vmem:[%s418 + $0x3f] sm:$0xff]
        %v1231 = vld [vmem:[%s418 + $0x47] sm:$0xff]
        %v1232 = vld [vmem:[%s418 + $0x4f] sm:$0xff]
        %v1233 = vld [vmem:[%s418 + $0x57] sm:$0xff]
        %v1234 = vld [vmem:[%s418 + $0x5f] sm:$0xff]
        %v1235 = vld [vmem:[%s418 + $0x67] sm:$0xff]
        %v1236 = vld [vmem:[%s418 + $0x6f] sm:$0xff]
        %v1237 = vld [vmem:[%s418 + $0x77] sm:$0xff]
        %v1238 = vld [vmem:[%s418 + $0x7f] sm:$0xff]
        %v1239 = vld [vmem:[%s418 + $0x8] sm:$0xff]
        %v1240 = vld [vmem:[%s418 + $0x10] sm:$0xff]
        %v1241 = vld [vmem:[%s418 + $0x18] sm:$0xff]
        %v1242 = vld [vmem:[%s418 + $0x20] sm:$0xff]
        %v1243 = vld [vmem:[%s418 + $0x28] sm:$0xff]
        %v1244 = vld [vmem:[%s418 + $0x30] sm:$0xff]
        %v1245 = vld [vmem:[%s418 + $0x38] sm:$0xff]
        %v1246 = vld [vmem:[%s418 + $0x40] sm:$0xff]
        %v1247 = vld [vmem:[%s418 + $0x48] sm:$0xff]
        %v1248 = vld [vmem:[%s418 + $0x50] sm:$0xff]
        %v1249 = vld [vmem:[%s418 + $0x58] sm:$0xff]
        %v1250 = vld [vmem:[%s418 + $0x60] sm:$0xff]
        %v1251 = vld [vmem:[%s418 + $0x68] sm:$0xff]
        %v1252 = vld [vmem:[%s418 + $0x70] sm:$0xff]
        %v1253 = vld [vmem:[%s418 + $0x78] sm:$0xff]
        %v1254 = vld [vmem:[%s418 + $0x80] sm:$0xff]
        %v1255 = vld [vmem:[%s418 + $0x9] sm:$0xff]
        %v1256 = vld [vmem:[%s418 + $0x11] sm:$0xff]
        %v1257 = vld [vmem:[%s418 + $0x19] sm:$0xff]
        %v1258 = vld [vmem:[%s418 + $0x21] sm:$0xff]
        %v1259 = vld [vmem:[%s418 + $0x29] sm:$0xff]
        %v1260 = vld [vmem:[%s418 + $0x31] sm:$0xff]
        %v1261 = vld [vmem:[%s418 + $0x39] sm:$0xff]
        %v1262 = vld [vmem:[%s418 + $0x41] sm:$0xff]
        %v1263 = vld [vmem:[%s418 + $0x49] sm:$0xff]
        %v1264 = vld [vmem:[%s418 + $0x51] sm:$0xff]
        %v1265 = vld [vmem:[%s418 + $0x59] sm:$0xff]
        %v1266 = vld [vmem:[%s418 + $0x61] sm:$0xff]
        %v1267 = vld [vmem:[%s418 + $0x69] sm:$0xff]
        %v1268 = vld [vmem:[%s418 + $0x71] sm:$0xff]
        %v1269 = vld [vmem:[%s418 + $0x79] sm:$0xff]
        %v1270 = vld [vmem:[%s418 + $0x81] sm:$0xff]
        %v1271 = vld [vmem:[%s418 + $0xa] sm:$0xff]
        %v1272 = vld [vmem:[%s418 + $0x12] sm:$0xff]
        %v1273 = vld [vmem:[%s418 + $0x1a] sm:$0xff]
        %v1274 = vld [vmem:[%s418 + $0x22] sm:$0xff]
        %v1275 = vld [vmem:[%s418 + $0x2a] sm:$0xff]
        %v1276 = vld [vmem:[%s418 + $0x32] sm:$0xff]
        %v1277 = vld [vmem:[%s418 + $0x3a] sm:$0xff]
        %v1278 = vld [vmem:[%s418 + $0x42] sm:$0xff]
        %v1279 = vld [vmem:[%s418 + $0x4a] sm:$0xff]
        %v1280 = vld [vmem:[%s418 + $0x52] sm:$0xff]
        %v1281 = vld [vmem:[%s418 + $0x5a] sm:$0xff]
        %v1282 = vld [vmem:[%s418 + $0x62] sm:$0xff]
        %v1283 = vld [vmem:[%s418 + $0x6a] sm:$0xff]
        %v1284 = vld [vmem:[%s418 + $0x72] sm:$0xff]
        %v1285 = vld [vmem:[%s418 + $0x7a] sm:$0xff]
        %v1286 = vld [vmem:[%s418 + $0x82] sm:$0xff]
        %v1287 = vld [vmem:[%s418 + $0xb] sm:$0xff]
        %v1288 = vld [vmem:[%s418 + $0x13] sm:$0xff]
        %v1289 = vld [vmem:[%s418 + $0x1b] sm:$0xff]
        %v1290 = vld [vmem:[%s418 + $0x23] sm:$0xff]
        %v1291 = vld [vmem:[%s418 + $0x2b] sm:$0xff]
        %v1292 = vld [vmem:[%s418 + $0x33] sm:$0xff]
        %v1293 = vld [vmem:[%s418 + $0x3b] sm:$0xff]
        %v1294 = vld [vmem:[%s418 + $0x43] sm:$0xff]
        %v1295 = vld [vmem:[%s418 + $0x4b] sm:$0xff]
        %v1296 = vld [vmem:[%s418 + $0x53] sm:$0xff]
        %v1297 = vld [vmem:[%s418 + $0x5b] sm:$0xff]
        %v1298 = vld [vmem:[%s418 + $0x63] sm:$0xff]
        %v1299 = vld [vmem:[%s418 + $0x6b] sm:$0xff]
        %v1300 = vld [vmem:[%s418 + $0x73] sm:$0xff]
        %v1301 = vld [vmem:[%s418 + $0x7b] sm:$0xff]
        %v1302 = vld [vmem:[%s418 + $0x83] sm:$0xff]
        %1319 = vrot.lane.b32.xlu0 %v1207, 4
        %v1320 = vpop.permute.xlu0 %1319
        %1321 = vrot.lane.b32.xlu0 %v1208, 4
        %v1322 = vpop.permute.xlu0 %1321
        %1323 = vrot.lane.b32.xlu0 %v1209, 4
        %v1324 = vpop.permute.xlu0 %1323
        %1325 = vrot.lane.b32.xlu0 %v1210, 4
        %v1326 = vpop.permute.xlu0 %1325
        %1327 = vrot.lane.b32.xlu0 %v1211, 4
        %v1328 = vpop.permute.xlu0 %1327
        %1329 = vrot.lane.b32.xlu0 %v1212, 4
        %v1330 = vpop.permute.xlu0 %1329
        %1331 = vrot.lane.b32.xlu0 %v1213, 4
        %v1332 = vpop.permute.xlu0 %1331
        %1333 = vrot.lane.b32.xlu0 %v1214, 4
        %v1334 = vpop.permute.xlu0 %1333
        %1335 = vrot.lane.b32.xlu0 %v1215, 4
        %v1336 = vpop.permute.xlu0 %1335
        %1337 = vrot.lane.b32.xlu0 %v1216, 4
        %v1338 = vpop.permute.xlu0 %1337
        %1339 = vrot.lane.b32.xlu0 %v1217, 4
        %v1340 = vpop.permute.xlu0 %1339
        %1341 = vrot.lane.b32.xlu0 %v1218, 4
        %v1342 = vpop.permute.xlu0 %1341
        %1343 = vrot.lane.b32.xlu0 %v1219, 4
        %v1344 = vpop.permute.xlu0 %1343
        %1345 = vrot.lane.b32.xlu0 %v1220, 4
        %v1346 = vpop.permute.xlu0 %1345
        %1347 = vrot.lane.b32.xlu0 %v1221, 4
        %v1348 = vpop.permute.xlu0 %1347
        %1349 = vrot.lane.b32.xlu0 %v1222, 4
        %v1350 = vpop.permute.xlu0 %1349
        %1383 = vrot.lane.b32.xlu0 %v1223, 8
        %v1384 = vpop.permute.xlu0 %1383
        %1385 = vrot.lane.b32.xlu0 %v1224, 8
        %v1386 = vpop.permute.xlu0 %1385
        %1387 = vrot.lane.b32.xlu0 %v1225, 8
        %v1388 = vpop.permute.xlu0 %1387
        %1389 = vrot.lane.b32.xlu0 %v1226, 8
        %v1390 = vpop.permute.xlu0 %1389
        %1391 = vrot.lane.b32.xlu0 %v1227, 8
        %v1392 = vpop.permute.xlu0 %1391
        %1393 = vrot.lane.b32.xlu0 %v1228, 8
        %v1394 = vpop.permute.xlu0 %1393
        %1395 = vrot.lane.b32.xlu0 %v1229, 8
        %v1396 = vpop.permute.xlu0 %1395
        %1397 = vrot.lane.b32.xlu0 %v1230, 8
        %v1398 = vpop.permute.xlu0 %1397
        %1399 = vrot.lane.b32.xlu0 %v1231, 8
        %v1400 = vpop.permute.xlu0 %1399
        %1401 = vrot.lane.b32.xlu0 %v1232, 8
        %v1402 = vpop.permute.xlu0 %1401
        %1403 = vrot.lane.b32.xlu0 %v1233, 8
        %v1404 = vpop.permute.xlu0 %1403
        %1405 = vrot.lane.b32.xlu0 %v1234, 8
        %v1406 = vpop.permute.xlu0 %1405
        %1407 = vrot.lane.b32.xlu0 %v1235, 8
        %v1408 = vpop.permute.xlu0 %1407
        %1409 = vrot.lane.b32.xlu0 %v1236, 8
        %v1410 = vpop.permute.xlu0 %1409
        %1411 = vrot.lane.b32.xlu0 %v1237, 8
        %v1412 = vpop.permute.xlu0 %1411
        %1413 = vrot.lane.b32.xlu0 %v1238, 8
        %v1414 = vpop.permute.xlu0 %1413
        %1447 = vrot.lane.b32.xlu0 %v1239, 12
        %v1448 = vpop.permute.xlu0 %1447
        %1449 = vrot.lane.b32.xlu0 %v1240, 12
        %v1450 = vpop.permute.xlu0 %1449
        %1451 = vrot.lane.b32.xlu0 %v1241, 12
        %v1452 = vpop.permute.xlu0 %1451
        %1453 = vrot.lane.b32.xlu0 %v1242, 12
        %v1454 = vpop.permute.xlu0 %1453
        %1455 = vrot.lane.b32.xlu0 %v1243, 12
        %v1456 = vpop.permute.xlu0 %1455
        %1457 = vrot.lane.b32.xlu0 %v1244, 12
        %v1458 = vpop.permute.xlu0 %1457
        %1459 = vrot.lane.b32.xlu0 %v1245, 12
        %v1460 = vpop.permute.xlu0 %1459
        %1461 = vrot.lane.b32.xlu0 %v1246, 12
        %v1462 = vpop.permute.xlu0 %1461
        %1463 = vrot.lane.b32.xlu0 %v1247, 12
        %v1464 = vpop.permute.xlu0 %1463
        %1465 = vrot.lane.b32.xlu0 %v1248, 12
        %v1466 = vpop.permute.xlu0 %1465
        %1467 = vrot.lane.b32.xlu0 %v1249, 12
        %v1468 = vpop.permute.xlu0 %1467
        %1469 = vrot.lane.b32.xlu0 %v1250, 12
        %v1470 = vpop.permute.xlu0 %1469
        %1471 = vrot.lane.b32.xlu0 %v1251, 12
        %v1472 = vpop.permute.xlu0 %1471
        %1473 = vrot.lane.b32.xlu0 %v1252, 12
        %v1474 = vpop.permute.xlu0 %1473
        %1475 = vrot.lane.b32.xlu0 %v1253, 12
        %v1476 = vpop.permute.xlu0 %1475
        %1477 = vrot.lane.b32.xlu0 %v1254, 12
        %v1478 = vpop.permute.xlu0 %1477
        %1511 = vrot.lane.b32.xlu0 %v1255, 16
        %v1512 = vpop.permute.xlu0 %1511
        %1513 = vrot.lane.b32.xlu0 %v1256, 16
        %v1514 = vpop.permute.xlu0 %1513
        %1515 = vrot.lane.b32.xlu0 %v1257, 16
        %v1516 = vpop.permute.xlu0 %1515
        %1517 = vrot.lane.b32.xlu0 %v1258, 16
        %v1518 = vpop.permute.xlu0 %1517
        %1519 = vrot.lane.b32.xlu0 %v1259, 16
        %v1520 = vpop.permute.xlu0 %1519
        %1521 = vrot.lane.b32.xlu0 %v1260, 16
        %v1522 = vpop.permute.xlu0 %1521
        %1523 = vrot.lane.b32.xlu0 %v1261, 16
        %v1524 = vpop.permute.xlu0 %1523
        %1525 = vrot.lane.b32.xlu0 %v1262, 16
        %v1526 = vpop.permute.xlu0 %1525
        %1527 = vrot.lane.b32.xlu0 %v1263, 16
        %v1528 = vpop.permute.xlu0 %1527
        %1529 = vrot.lane.b32.xlu0 %v1264, 16
        %v1530 = vpop.permute.xlu0 %1529
        %1531 = vrot.lane.b32.xlu0 %v1265, 16
        %v1532 = vpop.permute.xlu0 %1531
        %1533 = vrot.lane.b32.xlu0 %v1266, 16
        %v1534 = vpop.permute.xlu0 %1533
        %1535 = vrot.lane.b32.xlu0 %v1267, 16
        %v1536 = vpop.permute.xlu0 %1535
        %1537 = vrot.lane.b32.xlu0 %v1268, 16
        %v1538 = vpop.permute.xlu0 %1537
        %1539 = vrot.lane.b32.xlu0 %v1269, 16
        %v1540 = vpop.permute.xlu0 %1539
        %1541 = vrot.lane.b32.xlu0 %v1270, 16
        %v1542 = vpop.permute.xlu0 %1541
        %1575 = vrot.lane.b32.xlu0 %v1271, 20
        %v1576 = vpop.permute.xlu0 %1575
        %1577 = vrot.lane.b32.xlu0 %v1272, 20
        %v1578 = vpop.permute.xlu0 %1577
        %1579 = vrot.lane.b32.xlu0 %v1273, 20
        %v1580 = vpop.permute.xlu0 %1579
        %1581 = vrot.lane.b32.xlu0 %v1274, 20
        %v1582 = vpop.permute.xlu0 %1581
        %1583 = vrot.lane.b32.xlu0 %v1275, 20
        %v1584 = vpop.permute.xlu0 %1583
        %1585 = vrot.lane.b32.xlu0 %v1276, 20
        %v1586 = vpop.permute.xlu0 %1585
        %1587 = vrot.lane.b32.xlu0 %v1277, 20
        %v1588 = vpop.permute.xlu0 %1587
        %1589 = vrot.lane.b32.xlu0 %v1278, 20
        %v1590 = vpop.permute.xlu0 %1589
        %1591 = vrot.lane.b32.xlu0 %v1279, 20
        %v1592 = vpop.permute.xlu0 %1591
        %1593 = vrot.lane.b32.xlu0 %v1280, 20
        %v1594 = vpop.permute.xlu0 %1593
        %1595 = vrot.lane.b32.xlu0 %v1281, 20
        %v1596 = vpop.permute.xlu0 %1595
        %1597 = vrot.lane.b32.xlu0 %v1282, 20
        %v1598 = vpop.permute.xlu0 %1597
        %1599 = vrot.lane.b32.xlu0 %v1283, 20
        %v1600 = vpop.permute.xlu0 %1599
        %1601 = vrot.lane.b32.xlu0 %v1284, 20
        %v1602 = vpop.permute.xlu0 %1601
        %1603 = vrot.lane.b32.xlu0 %v1285, 20
        %v1604 = vpop.permute.xlu0 %1603
        %1605 = vrot.lane.b32.xlu0 %v1286, 20
        %v1606 = vpop.permute.xlu0 %1605
        %1639 = vrot.lane.b32.xlu0 %v1287, 24
        %v1640 = vpop.permute.xlu0 %1639
        %1641 = vrot.lane.b32.xlu0 %v1288, 24
        %v1642 = vpop.permute.xlu0 %1641
        %1643 = vrot.lane.b32.xlu0 %v1289, 24
        %v1644 = vpop.permute.xlu0 %1643
        %1645 = vrot.lane.b32.xlu0 %v1290, 24
        %v1646 = vpop.permute.xlu0 %1645
        %1647 = vrot.lane.b32.xlu0 %v1291, 24
        %v1648 = vpop.permute.xlu0 %1647
        %1649 = vrot.lane.b32.xlu0 %v1292, 24
        %v1650 = vpop.permute.xlu0 %1649
        %1651 = vrot.lane.b32.xlu0 %v1293, 24
        %v1652 = vpop.permute.xlu0 %1651
        %1653 = vrot.lane.b32.xlu0 %v1294, 24
        %v1654 = vpop.permute.xlu0 %1653
        %1655 = vrot.lane.b32.xlu0 %v1295, 24
        %v1656 = vpop.permute.xlu0 %1655
        %1657 = vrot.lane.b32.xlu0 %v1296, 24
        %v1658 = vpop.permute.xlu0 %1657
        %1659 = vrot.lane.b32.xlu0 %v1297, 24
        %v1660 = vpop.permute.xlu0 %1659
        %1661 = vrot.lane.b32.xlu0 %v1298, 24
        %v1662 = vpop.permute.xlu0 %1661
        %1663 = vrot.lane.b32.xlu0 %v1299, 24
        %v1664 = vpop.permute.xlu0 %1663
        %1665 = vrot.lane.b32.xlu0 %v1300, 24
        %v1666 = vpop.permute.xlu0 %1665
        %1667 = vrot.lane.b32.xlu0 %v1301, 24
        %v1668 = vpop.permute.xlu0 %1667
        %1669 = vrot.lane.b32.xlu0 %v1302, 24
        %v1670 = vpop.permute.xlu0 %1669
        %vm1687 = vcmask 31744
        %v1688 = vsel %vm1687, %v1191, %v1320
        %v1689 = vsel %vm1687, %v1192, %v1322
        %v1690 = vsel %vm1687, %v1193, %v1324
        %v1691 = vsel %vm1687, %v1194, %v1326
        %v1692 = vsel %vm1687, %v1195, %v1328
        %v1693 = vsel %vm1687, %v1196, %v1330
        %v1694 = vsel %vm1687, %v1197, %v1332
        %v1695 = vsel %vm1687, %v1198, %v1334
        %v1696 = vsel %vm1687, %v1199, %v1336
        %v1697 = vsel %vm1687, %v1200, %v1338
        %v1698 = vsel %vm1687, %v1201, %v1340
        %v1699 = vsel %vm1687, %v1202, %v1342
        %v1700 = vsel %vm1687, %v1203, %v1344
        %v1701 = vsel %vm1687, %v1204, %v1346
        %v1702 = vsel %vm1687, %v1205, %v1348
        %v1703 = vsel %vm1687, %v1206, %v1350
        %v1704 = vsel %vm561, %v1688, %v1384
        %v1705 = vsel %vm561, %v1689, %v1386
        %v1706 = vsel %vm561, %v1690, %v1388
        %v1707 = vsel %vm561, %v1691, %v1390
        %v1708 = vsel %vm561, %v1692, %v1392
        %v1709 = vsel %vm561, %v1693, %v1394
        %v1710 = vsel %vm561, %v1694, %v1396
        %v1711 = vsel %vm561, %v1695, %v1398
        %v1712 = vsel %vm561, %v1696, %v1400
        %v1713 = vsel %vm561, %v1697, %v1402
        %v1714 = vsel %vm561, %v1698, %v1404
        %v1715 = vsel %vm561, %v1699, %v1406
        %v1716 = vsel %vm561, %v1700, %v1408
        %v1717 = vsel %vm561, %v1701, %v1410
        %v1718 = vsel %vm561, %v1702, %v1412
        %v1719 = vsel %vm561, %v1703, %v1414
        %vm1720 = vcmask 97280
        %v1721 = vsel %vm1720, %v1704, %v1448
        %v1722 = vsel %vm1720, %v1705, %v1450
        %v1723 = vsel %vm1720, %v1706, %v1452
        %v1724 = vsel %vm1720, %v1707, %v1454
        %v1725 = vsel %vm1720, %v1708, %v1456
        %v1726 = vsel %vm1720, %v1709, %v1458
        %v1727 = vsel %vm1720, %v1710, %v1460
        %v1728 = vsel %vm1720, %v1711, %v1462
        %v1729 = vsel %vm1720, %v1712, %v1464
        %v1730 = vsel %vm1720, %v1713, %v1466
        %v1731 = vsel %vm1720, %v1714, %v1468
        %v1732 = vsel %vm1720, %v1715, %v1470
        %v1733 = vsel %vm1720, %v1716, %v1472
        %v1734 = vsel %vm1720, %v1717, %v1474
        %v1735 = vsel %vm1720, %v1718, %v1476
        %v1736 = vsel %vm1720, %v1719, %v1478
        %v1737 = vsel %vm1106, %v1721, %v1512
        %v1738 = vsel %vm1106, %v1722, %v1514
        %v1739 = vsel %vm1106, %v1723, %v1516
        %v1740 = vsel %vm1106, %v1724, %v1518
        %v1741 = vsel %vm1106, %v1725, %v1520
        %v1742 = vsel %vm1106, %v1726, %v1522
        %v1743 = vsel %vm1106, %v1727, %v1524
        %v1744 = vsel %vm1106, %v1728, %v1526
        %v1745 = vsel %vm1106, %v1729, %v1528
        %v1746 = vsel %vm1106, %v1730, %v1530
        %v1747 = vsel %vm1106, %v1731, %v1532
        %v1748 = vsel %vm1106, %v1732, %v1534
        %v1749 = vsel %vm1106, %v1733, %v1536
        %v1750 = vsel %vm1106, %v1734, %v1538
        %v1751 = vsel %vm1106, %v1735, %v1540
        %v1752 = vsel %vm1106, %v1736, %v1542
        %vm1753 = vcmask 162816
        %v1754 = vsel %vm1753, %v1737, %v1576
        %v1755 = vsel %vm1753, %v1738, %v1578
        %v1756 = vsel %vm1753, %v1739, %v1580
        %v1757 = vsel %vm1753, %v1740, %v1582
        %v1758 = vsel %vm1753, %v1741, %v1584
        %v1759 = vsel %vm1753, %v1742, %v1586
        %v1760 = vsel %vm1753, %v1743, %v1588
        %v1761 = vsel %vm1753, %v1744, %v1590
        %v1762 = vsel %vm1753, %v1745, %v1592
        %v1763 = vsel %vm1753, %v1746, %v1594
        %v1764 = vsel %vm1753, %v1747, %v1596
        %v1765 = vsel %vm1753, %v1748, %v1598
        %v1766 = vsel %vm1753, %v1749, %v1600
        %v1767 = vsel %vm1753, %v1750, %v1602
        %v1768 = vsel %vm1753, %v1751, %v1604
        %v1769 = vsel %vm1753, %v1752, %v1606
        %v1770 = vsel %vm1123, %v1754, %v1640
        %v1771 = vsel %vm1123, %v1755, %v1642
        %v1772 = vsel %vm1123, %v1756, %v1644
        %v1773 = vsel %vm1123, %v1757, %v1646
        %v1774 = vsel %vm1123, %v1758, %v1648
        %v1775 = vsel %vm1123, %v1759, %v1650
        %v1776 = vsel %vm1123, %v1760, %v1652
        %v1777 = vsel %vm1123, %v1761, %v1654
        %v1778 = vsel %vm1123, %v1762, %v1656
        %v1779 = vsel %vm1123, %v1763, %v1658
        %v1780 = vsel %vm1123, %v1764, %v1660
        %v1781 = vsel %vm1123, %v1765, %v1662
        %v1782 = vsel %vm1123, %v1766, %v1664
        %v1783 = vsel %vm1123, %v1767, %v1666
        %v1784 = vsel %vm1123, %v1768, %v1668
        %v1785 = vsel %vm1123, %v1769, %v1670
        %v1786 = vld [vmem:[%s430] sm:$0xff]
        %v1787 = vld [vmem:[%s430 + $0x8] sm:$0xff]
        %v1788 = vld [vmem:[%s430 + $0x10] sm:$0xff]
        %v1789 = vld [vmem:[%s430 + $0x18] sm:$0xff]
        %v1790 = vld [vmem:[%s430 + $0x20] sm:$0xff]
        %v1791 = vld [vmem:[%s430 + $0x28] sm:$0xff]
        %v1792 = vld [vmem:[%s430 + $0x30] sm:$0xff]
        %v1793 = vld [vmem:[%s435] sm:$0xff]
        %v1794 = vld [vmem:[%s435 + $0x8] sm:$0xff]
        %v1795 = vld [vmem:[%s435 + $0x10] sm:$0xff]
        %v1796 = vld [vmem:[%s435 + $0x18] sm:$0xf]
        %vm1797 = vcmask 228352
        %v1799 = vsel %vm1797, %v1770, 0
        %v1802 = vsel %vm1797, %v1771, 0
        %v1805 = vsel %vm1797, %v1772, 0
        %v1808 = vsel %vm1797, %v1773, 0
        %v1811 = vsel %vm1797, %v1774, 0
        %v1814 = vsel %vm1797, %v1775, 0
        %v1817 = vsel %vm1797, %v1776, 0
        %v1820 = vsel %vm1797, %v1777, 0
        %v1823 = vsel %vm1797, %v1778, 0
        %v1826 = vsel %vm1797, %v1779, 0
        %v1829 = vsel %vm1797, %v1780, 0
        %v1832 = vsel %vm1797, %v1781, 0
        %v1835 = vsel %vm1797, %v1782, 0
        %v1838 = vsel %vm1797, %v1783, 0
        %v1841 = vsel %vm1797, %v1784, 0
        %v1844 = vsel %vm1797, %v1785, 0
        %vm1846 = vcmask 1043456
        %v1848 = vsel %vm1846, %v1796, 0
        %1850 = vmatprep.subr.mxu0 0.0
        %1851 = vmatpush1.msra.mxu0 0.0
        %1852 = vmatprep.subr.mxu0 0.0
        %1853 = vmatpush1.msra.mxu0 0.0
        %1854 = vmatprep.subr.mxu0 0.0
        %1855 = vmatpush1.msra.mxu0 0.0
        %1856 = vmatprep.subr.mxu0 0.0
        %1857 = vmatpush1.msra.mxu0 0.0
        %1858 = vmatprep.subr.mxu0 0.0
        %1859 = vmatpush1.msra.mxu0 0.0
        %1860 = vmatprep.subr.mxu0 0.0
        %1861 = vmatpush1.msra.mxu0 0.0
        %1862 = vmatprep.subr.mxu0 0.0
        %1863 = vmatpush1.msra.mxu0 0.0
        %1864 = vmatprep.subr.mxu0 0.0
        %1865 = vmatpush1.msra.mxu0 0.0
        %1866 = vmatprep.subr.mxu0 0.0
        %1867 = vmatpush1.msra.mxu0 0.0
        %1868 = vmatprep.subr.mxu0 0.0
        %1869 = vmatpush1.msra.mxu0 0.0
        %1870 = vmatprep.subr.mxu0 0.0
        %1871 = vmatpush1.msra.mxu0 0.0
        %1872 = vmatprep.subr.mxu0 0.0
        %1873 = vmatpush1.msra.mxu0 0.0
        %1874 = vmatprep.subr.mxu0 0.0
        %1875 = vmatpush1.msra.mxu0 %v1848
        %1876 = vmatprep.subr.mxu0 0.0
        %1877 = vmatpush1.msra.mxu0 %v1795
        %1878 = vmatprep.subr.mxu0 0.0
        %1879 = vmatpush1.msra.mxu0 %v1794
        %1880 = vmatprep.subr.mxu0 0.0
        %1881 = vmatpush1.msra.mxu0 %v1793
        %1882 = vmatprep.subr.mxu0 0.0
        %1883 = vmatpush2.msra.mxu0 0.0
        %1884 = vmatprep.subr.mxu0 0.0
        %1885 = vmatpush2.msra.mxu0 0.0
        %1886 = vmatprep.subr.mxu0 0.0
        %1887 = vmatpush2.msra.mxu0 0.0
        %1888 = vmatprep.subr.mxu0 0.0
        %1889 = vmatpush2.msra.mxu0 0.0
        %1890 = vmatprep.subr.mxu0 0.0
        %1891 = vmatpush2.msra.mxu0 0.0
        %1892 = vmatprep.subr.mxu0 0.0
        %1893 = vmatpush2.msra.mxu0 0.0
        %1894 = vmatprep.subr.mxu0 0.0
        %1895 = vmatpush2.msra.mxu0 0.0
        %1896 = vmatprep.subr.mxu0 0.0
        %1897 = vmatpush2.msra.mxu0 0.0
        %1898 = vmatprep.subr.mxu0 0.0
        %1899 = vmatpush2.msra.mxu0 0.0
        %1900 = vmatprep.subr.mxu0 0.0
        %1901 = vmatpush2.msra.mxu0 0.0
        %1902 = vmatprep.subr.mxu0 0.0
        %1903 = vmatpush2.msra.mxu0 0.0
        %1904 = vmatprep.subr.mxu0 0.0
        %1905 = vmatpush2.msra.mxu0 0.0
        %1906 = vmatprep.subr.mxu0 0.0
        %1907 = vmatpush2.msra.mxu0 0.0
        %1908 = vmatprep.subr.mxu0 0.0
        %1909 = vmatpush2.msra.mxu0 0.0
        %1910 = vmatprep.subr.mxu0 0.0
        %1911 = vmatpush2.msra.mxu0 0.0
        %1912 = vmatprep.subr.mxu0 0.0
        %1913 = vmatpush2.msra.mxu0 0.0
        %1914 = vmatprep.mubr.f32.mxu0 0.0
        %1915 = vmatmul.mubr.f32.gmra.mxu0 %v1799
        %v1916 = vpop.f32.mrf.mxu0
        %v1917 = vadd.f32 0.0, %v1916
        %v1918 = vpop.f32.mrf.mxu0
        %1919 = vmatprep.mubr.f32.mxu0 0.0
        %1920 = vmatmul.mubr.f32.gmra.mxu0 %v1802
        %v1921 = vpop.f32.mrf.mxu0
        %v1922 = vadd.f32 0.0, %v1921
        %v1923 = vpop.f32.mrf.mxu0
        %1924 = vmatprep.mubr.f32.mxu0 0.0
        %1925 = vmatmul.mubr.f32.gmra.mxu0 %v1805
        %v1926 = vpop.f32.mrf.mxu0
        %v1927 = vadd.f32 0.0, %v1926
        %v1928 = vpop.f32.mrf.mxu0
        %1929 = vmatprep.mubr.f32.mxu0 0.0
        %1930 = vmatmul.mubr.f32.gmra.mxu0 %v1808
        %v1931 = vpop.f32.mrf.mxu0
        %v1932 = vadd.f32 0.0, %v1931
        %v1933 = vpop.f32.mrf.mxu0
        %1934 = vmatprep.mubr.f32.mxu0 0.0
        %1935 = vmatmul.mubr.f32.gmra.mxu0 %v1811
        %v1936 = vpop.f32.mrf.mxu0
        %v1937 = vadd.f32 0.0, %v1936
        %v1938 = vpop.f32.mrf.mxu0
        %1939 = vmatprep.mubr.f32.mxu0 0.0
        %1940 = vmatmul.mubr.f32.gmra.mxu0 %v1814
        %v1941 = vpop.f32.mrf.mxu0
        %v1942 = vadd.f32 0.0, %v1941
        %v1943 = vpop.f32.mrf.mxu0
        %1944 = vmatprep.mubr.f32.mxu0 0.0
        %1945 = vmatmul.mubr.f32.gmra.mxu0 %v1817
        %v1946 = vpop.f32.mrf.mxu0
        %v1947 = vadd.f32 0.0, %v1946
        %v1948 = vpop.f32.mrf.mxu0
        %1949 = vmatprep.mubr.f32.mxu0 0.0
        %1950 = vmatmul.mubr.f32.gmra.mxu0 %v1820
        %v1951 = vpop.f32.mrf.mxu0
        %v1952 = vadd.f32 0.0, %v1951
        %v1953 = vpop.f32.mrf.mxu0
        %1954 = vmatprep.mubr.f32.mxu0 0.0
        %1955 = vmatmul.mubr.f32.gmra.mxu0 %v1823
        %v1956 = vpop.f32.mrf.mxu0
        %v1957 = vadd.f32 0.0, %v1956
        %v1958 = vpop.f32.mrf.mxu0
        %1959 = vmatprep.mubr.f32.mxu0 0.0
        %1960 = vmatmul.mubr.f32.gmra.mxu0 %v1826
        %v1961 = vpop.f32.mrf.mxu0
        %v1962 = vadd.f32 0.0, %v1961
        %v1963 = vpop.f32.mrf.mxu0
        %1964 = vmatprep.mubr.f32.mxu0 0.0
        %1965 = vmatmul.mubr.f32.gmra.mxu0 %v1829
        %v1966 = vpop.f32.mrf.mxu0
        %v1967 = vadd.f32 0.0, %v1966
        %v1968 = vpop.f32.mrf.mxu0
        %1969 = vmatprep.mubr.f32.mxu0 0.0
        %1970 = vmatmul.mubr.f32.gmra.mxu0 %v1832
        %v1971 = vpop.f32.mrf.mxu0
        %v1972 = vadd.f32 0.0, %v1971
        %v1973 = vpop.f32.mrf.mxu0
        %1974 = vmatprep.mubr.f32.mxu0 0.0
        %1975 = vmatmul.mubr.f32.gmra.mxu0 %v1835
        %v1976 = vpop.f32.mrf.mxu0
        %v1977 = vadd.f32 0.0, %v1976
        %v1978 = vpop.f32.mrf.mxu0
        %1979 = vmatprep.mubr.f32.mxu0 0.0
        %1980 = vmatmul.mubr.f32.gmra.mxu0 %v1838
        %v1981 = vpop.f32.mrf.mxu0
        %v1982 = vadd.f32 0.0, %v1981
        %v1983 = vpop.f32.mrf.mxu0
        %1984 = vmatprep.mubr.f32.mxu0 0.0
        %1985 = vmatmul.mubr.f32.gmra.mxu0 %v1841
        %v1986 = vpop.f32.mrf.mxu0
        %v1987 = vadd.f32 0.0, %v1986
        %v1988 = vpop.f32.mrf.mxu0
        %1989 = vmatprep.mubr.f32.mxu0 0.0
        %1990 = vmatmul.mubr.f32.gmra.mxu0 %v1844
        %v1991 = vpop.f32.mrf.mxu0
        %v1992 = vadd.f32 0.0, %v1991
        %v1993 = vpop.f32.mrf.mxu0
        %1994 = vdwg.mxu0
        %vm1995 = vcmask 457728
        %v1997 = vsel %vm1995, %v1175, 0
        %v2000 = vsel %vm1995, %v1176, 0
        %v2003 = vsel %vm1995, %v1177, 0
        %v2006 = vsel %vm1995, %v1178, 0
        %v2009 = vsel %vm1995, %v1179, 0
        %v2012 = vsel %vm1995, %v1180, 0
        %v2015 = vsel %vm1995, %v1181, 0
        %v2018 = vsel %vm1995, %v1182, 0
        %v2021 = vsel %vm1995, %v1183, 0
        %v2024 = vsel %vm1995, %v1184, 0
        %v2027 = vsel %vm1995, %v1185, 0
        %v2030 = vsel %vm1995, %v1186, 0
        %v2033 = vsel %vm1995, %v1187, 0
        %v2036 = vsel %vm1995, %v1188, 0
        %v2039 = vsel %vm1995, %v1189, 0
        %v2042 = vsel %vm1995, %v1190, 0
        %2044 = vmatprep.subr.mxu0 0.0
        %2045 = vmatpush1.msra.mxu0 0.0
        %2046 = vmatprep.subr.mxu0 0.0
        %2047 = vmatpush1.msra.mxu0 0.0
        %2048 = vmatprep.subr.mxu0 0.0
        %2049 = vmatpush1.msra.mxu0 0.0
        %2050 = vmatprep.subr.mxu0 0.0
        %2051 = vmatpush1.msra.mxu0 0.0
        %2052 = vmatprep.subr.mxu0 0.0
        %2053 = vmatpush1.msra.mxu0 0.0
        %2054 = vmatprep.subr.mxu0 0.0
        %2055 = vmatpush1.msra.mxu0 0.0
        %2056 = vmatprep.subr.mxu0 0.0
        %2057 = vmatpush1.msra.mxu0 0.0
        %2058 = vmatprep.subr.mxu0 0.0
        %2059 = vmatpush1.msra.mxu0 0.0
        %2060 = vmatprep.subr.mxu0 0.0
        %2061 = vmatpush1.msra.mxu0 0.0
        %2062 = vmatprep.subr.mxu0 0.0
        %2063 = vmatpush1.msra.mxu0 %v1792
        %2064 = vmatprep.subr.mxu0 0.0
        %2065 = vmatpush1.msra.mxu0 %v1791
        %2066 = vmatprep.subr.mxu0 0.0
        %2067 = vmatpush1.msra.mxu0 %v1790
        %2068 = vmatprep.subr.mxu0 0.0
        %2069 = vmatpush1.msra.mxu0 %v1789
        %2070 = vmatprep.subr.mxu0 0.0
        %2071 = vmatpush1.msra.mxu0 %v1788
        %2072 = vmatprep.subr.mxu0 0.0
        %2073 = vmatpush1.msra.mxu0 %v1787
        %2074 = vmatprep.subr.mxu0 0.0
        %2075 = vmatpush1.msra.mxu0 %v1786
        %2076 = vmatprep.subr.mxu0 0.0
        %2077 = vmatpush2.msra.mxu0 0.0
        %2078 = vmatprep.subr.mxu0 0.0
        %2079 = vmatpush2.msra.mxu0 0.0
        %2080 = vmatprep.subr.mxu0 0.0
        %2081 = vmatpush2.msra.mxu0 0.0
        %2082 = vmatprep.subr.mxu0 0.0
        %2083 = vmatpush2.msra.mxu0 0.0
        %2084 = vmatprep.subr.mxu0 0.0
        %2085 = vmatpush2.msra.mxu0 0.0
        %2086 = vmatprep.subr.mxu0 0.0
        %2087 = vmatpush2.msra.mxu0 0.0
        %2088 = vmatprep.subr.mxu0 0.0
        %2089 = vmatpush2.msra.mxu0 0.0
        %2090 = vmatprep.subr.mxu0 0.0
        %2091 = vmatpush2.msra.mxu0 0.0
        %2092 = vmatprep.subr.mxu0 0.0
        %2093 = vmatpush2.msra.mxu0 0.0
        %2094 = vmatprep.subr.mxu0 0.0
        %2095 = vmatpush2.msra.mxu0 0.0
        %2096 = vmatprep.subr.mxu0 0.0
        %2097 = vmatpush2.msra.mxu0 0.0
        %2098 = vmatprep.subr.mxu0 0.0
        %2099 = vmatpush2.msra.mxu0 0.0
        %2100 = vmatprep.subr.mxu0 0.0
        %2101 = vmatpush2.msra.mxu0 0.0
        %2102 = vmatprep.subr.mxu0 0.0
        %2103 = vmatpush2.msra.mxu0 0.0
        %2104 = vmatprep.subr.mxu0 0.0
        %2105 = vmatpush2.msra.mxu0 0.0
        %2106 = vmatprep.subr.mxu0 0.0
        %2107 = vmatpush2.msra.mxu0 0.0
        %2108 = vmatprep.mubr.f32.mxu0 0.0
        %2109 = vmatmul.mubr.f32.gmra.mxu0 %v1997
        %v2110 = vpop.f32.mrf.mxu0
        %v2111 = vadd.f32 %v1917, %v2110
        %v2112 = vpop.f32.mrf.mxu0
        %2113 = vmatprep.mubr.f32.mxu0 0.0
        %2114 = vmatmul.mubr.f32.gmra.mxu0 %v2000
        %v2115 = vpop.f32.mrf.mxu0
        %v2116 = vadd.f32 %v1922, %v2115
        %v2117 = vpop.f32.mrf.mxu0
        %2118 = vmatprep.mubr.f32.mxu0 0.0
        %2119 = vmatmul.mubr.f32.gmra.mxu0 %v2003
        %v2120 = vpop.f32.mrf.mxu0
        %v2121 = vadd.f32 %v1927, %v2120
        %v2122 = vpop.f32.mrf.mxu0
        %2123 = vmatprep.mubr.f32.mxu0 0.0
        %2124 = vmatmul.mubr.f32.gmra.mxu0 %v2006
        %v2125 = vpop.f32.mrf.mxu0
        %v2126 = vadd.f32 %v1932, %v2125
        %v2127 = vpop.f32.mrf.mxu0
        %2128 = vmatprep.mubr.f32.mxu0 0.0
        %2129 = vmatmul.mubr.f32.gmra.mxu0 %v2009
        %v2130 = vpop.f32.mrf.mxu0
        %v2131 = vadd.f32 %v1937, %v2130
        %v2132 = vpop.f32.mrf.mxu0
        %2133 = vmatprep.mubr.f32.mxu0 0.0
        %2134 = vmatmul.mubr.f32.gmra.mxu0 %v2012
        %v2135 = vpop.f32.mrf.mxu0
        %v2136 = vadd.f32 %v1942, %v2135
        %v2137 = vpop.f32.mrf.mxu0
        %2138 = vmatprep.mubr.f32.mxu0 0.0
        %2139 = vmatmul.mubr.f32.gmra.mxu0 %v2015
        %v2140 = vpop.f32.mrf.mxu0
        %v2141 = vadd.f32 %v1947, %v2140
        %v2142 = vpop.f32.mrf.mxu0
        %2143 = vmatprep.mubr.f32.mxu0 0.0
        %2144 = vmatmul.mubr.f32.gmra.mxu0 %v2018
        %v2145 = vpop.f32.mrf.mxu0
        %v2146 = vadd.f32 %v1952, %v2145
        %v2147 = vpop.f32.mrf.mxu0
        %2148 = vmatprep.mubr.f32.mxu0 0.0
        %2149 = vmatmul.mubr.f32.gmra.mxu0 %v2021
        %v2150 = vpop.f32.mrf.mxu0
        %v2151 = vadd.f32 %v1957, %v2150
        %v2152 = vpop.f32.mrf.mxu0
        %2153 = vmatprep.mubr.f32.mxu0 0.0
        %2154 = vmatmul.mubr.f32.gmra.mxu0 %v2024
        %v2155 = vpop.f32.mrf.mxu0
        %v2156 = vadd.f32 %v1962, %v2155
        %v2157 = vpop.f32.mrf.mxu0
        %2158 = vmatprep.mubr.f32.mxu0 0.0
        %2159 = vmatmul.mubr.f32.gmra.mxu0 %v2027
        %v2160 = vpop.f32.mrf.mxu0
        %v2161 = vadd.f32 %v1967, %v2160
        %v2162 = vpop.f32.mrf.mxu0
        %2163 = vmatprep.mubr.f32.mxu0 0.0
        %2164 = vmatmul.mubr.f32.gmra.mxu0 %v2030
        %v2165 = vpop.f32.mrf.mxu0
        %v2166 = vadd.f32 %v1972, %v2165
        %v2167 = vpop.f32.mrf.mxu0
        %2168 = vmatprep.mubr.f32.mxu0 0.0
        %2169 = vmatmul.mubr.f32.gmra.mxu0 %v2033
        %v2170 = vpop.f32.mrf.mxu0
        %v2171 = vadd.f32 %v1977, %v2170
        %v2172 = vpop.f32.mrf.mxu0
        %2173 = vmatprep.mubr.f32.mxu0 0.0
        %2174 = vmatmul.mubr.f32.gmra.mxu0 %v2036
        %v2175 = vpop.f32.mrf.mxu0
        %v2176 = vadd.f32 %v1982, %v2175
        %v2177 = vpop.f32.mrf.mxu0
        %2178 = vmatprep.mubr.f32.mxu0 0.0
        %2179 = vmatmul.mubr.f32.gmra.mxu0 %v2039
        %v2180 = vpop.f32.mrf.mxu0
        %v2181 = vadd.f32 %v1987, %v2180
        %v2182 = vpop.f32.mrf.mxu0
        %2183 = vmatprep.mubr.f32.mxu0 0.0
        %2184 = vmatmul.mubr.f32.gmra.mxu0 %v2042
        %v2185 = vpop.f32.mrf.mxu0
        %v2186 = vadd.f32 %v1992, %v2185
        %v2187 = vpop.f32.mrf.mxu0
        %2188 = vdwg.mxu0
        %v2189 = vld [vmem:[%s438] sm:$0x1]
        %v2191 = vlaneseq
        %v2192 = vshrl.u32 %v2191, 7
        %v2193 = vsub.s32 0, %v2192
        %v2194 = vrot.slane %v2189, %v2193
        %v2196 = vadd.f32 %v2111, %v2194
        %v2197 = vadd.f32 %v2116, %v2194
        %v2198 = vadd.f32 %v2121, %v2194
        %v2199 = vadd.f32 %v2126, %v2194
        %v2200 = vadd.f32 %v2131, %v2194
        %v2201 = vadd.f32 %v2136, %v2194
        %v2202 = vadd.f32 %v2141, %v2194
        %v2203 = vadd.f32 %v2146, %v2194
        %v2204 = vadd.f32 %v2151, %v2194
        %v2205 = vadd.f32 %v2156, %v2194
        %v2206 = vadd.f32 %v2161, %v2194
        %v2207 = vadd.f32 %v2166, %v2194
        %v2208 = vadd.f32 %v2171, %v2194
        %v2209 = vadd.f32 %v2176, %v2194
        %v2210 = vadd.f32 %v2181, %v2194
        %v2211 = vadd.f32 %v2186, %v2194
        %v2212 = vxor.u32 %v2196, 2147483648
        %v2213 = vxor.u32 %v2197, 2147483648
        %v2214 = vxor.u32 %v2198, 2147483648
        %v2215 = vxor.u32 %v2199, 2147483648
        %v2216 = vxor.u32 %v2200, 2147483648
        %v2217 = vxor.u32 %v2201, 2147483648
        %v2218 = vxor.u32 %v2202, 2147483648
        %v2219 = vxor.u32 %v2203, 2147483648
        %v2220 = vxor.u32 %v2204, 2147483648
        %v2221 = vxor.u32 %v2205, 2147483648
        %v2222 = vxor.u32 %v2206, 2147483648
        %v2223 = vxor.u32 %v2207, 2147483648
        %v2224 = vxor.u32 %v2208, 2147483648
        %v2225 = vxor.u32 %v2209, 2147483648
        %v2226 = vxor.u32 %v2210, 2147483648
        %v2227 = vxor.u32 %v2211, 2147483648
        %v2228 = vmul.f32 %v2212, 1.442695
        %v2229 = vpow.pop %v2228
        %v2230 = vmul.f32 %v2213, 1.442695
        %v2231 = vpow.pop %v2230
        %v2232 = vmul.f32 %v2214, 1.442695
        %v2233 = vpow.pop %v2232
        %v2234 = vmul.f32 %v2215, 1.442695
        %v2235 = vpow.pop %v2234
        %v2236 = vmul.f32 %v2216, 1.442695
        %v2237 = vpow.pop %v2236
        %v2238 = vmul.f32 %v2217, 1.442695
        %v2239 = vpow.pop %v2238
        %v2240 = vmul.f32 %v2218, 1.442695
        %v2241 = vpow.pop %v2240
        %v2242 = vmul.f32 %v2219, 1.442695
        %v2243 = vpow.pop %v2242
        %v2244 = vmul.f32 %v2220, 1.442695
        %v2245 = vpow.pop %v2244
        %v2246 = vmul.f32 %v2221, 1.442695
        %v2247 = vpow.pop %v2246
        %v2248 = vmul.f32 %v2222, 1.442695
        %v2249 = vpow.pop %v2248
        %v2250 = vmul.f32 %v2223, 1.442695
        %v2251 = vpow.pop %v2250
        %v2252 = vmul.f32 %v2224, 1.442695
        %v2253 = vpow.pop %v2252
        %v2254 = vmul.f32 %v2225, 1.442695
        %v2255 = vpow.pop %v2254
        %v2256 = vmul.f32 %v2226, 1.442695
        %v2257 = vpow.pop %v2256
        %v2258 = vmul.f32 %v2227, 1.442695
        %v2259 = vpow.pop %v2258
        %v2260 = vadd.f32 %v2229, 1.0
        %v2261 = vadd.f32 %v2231, 1.0
        %v2262 = vadd.f32 %v2233, 1.0
        %v2263 = vadd.f32 %v2235, 1.0
        %v2264 = vadd.f32 %v2237, 1.0
        %v2265 = vadd.f32 %v2239, 1.0
        %v2266 = vadd.f32 %v2241, 1.0
        %v2267 = vadd.f32 %v2243, 1.0
        %v2268 = vadd.f32 %v2245, 1.0
        %v2269 = vadd.f32 %v2247, 1.0
        %v2270 = vadd.f32 %v2249, 1.0
        %v2271 = vadd.f32 %v2251, 1.0
        %v2272 = vadd.f32 %v2253, 1.0
        %v2273 = vadd.f32 %v2255, 1.0
        %v2274 = vadd.f32 %v2257, 1.0
        %v2275 = vadd.f32 %v2259, 1.0
        %v2276 = vrcp.pop %v2260
        %v2277 = vmul.f32 1.0, %v2276
        %v2278 = vrcp.pop %v2261
        %v2279 = vmul.f32 1.0, %v2278
        %v2280 = vrcp.pop %v2262
        %v2281 = vmul.f32 1.0, %v2280
        %v2282 = vrcp.pop %v2263
        %v2283 = vmul.f32 1.0, %v2282
        %v2284 = vrcp.pop %v2264
        %v2285 = vmul.f32 1.0, %v2284
        %v2286 = vrcp.pop %v2265
        %v2287 = vmul.f32 1.0, %v2286
        %v2288 = vrcp.pop %v2266
        %v2289 = vmul.f32 1.0, %v2288
        %v2290 = vrcp.pop %v2267
        %v2291 = vmul.f32 1.0, %v2290
        %v2292 = vrcp.pop %v2268
        %v2293 = vmul.f32 1.0, %v2292
        %v2294 = vrcp.pop %v2269
        %v2295 = vmul.f32 1.0, %v2294
        %v2296 = vrcp.pop %v2270
        %v2297 = vmul.f32 1.0, %v2296
        %v2298 = vrcp.pop %v2271
        %v2299 = vmul.f32 1.0, %v2298
        %v2300 = vrcp.pop %v2272
        %v2301 = vmul.f32 1.0, %v2300
        %v2302 = vrcp.pop %v2273
        %v2303 = vmul.f32 1.0, %v2302
        %v2304 = vrcp.pop %v2274
        %v2305 = vmul.f32 1.0, %v2304
        %v2306 = vrcp.pop %v2275
        %v2307 = vmul.f32 1.0, %v2306
        %v2308 = vtanh.pop %v2196
        %v2309 = vtanh.pop %v2197
        %v2310 = vtanh.pop %v2198
        %v2311 = vtanh.pop %v2199
        %v2312 = vtanh.pop %v2200
        %v2313 = vtanh.pop %v2201
        %v2314 = vtanh.pop %v2202
        %v2315 = vtanh.pop %v2203
        %v2316 = vtanh.pop %v2204
        %v2317 = vtanh.pop %v2205
        %v2318 = vtanh.pop %v2206
        %v2319 = vtanh.pop %v2207
        %v2320 = vtanh.pop %v2208
        %v2321 = vtanh.pop %v2209
        %v2322 = vtanh.pop %v2210
        %v2323 = vtanh.pop %v2211
        %2340 = vrot.lane.b32.xlu0 %v2308, 120
        %v2341 = vpop.permute.xlu0 %2340
        %2342 = vrot.lane.b32.xlu0 %v2309, 120
        %v2343 = vpop.permute.xlu0 %2342
        %2344 = vrot.lane.b32.xlu0 %v2310, 120
        %v2345 = vpop.permute.xlu0 %2344
        %2346 = vrot.lane.b32.xlu0 %v2311, 120
        %v2347 = vpop.permute.xlu0 %2346
        %2348 = vrot.lane.b32.xlu0 %v2312, 120
        %v2349 = vpop.permute.xlu0 %2348
        %2350 = vrot.lane.b32.xlu0 %v2313, 120
        %v2351 = vpop.permute.xlu0 %2350
        %2352 = vrot.lane.b32.xlu0 %v2314, 120
        %v2353 = vpop.permute.xlu0 %2352
        %2354 = vrot.lane.b32.xlu0 %v2315, 120
        %v2355 = vpop.permute.xlu0 %2354
        %2356 = vrot.lane.b32.xlu0 %v2316, 120
        %v2357 = vpop.permute.xlu0 %2356
        %2358 = vrot.lane.b32.xlu0 %v2317, 120
        %v2359 = vpop.permute.xlu0 %2358
        %2360 = vrot.lane.b32.xlu0 %v2318, 120
        %v2361 = vpop.permute.xlu0 %2360
        %2362 = vrot.lane.b32.xlu0 %v2319, 120
        %v2363 = vpop.permute.xlu0 %2362
        %2364 = vrot.lane.b32.xlu0 %v2320, 120
        %v2365 = vpop.permute.xlu0 %2364
        %2366 = vrot.lane.b32.xlu0 %v2321, 120
        %v2367 = vpop.permute.xlu0 %2366
        %2368 = vrot.lane.b32.xlu0 %v2322, 120
        %v2369 = vpop.permute.xlu0 %2368
        %2370 = vrot.lane.b32.xlu0 %v2323, 120
        %v2371 = vpop.permute.xlu0 %2370
        %v2388 = vmul.f32 %v2277, %v2341
        %v2389 = vmul.f32 %v2279, %v2343
        %v2390 = vmul.f32 %v2281, %v2345
        %v2391 = vmul.f32 %v2283, %v2347
        %v2392 = vmul.f32 %v2285, %v2349
        %v2393 = vmul.f32 %v2287, %v2351
        %v2394 = vmul.f32 %v2289, %v2353
        %v2395 = vmul.f32 %v2291, %v2355
        %v2396 = vmul.f32 %v2293, %v2357
        %v2397 = vmul.f32 %v2295, %v2359
        %v2398 = vmul.f32 %v2297, %v2361
        %v2399 = vmul.f32 %v2299, %v2363
        %v2400 = vmul.f32 %v2301, %v2365
        %v2401 = vmul.f32 %v2303, %v2367
        %v2402 = vmul.f32 %v2305, %v2369
        %v2403 = vmul.f32 %v2307, %v2371
        %v2404 = vld [vmem:[%s442] sm:$0xff]
        %v2405 = vld [vmem:[%s445] sm:$0x1]
        %v2407 = vlaneseq
        %v2408 = vshrl.u32 %v2407, 7
        %v2409 = vsub.s32 0, %v2408
        %v2410 = vrot.slane %v2405, %v2409
        %v2413 = vsel %vm561, %v2388, 0
        %v2416 = vsel %vm561, %v2389, 0
        %v2419 = vsel %vm561, %v2390, 0
        %v2422 = vsel %vm561, %v2391, 0
        %v2425 = vsel %vm561, %v2392, 0
        %v2428 = vsel %vm561, %v2393, 0
        %v2431 = vsel %vm561, %v2394, 0
        %v2434 = vsel %vm561, %v2395, 0
        %v2437 = vsel %vm561, %v2396, 0
        %v2440 = vsel %vm561, %v2397, 0
        %v2443 = vsel %vm561, %v2398, 0
        %v2446 = vsel %vm561, %v2399, 0
        %v2449 = vsel %vm561, %v2400, 0
        %v2452 = vsel %vm561, %v2401, 0
        %v2455 = vsel %vm561, %v2402, 0
        %v2458 = vsel %vm561, %v2403, 0
        %2460 = vmatprep.subr.mxu0 0.0
        %2461 = vmatpush1.msra.mxu0 0.0
        %2462 = vmatprep.subr.mxu0 0.0
        %2463 = vmatpush1.msra.mxu0 0.0
        %2464 = vmatprep.subr.mxu0 0.0
        %2465 = vmatpush1.msra.mxu0 0.0
        %2466 = vmatprep.subr.mxu0 0.0
        %2467 = vmatpush1.msra.mxu0 0.0
        %2468 = vmatprep.subr.mxu0 0.0
        %2469 = vmatpush1.msra.mxu0 0.0
        %2470 = vmatprep.subr.mxu0 0.0
        %2471 = vmatpush1.msra.mxu0 0.0
        %2472 = vmatprep.subr.mxu0 0.0
        %2473 = vmatpush1.msra.mxu0 0.0
        %2474 = vmatprep.subr.mxu0 0.0
        %2475 = vmatpush1.msra.mxu0 0.0
        %2476 = vmatprep.subr.mxu0 0.0
        %2477 = vmatpush1.msra.mxu0 0.0
        %2478 = vmatprep.subr.mxu0 0.0
        %2479 = vmatpush1.msra.mxu0 0.0
        %2480 = vmatprep.subr.mxu0 0.0
        %2481 = vmatpush1.msra.mxu0 0.0
        %2482 = vmatprep.subr.mxu0 0.0
        %2483 = vmatpush1.msra.mxu0 0.0
        %2484 = vmatprep.subr.mxu0 0.0
        %2485 = vmatpush1.msra.mxu0 0.0
        %2486 = vmatprep.subr.mxu0 0.0
        %2487 = vmatpush1.msra.mxu0 0.0
        %2488 = vmatprep.subr.mxu0 0.0
        %2489 = vmatpush1.msra.mxu0 0.0
        %2490 = vmatprep.subr.mxu0 0.0
        %2491 = vmatpush1.msra.mxu0 %v2404
        %2492 = vmatprep.subr.mxu0 0.0
        %2493 = vmatpush2.msra.mxu0 0.0
        %2494 = vmatprep.subr.mxu0 0.0
        %2495 = vmatpush2.msra.mxu0 0.0
        %2496 = vmatprep.subr.mxu0 0.0
        %2497 = vmatpush2.msra.mxu0 0.0
        %2498 = vmatprep.subr.mxu0 0.0
        %2499 = vmatpush2.msra.mxu0 0.0
        %2500 = vmatprep.subr.mxu0 0.0
        %2501 = vmatpush2.msra.mxu0 0.0
        %2502 = vmatprep.subr.mxu0 0.0
        %2503 = vmatpush2.msra.mxu0 0.0
        %2504 = vmatprep.subr.mxu0 0.0
        %2505 = vmatpush2.msra.mxu0 0.0
        %2506 = vmatprep.subr.mxu0 0.0
        %2507 = vmatpush2.msra.mxu0 0.0
        %2508 = vmatprep.subr.mxu0 0.0
        %2509 = vmatpush2.msra.mxu0 0.0
        %2510 = vmatprep.subr.mxu0 0.0
        %2511 = vmatpush2.msra.mxu0 0.0
        %2512 = vmatprep.subr.mxu0 0.0
        %2513 = vmatpush2.msra.mxu0 0.0
        %2514 = vmatprep.subr.mxu0 0.0
        %2515 = vmatpush2.msra.mxu0 0.0
        %2516 = vmatprep.subr.mxu0 0.0
        %2517 = vmatpush2.msra.mxu0 0.0
        %2518 = vmatprep.subr.mxu0 0.0
        %2519 = vmatpush2.msra.mxu0 0.0
        %2520 = vmatprep.subr.mxu0 0.0
        %2521 = vmatpush2.msra.mxu0 0.0
        %2522 = vmatprep.subr.mxu0 0.0
        %2523 = vmatpush2.msra.mxu0 0.0
        %2524 = vmatprep.mubr.f32.mxu0 0.0
        %2525 = vmatmul.mubr.f32.gmra.mxu0 %v2413
        %v2526 = vpop.f32.mrf.mxu0
        %v2527 = vadd.f32 %v2410, %v2526
        %v2528 = vpop.f32.mrf.mxu0
        %2529 = vmatprep.mubr.f32.mxu0 0.0
        %2530 = vmatmul.mubr.f32.gmra.mxu0 %v2416
        %v2531 = vpop.f32.mrf.mxu0
        %v2532 = vadd.f32 %v2410, %v2531
        %v2533 = vpop.f32.mrf.mxu0
        %2534 = vmatprep.mubr.f32.mxu0 0.0
        %2535 = vmatmul.mubr.f32.gmra.mxu0 %v2419
        %v2536 = vpop.f32.mrf.mxu0
        %v2537 = vadd.f32 %v2410, %v2536
        %v2538 = vpop.f32.mrf.mxu0
        %2539 = vmatprep.mubr.f32.mxu0 0.0
        %2540 = vmatmul.mubr.f32.gmra.mxu0 %v2422
        %v2541 = vpop.f32.mrf.mxu0
        %v2542 = vadd.f32 %v2410, %v2541
        %v2543 = vpop.f32.mrf.mxu0
        %2544 = vmatprep.mubr.f32.mxu0 0.0
        %2545 = vmatmul.mubr.f32.gmra.mxu0 %v2425
        %v2546 = vpop.f32.mrf.mxu0
        %v2547 = vadd.f32 %v2410, %v2546
        %v2548 = vpop.f32.mrf.mxu0
        %2549 = vmatprep.mubr.f32.mxu0 0.0
        %2550 = vmatmul.mubr.f32.gmra.mxu0 %v2428
        %v2551 = vpop.f32.mrf.mxu0
        %v2552 = vadd.f32 %v2410, %v2551
        %v2553 = vpop.f32.mrf.mxu0
        %2554 = vmatprep.mubr.f32.mxu0 0.0
        %2555 = vmatmul.mubr.f32.gmra.mxu0 %v2431
        %v2556 = vpop.f32.mrf.mxu0
        %v2557 = vadd.f32 %v2410, %v2556
        %v2558 = vpop.f32.mrf.mxu0
        %2559 = vmatprep.mubr.f32.mxu0 0.0
        %2560 = vmatmul.mubr.f32.gmra.mxu0 %v2434
        %v2561 = vpop.f32.mrf.mxu0
        %v2562 = vadd.f32 %v2410, %v2561
        %v2563 = vpop.f32.mrf.mxu0
        %2564 = vmatprep.mubr.f32.mxu0 0.0
        %2565 = vmatmul.mubr.f32.gmra.mxu0 %v2437
        %v2566 = vpop.f32.mrf.mxu0
        %v2567 = vadd.f32 %v2410, %v2566
        %v2568 = vpop.f32.mrf.mxu0
        %2569 = vmatprep.mubr.f32.mxu0 0.0
        %2570 = vmatmul.mubr.f32.gmra.mxu0 %v2440
        %v2571 = vpop.f32.mrf.mxu0
        %v2572 = vadd.f32 %v2410, %v2571
        %v2573 = vpop.f32.mrf.mxu0
        %2574 = vmatprep.mubr.f32.mxu0 0.0
        %2575 = vmatmul.mubr.f32.gmra.mxu0 %v2443
        %v2576 = vpop.f32.mrf.mxu0
        %v2577 = vadd.f32 %v2410, %v2576
        %v2578 = vpop.f32.mrf.mxu0
        %2579 = vmatprep.mubr.f32.mxu0 0.0
        %2580 = vmatmul.mubr.f32.gmra.mxu0 %v2446
        %v2581 = vpop.f32.mrf.mxu0
        %v2582 = vadd.f32 %v2410, %v2581
        %v2583 = vpop.f32.mrf.mxu0
        %2584 = vmatprep.mubr.f32.mxu0 0.0
        %2585 = vmatmul.mubr.f32.gmra.mxu0 %v2449
        %v2586 = vpop.f32.mrf.mxu0
        %v2587 = vadd.f32 %v2410, %v2586
        %v2588 = vpop.f32.mrf.mxu0
        %2589 = vmatprep.mubr.f32.mxu0 0.0
        %2590 = vmatmul.mubr.f32.gmra.mxu0 %v2452
        %v2591 = vpop.f32.mrf.mxu0
        %v2592 = vadd.f32 %v2410, %v2591
        %v2593 = vpop.f32.mrf.mxu0
        %2594 = vmatprep.mubr.f32.mxu0 0.0
        %2595 = vmatmul.mubr.f32.gmra.mxu0 %v2455
        %v2596 = vpop.f32.mrf.mxu0
        %v2597 = vadd.f32 %v2410, %v2596
        %v2598 = vpop.f32.mrf.mxu0
        %2599 = vmatprep.mubr.f32.mxu0 0.0
        %2600 = vmatmul.mubr.f32.gmra.mxu0 %v2458
        %v2601 = vpop.f32.mrf.mxu0
        %v2602 = vadd.f32 %v2410, %v2601
        %v2603 = vpop.f32.mrf.mxu0
        %2604 = vdwg.mxu0
        %v2605 = vld [vmem:[#allocation2] sm:$0xff]
        %v2606 = vld [vmem:[#allocation2 + $0x8] sm:$0xff]
        %v2607 = vld [vmem:[#allocation2 + $0x10] sm:$0xff]
        %v2608 = vld [vmem:[#allocation2 + $0x18] sm:$0xff]
        %v2609 = vld [vmem:[#allocation2 + $0x20] sm:$0xff]
        %v2610 = vld [vmem:[#allocation2 + $0x28] sm:$0xff]
        %v2611 = vld [vmem:[#allocation2 + $0x30] sm:$0xff]
        %v2612 = vld [vmem:[#allocation2 + $0x38] sm:$0xff]
        %v2613 = vld [vmem:[#allocation2 + $0x40] sm:$0xff]
        %v2614 = vld [vmem:[#allocation2 + $0x48] sm:$0xff]
        %v2615 = vld [vmem:[#allocation2 + $0x50] sm:$0xff]
        %v2616 = vld [vmem:[#allocation2 + $0x58] sm:$0xff]
        %v2617 = vld [vmem:[#allocation2 + $0x60] sm:$0xff]
        %v2618 = vld [vmem:[#allocation2 + $0x68] sm:$0xff]
        %v2619 = vld [vmem:[#allocation2 + $0x70] sm:$0xff]
        %v2620 = vld [vmem:[#allocation2 + $0x78] sm:$0xff]
        %v2621 = vadd.f32 %v2605, %v2527
        %v2622 = vadd.f32 %v2606, %v2532
        %v2623 = vadd.f32 %v2607, %v2537
        %v2624 = vadd.f32 %v2608, %v2542
        %v2625 = vadd.f32 %v2609, %v2547
        %v2626 = vadd.f32 %v2610, %v2552
        %v2627 = vadd.f32 %v2611, %v2557
        %v2628 = vadd.f32 %v2612, %v2562
        %v2629 = vadd.f32 %v2613, %v2567
        %v2630 = vadd.f32 %v2614, %v2572
        %v2631 = vadd.f32 %v2615, %v2577
        %v2632 = vadd.f32 %v2616, %v2582
        %v2633 = vadd.f32 %v2617, %v2587
        %v2634 = vadd.f32 %v2618, %v2592
        %v2635 = vadd.f32 %v2619, %v2597
        %v2636 = vadd.f32 %v2620, %v2602
        %v2637 = vmul.f32 %v2621, 0.70710677
        %v2638 = vmul.f32 %v2622, 0.70710677
        %v2639 = vmul.f32 %v2623, 0.70710677
        %v2640 = vmul.f32 %v2624, 0.70710677
        %v2641 = vmul.f32 %v2625, 0.70710677
        %v2642 = vmul.f32 %v2626, 0.70710677
        %v2643 = vmul.f32 %v2627, 0.70710677
        %v2644 = vmul.f32 %v2628, 0.70710677
        %v2645 = vmul.f32 %v2629, 0.70710677
        %v2646 = vmul.f32 %v2630, 0.70710677
        %v2647 = vmul.f32 %v2631, 0.70710677
        %v2648 = vmul.f32 %v2632, 0.70710677
        %v2649 = vmul.f32 %v2633, 0.70710677
        %v2650 = vmul.f32 %v2634, 0.70710677
        %v2651 = vmul.f32 %v2635, 0.70710677
        %v2652 = vmul.f32 %v2636, 0.70710677
        %2653 = vst.msk [vmem:[#allocation2] sm:$0xff] %vm561, %v2637
        %2654 = vst.msk [vmem:[#allocation2 + $0x8] sm:$0xff] %vm561, %v2638
        %2655 = vst.msk [vmem:[#allocation2 + $0x10] sm:$0xff] %vm561, %v2639
        %2656 = vst.msk [vmem:[#allocation2 + $0x18] sm:$0xff] %vm561, %v2640
        %2657 = vst.msk [vmem:[#allocation2 + $0x20] sm:$0xff] %vm561, %v2641
        %2658 = vst.msk [vmem:[#allocation2 + $0x28] sm:$0xff] %vm561, %v2642
        %2659 = vst.msk [vmem:[#allocation2 + $0x30] sm:$0xff] %vm561, %v2643
        %2660 = vst.msk [vmem:[#allocation2 + $0x38] sm:$0xff] %vm561, %v2644
        %2661 = vst.msk [vmem:[#allocation2 + $0x40] sm:$0xff] %vm561, %v2645
        %2662 = vst.msk [vmem:[#allocation2 + $0x48] sm:$0xff] %vm561, %v2646
        %2663 = vst.msk [vmem:[#allocation2 + $0x50] sm:$0xff] %vm561, %v2647
        %2664 = vst.msk [vmem:[#allocation2 + $0x58] sm:$0xff] %vm561, %v2648
        %2665 = vst.msk [vmem:[#allocation2 + $0x60] sm:$0xff] %vm561, %v2649
        %2666 = vst.msk [vmem:[#allocation2 + $0x68] sm:$0xff] %vm561, %v2650
        %2667 = vst.msk [vmem:[#allocation2 + $0x70] sm:$0xff] %vm561, %v2651
        %2668 = vst.msk [vmem:[#allocation2 + $0x78] sm:$0xff] %vm561, %v2652
        %v2669 = vld [vmem:[%s450] sm:$0xff]
        %v2670 = vld [vmem:[%s450 + $0x8] sm:$0xff]
        %v2671 = vld [vmem:[%s450 + $0x10] sm:$0xff]
        %v2672 = vld [vmem:[%s450 + $0x18] sm:$0xff]
        %v2673 = vld [vmem:[%s450 + $0x20] sm:$0xff]
        %v2674 = vld [vmem:[%s450 + $0x28] sm:$0xff]
        %v2675 = vld [vmem:[%s450 + $0x30] sm:$0xff]
        %v2676 = vld [vmem:[%s450 + $0x38] sm:$0xff]
        %v2677 = vld [vmem:[%s450 + $0x40] sm:$0xff]
        %v2678 = vld [vmem:[%s450 + $0x48] sm:$0xff]
        %v2679 = vld [vmem:[%s450 + $0x50] sm:$0xff]
        %v2680 = vld [vmem:[%s450 + $0x58] sm:$0xff]
        %v2681 = vld [vmem:[%s450 + $0x60] sm:$0xff]
        %v2682 = vld [vmem:[%s450 + $0x68] sm:$0xff]
        %v2683 = vld [vmem:[%s450 + $0x70] sm:$0xff]
        %v2684 = vld [vmem:[%s450 + $0x78] sm:$0xff]
        %2701 = vrot.lane.b32.xlu0 %v2527, 120
        %v2702 = vpop.permute.xlu0 %2701
        %2703 = vrot.lane.b32.xlu0 %v2532, 120
        %v2704 = vpop.permute.xlu0 %2703
        %2705 = vrot.lane.b32.xlu0 %v2537, 120
        %v2706 = vpop.permute.xlu0 %2705
        %2707 = vrot.lane.b32.xlu0 %v2542, 120
        %v2708 = vpop.permute.xlu0 %2707
        %2709 = vrot.lane.b32.xlu0 %v2547, 120
        %v2710 = vpop.permute.xlu0 %2709
        %2711 = vrot.lane.b32.xlu0 %v2552, 120
        %v2712 = vpop.permute.xlu0 %2711
        %2713 = vrot.lane.b32.xlu0 %v2557, 120
        %v2714 = vpop.permute.xlu0 %2713
        %2715 = vrot.lane.b32.xlu0 %v2562, 120
        %v2716 = vpop.permute.xlu0 %2715
        %2717 = vrot.lane.b32.xlu0 %v2567, 120
        %v2718 = vpop.permute.xlu0 %2717
        %2719 = vrot.lane.b32.xlu0 %v2572, 120
        %v2720 = vpop.permute.xlu0 %2719
        %2721 = vrot.lane.b32.xlu0 %v2577, 120
        %v2722 = vpop.permute.xlu0 %2721
        %2723 = vrot.lane.b32.xlu0 %v2582, 120
        %v2724 = vpop.permute.xlu0 %2723
        %2725 = vrot.lane.b32.xlu0 %v2587, 120
        %v2726 = vpop.permute.xlu0 %2725
        %2727 = vrot.lane.b32.xlu0 %v2592, 120
        %v2728 = vpop.permute.xlu0 %2727
        %2729 = vrot.lane.b32.xlu0 %v2597, 120
        %v2730 = vpop.permute.xlu0 %2729
        %2731 = vrot.lane.b32.xlu0 %v2602, 120
        %v2732 = vpop.permute.xlu0 %2731
        %v2749 = vadd.f32 %v2669, %v2702
        %v2750 = vadd.f32 %v2670, %v2704
        %v2751 = vadd.f32 %v2671, %v2706
        %v2752 = vadd.f32 %v2672, %v2708
        %v2753 = vadd.f32 %v2673, %v2710
        %v2754 = vadd.f32 %v2674, %v2712
        %v2755 = vadd.f32 %v2675, %v2714
        %v2756 = vadd.f32 %v2676, %v2716
        %v2757 = vadd.f32 %v2677, %v2718
        %v2758 = vadd.f32 %v2678, %v2720
        %v2759 = vadd.f32 %v2679, %v2722
        %v2760 = vadd.f32 %v2680, %v2724
        %v2761 = vadd.f32 %v2681, %v2726
        %v2762 = vadd.f32 %v2682, %v2728
        %v2763 = vadd.f32 %v2683, %v2730
        %v2764 = vadd.f32 %v2684, %v2732
        %2765 = vst.msk [vmem:[%s450] sm:$0xff] %vm561, %v2749
        %2766 = vst.msk [vmem:[%s450 + $0x8] sm:$0xff] %vm561, %v2750
        %2767 = vst.msk [vmem:[%s450 + $0x10] sm:$0xff] %vm561, %v2751
        %2768 = vst.msk [vmem:[%s450 + $0x18] sm:$0xff] %vm561, %v2752
        %2769 = vst.msk [vmem:[%s450 + $0x20] sm:$0xff] %vm561, %v2753
        %2770 = vst.msk [vmem:[%s450 + $0x28] sm:$0xff] %vm561, %v2754
        %2771 = vst.msk [vmem:[%s450 + $0x30] sm:$0xff] %vm561, %v2755
        %2772 = vst.msk [vmem:[%s450 + $0x38] sm:$0xff] %vm561, %v2756
        %2773 = vst.msk [vmem:[%s450 + $0x40] sm:$0xff] %vm561, %v2757
        %2774 = vst.msk [vmem:[%s450 + $0x48] sm:$0xff] %vm561, %v2758
        %2775 = vst.msk [vmem:[%s450 + $0x50] sm:$0xff] %vm561, %v2759
        %2776 = vst.msk [vmem:[%s450 + $0x58] sm:$0xff] %vm561, %v2760
        %2777 = vst.msk [vmem:[%s450 + $0x60] sm:$0xff] %vm561, %v2761
        %2778 = vst.msk [vmem:[%s450 + $0x68] sm:$0xff] %vm561, %v2762
        %2779 = vst.msk [vmem:[%s450 + $0x70] sm:$0xff] %vm561, %v2763
        %2780 = vst.msk [vmem:[%s450 + $0x78] sm:$0xff] %vm561, %v2764
      $region60: #{tpu_custom_call.1} parent=51 // pred_fallthru
        _
      %p2781 = scmp.eq.s32.totalorder %s589, 1
      // Predicated region
      $region61: #{tpu_custom_call.1} parent=51 // pred_check
        %p2782 = pneg %p2781
      $region62: #{tpu_custom_call.1} parent=51 // pred_check_branch
        %2784 = sbr.rel (%p2782) target = $region64
      $region63: #{tpu_custom_call.1} parent=51 // pred_region
        %v2785 = vld [vmem:[#allocation3 + $0x2] sm:$0xff]
        %v2786 = vld [vmem:[#allocation3 + $0xa] sm:$0xff]
        %v2787 = vld [vmem:[#allocation3 + $0x12] sm:$0xff]
        %v2788 = vld [vmem:[#allocation3 + $0x1a] sm:$0xff]
        %v2789 = vld [vmem:[#allocation3 + $0x22] sm:$0xff]
        %v2790 = vld [vmem:[#allocation3 + $0x2a] sm:$0xff]
        %v2791 = vld [vmem:[#allocation3 + $0x32] sm:$0xff]
        %v2792 = vld [vmem:[#allocation3 + $0x3a] sm:$0xff]
        %v2793 = vld [vmem:[#allocation3 + $0x42] sm:$0xff]
        %v2794 = vld [vmem:[#allocation3 + $0x4a] sm:$0xff]
        %v2795 = vld [vmem:[#allocation3 + $0x52] sm:$0xff]
        %v2796 = vld [vmem:[#allocation3 + $0x5a] sm:$0xff]
        %v2797 = vld [vmem:[#allocation3 + $0x62] sm:$0xff]
        %v2798 = vld [vmem:[#allocation3 + $0x6a] sm:$0xff]
        %v2799 = vld [vmem:[#allocation3 + $0x72] sm:$0xff]
        %v2800 = vld [vmem:[#allocation3 + $0x7a] sm:$0xff]
        %v2801 = vld [vmem:[#allocation3 + $0x4] sm:$0xff]
        %v2802 = vld [vmem:[#allocation3 + $0xc] sm:$0xff]
        %v2803 = vld [vmem:[#allocation3 + $0x14] sm:$0xff]
        %v2804 = vld [vmem:[#allocation3 + $0x1c] sm:$0xff]
        %v2805 = vld [vmem:[#allocation3 + $0x24] sm:$0xff]
        %v2806 = vld [vmem:[#allocation3 + $0x2c] sm:$0xff]
        %v2807 = vld [vmem:[#allocation3 + $0x34] sm:$0xff]
        %v2808 = vld [vmem:[#allocation3 + $0x3c] sm:$0xff]
        %v2809 = vld [vmem:[#allocation3 + $0x44] sm:$0xff]
        %v2810 = vld [vmem:[#allocation3 + $0x4c] sm:$0xff]
        %v2811 = vld [vmem:[#allocation3 + $0x54] sm:$0xff]
        %v2812 = vld [vmem:[#allocation3 + $0x5c] sm:$0xff]
        %v2813 = vld [vmem:[#allocation3 + $0x64] sm:$0xff]
        %v2814 = vld [vmem:[#allocation3 + $0x6c] sm:$0xff]
        %v2815 = vld [vmem:[#allocation3 + $0x74] sm:$0xff]
        %v2816 = vld [vmem:[#allocation3 + $0x7c] sm:$0xff]
        %v2817 = vld [vmem:[#allocation3 + $0x6] sm:$0xff]
        %v2818 = vld [vmem:[#allocation3 + $0xe] sm:$0xff]
        %v2819 = vld [vmem:[#allocation3 + $0x16] sm:$0xff]
        %v2820 = vld [vmem:[#allocation3 + $0x1e] sm:$0xff]
        %v2821 = vld [vmem:[#allocation3 + $0x26] sm:$0xff]
        %v2822 = vld [vmem:[#allocation3 + $0x2e] sm:$0xff]
        %v2823 = vld [vmem:[#allocation3 + $0x36] sm:$0xff]
        %v2824 = vld [vmem:[#allocation3 + $0x3e] sm:$0xff]
        %v2825 = vld [vmem:[#allocation3 + $0x46] sm:$0xff]
        %v2826 = vld [vmem:[#allocation3 + $0x4e] sm:$0xff]
        %v2827 = vld [vmem:[#allocation3 + $0x56] sm:$0xff]
        %v2828 = vld [vmem:[#allocation3 + $0x5e] sm:$0xff]
        %v2829 = vld [vmem:[#allocation3 + $0x66] sm:$0xff]
        %v2830 = vld [vmem:[#allocation3 + $0x6e] sm:$0xff]
        %v2831 = vld [vmem:[#allocation3 + $0x76] sm:$0xff]
        %v2832 = vld [vmem:[#allocation3 + $0x7e] sm:$0xff]
        %v2833 = vld [vmem:[#allocation3 + $0x8] sm:$0xff]
        %v2834 = vld [vmem:[#allocation3 + $0x10] sm:$0xff]
        %v2835 = vld [vmem:[#allocation3 + $0x18] sm:$0xff]
        %v2836 = vld [vmem:[#allocation3 + $0x20] sm:$0xff]
        %v2837 = vld [vmem:[#allocation3 + $0x28] sm:$0xff]
        %v2838 = vld [vmem:[#allocation3 + $0x30] sm:$0xff]
        %v2839 = vld [vmem:[#allocation3 + $0x38] sm:$0xff]
        %v2840 = vld [vmem:[#allocation3 + $0x40] sm:$0xff]
        %v2841 = vld [vmem:[#allocation3 + $0x48] sm:$0xff]
        %v2842 = vld [vmem:[#allocation3 + $0x50] sm:$0xff]
        %v2843 = vld [vmem:[#allocation3 + $0x58] sm:$0xff]
        %v2844 = vld [vmem:[#allocation3 + $0x60] sm:$0xff]
        %v2845 = vld [vmem:[#allocation3 + $0x68] sm:$0xff]
        %v2846 = vld [vmem:[#allocation3 + $0x70] sm:$0xff]
        %v2847 = vld [vmem:[#allocation3 + $0x78] sm:$0xff]
        %v2848 = vld [vmem:[#allocation3 + $0x80] sm:$0xff]
        %v2849 = vld [vmem:[#allocation3 + $0x82] sm:$0xff]
        %v2850 = vld [vmem:[#allocation3 + $0x84] sm:$0xff]
        %v2851 = vld [vmem:[#allocation3 + $0x86] sm:$0xff]
        %2868 = vrot.lane.b32.xlu0 %v2801, 8
        %v2869 = vpop.permute.xlu0 %2868
        %2870 = vrot.lane.b32.xlu0 %v2802, 8
        %v2871 = vpop.permute.xlu0 %2870
        %2872 = vrot.lane.b32.xlu0 %v2803, 8
        %v2873 = vpop.permute.xlu0 %2872
        %2874 = vrot.lane.b32.xlu0 %v2804, 8
        %v2875 = vpop.permute.xlu0 %2874
        %2876 = vrot.lane.b32.xlu0 %v2805, 8
        %v2877 = vpop.permute.xlu0 %2876
        %2878 = vrot.lane.b32.xlu0 %v2806, 8
        %v2879 = vpop.permute.xlu0 %2878
        %2880 = vrot.lane.b32.xlu0 %v2807, 8
        %v2881 = vpop.permute.xlu0 %2880
        %2882 = vrot.lane.b32.xlu0 %v2808, 8
        %v2883 = vpop.permute.xlu0 %2882
        %2884 = vrot.lane.b32.xlu0 %v2809, 8
        %v2885 = vpop.permute.xlu0 %2884
        %2886 = vrot.lane.b32.xlu0 %v2810, 8
        %v2887 = vpop.permute.xlu0 %2886
        %2888 = vrot.lane.b32.xlu0 %v2811, 8
        %v2889 = vpop.permute.xlu0 %2888
        %2890 = vrot.lane.b32.xlu0 %v2812, 8
        %v2891 = vpop.permute.xlu0 %2890
        %2892 = vrot.lane.b32.xlu0 %v2813, 8
        %v2893 = vpop.permute.xlu0 %2892
        %2894 = vrot.lane.b32.xlu0 %v2814, 8
        %v2895 = vpop.permute.xlu0 %2894
        %2896 = vrot.lane.b32.xlu0 %v2815, 8
        %v2897 = vpop.permute.xlu0 %2896
        %2898 = vrot.lane.b32.xlu0 %v2816, 8
        %v2899 = vpop.permute.xlu0 %2898
        %2932 = vrot.lane.b32.xlu0 %v2817, 16
        %v2933 = vpop.permute.xlu0 %2932
        %2934 = vrot.lane.b32.xlu0 %v2818, 16
        %v2935 = vpop.permute.xlu0 %2934
        %2936 = vrot.lane.b32.xlu0 %v2819, 16
        %v2937 = vpop.permute.xlu0 %2936
        %2938 = vrot.lane.b32.xlu0 %v2820, 16
        %v2939 = vpop.permute.xlu0 %2938
        %2940 = vrot.lane.b32.xlu0 %v2821, 16
        %v2941 = vpop.permute.xlu0 %2940
        %2942 = vrot.lane.b32.xlu0 %v2822, 16
        %v2943 = vpop.permute.xlu0 %2942
        %2944 = vrot.lane.b32.xlu0 %v2823, 16
        %v2945 = vpop.permute.xlu0 %2944
        %2946 = vrot.lane.b32.xlu0 %v2824, 16
        %v2947 = vpop.permute.xlu0 %2946
        %2948 = vrot.lane.b32.xlu0 %v2825, 16
        %v2949 = vpop.permute.xlu0 %2948
        %2950 = vrot.lane.b32.xlu0 %v2826, 16
        %v2951 = vpop.permute.xlu0 %2950
        %2952 = vrot.lane.b32.xlu0 %v2827, 16
        %v2953 = vpop.permute.xlu0 %2952
        %2954 = vrot.lane.b32.xlu0 %v2828, 16
        %v2955 = vpop.permute.xlu0 %2954
        %2956 = vrot.lane.b32.xlu0 %v2829, 16
        %v2957 = vpop.permute.xlu0 %2956
        %2958 = vrot.lane.b32.xlu0 %v2830, 16
        %v2959 = vpop.permute.xlu0 %2958
        %2960 = vrot.lane.b32.xlu0 %v2831, 16
        %v2961 = vpop.permute.xlu0 %2960
        %2962 = vrot.lane.b32.xlu0 %v2832, 16
        %v2963 = vpop.permute.xlu0 %2962
        %2996 = vrot.lane.b32.xlu0 %v2833, 24
        %v2997 = vpop.permute.xlu0 %2996
        %2998 = vrot.lane.b32.xlu0 %v2834, 24
        %v2999 = vpop.permute.xlu0 %2998
        %3000 = vrot.lane.b32.xlu0 %v2835, 24
        %v3001 = vpop.permute.xlu0 %3000
        %3002 = vrot.lane.b32.xlu0 %v2836, 24
        %v3003 = vpop.permute.xlu0 %3002
        %3004 = vrot.lane.b32.xlu0 %v2837, 24
        %v3005 = vpop.permute.xlu0 %3004
        %3006 = vrot.lane.b32.xlu0 %v2838, 24
        %v3007 = vpop.permute.xlu0 %3006
        %3008 = vrot.lane.b32.xlu0 %v2839, 24
        %v3009 = vpop.permute.xlu0 %3008
        %3010 = vrot.lane.b32.xlu0 %v2840, 24
        %v3011 = vpop.permute.xlu0 %3010
        %3012 = vrot.lane.b32.xlu0 %v2841, 24
        %v3013 = vpop.permute.xlu0 %3012
        %3014 = vrot.lane.b32.xlu0 %v2842, 24
        %v3015 = vpop.permute.xlu0 %3014
        %3016 = vrot.lane.b32.xlu0 %v2843, 24
        %v3017 = vpop.permute.xlu0 %3016
        %3018 = vrot.lane.b32.xlu0 %v2844, 24
        %v3019 = vpop.permute.xlu0 %3018
        %3020 = vrot.lane.b32.xlu0 %v2845, 24
        %v3021 = vpop.permute.xlu0 %3020
        %3022 = vrot.lane.b32.xlu0 %v2846, 24
        %v3023 = vpop.permute.xlu0 %3022
        %3024 = vrot.lane.b32.xlu0 %v2847, 24
        %v3025 = vpop.permute.xlu0 %3024
        %3026 = vrot.lane.b32.xlu0 %v2848, 24
        %v3027 = vpop.permute.xlu0 %3026
        %3060 = vrot.lane.b32.xlu0 %v2786, 32
        %v3061 = vpop.permute.xlu0 %3060
        %3062 = vrot.lane.b32.xlu0 %v2787, 32
        %v3063 = vpop.permute.xlu0 %3062
        %3064 = vrot.lane.b32.xlu0 %v2788, 32
        %v3065 = vpop.permute.xlu0 %3064
        %3066 = vrot.lane.b32.xlu0 %v2789, 32
        %v3067 = vpop.permute.xlu0 %3066
        %3068 = vrot.lane.b32.xlu0 %v2790, 32
        %v3069 = vpop.permute.xlu0 %3068
        %3070 = vrot.lane.b32.xlu0 %v2791, 32
        %v3071 = vpop.permute.xlu0 %3070
        %3072 = vrot.lane.b32.xlu0 %v2792, 32
        %v3073 = vpop.permute.xlu0 %3072
        %3074 = vrot.lane.b32.xlu0 %v2793, 32
        %v3075 = vpop.permute.xlu0 %3074
        %3076 = vrot.lane.b32.xlu0 %v2794, 32
        %v3077 = vpop.permute.xlu0 %3076
        %3078 = vrot.lane.b32.xlu0 %v2795, 32
        %v3079 = vpop.permute.xlu0 %3078
        %3080 = vrot.lane.b32.xlu0 %v2796, 32
        %v3081 = vpop.permute.xlu0 %3080
        %3082 = vrot.lane.b32.xlu0 %v2797, 32
        %v3083 = vpop.permute.xlu0 %3082
        %3084 = vrot.lane.b32.xlu0 %v2798, 32
        %v3085 = vpop.permute.xlu0 %3084
        %3086 = vrot.lane.b32.xlu0 %v2799, 32
        %v3087 = vpop.permute.xlu0 %3086
        %3088 = vrot.lane.b32.xlu0 %v2800, 32
        %v3089 = vpop.permute.xlu0 %3088
        %3090 = vrot.lane.b32.xlu0 %v2849, 32
        %v3091 = vpop.permute.xlu0 %3090
        %3109 = vrot.lane.b32.xlu0 %v2802, 40
        %v3110 = vpop.permute.xlu0 %3109
        %3111 = vrot.lane.b32.xlu0 %v2803, 40
        %v3112 = vpop.permute.xlu0 %3111
        %3113 = vrot.lane.b32.xlu0 %v2804, 40
        %v3114 = vpop.permute.xlu0 %3113
        %3115 = vrot.lane.b32.xlu0 %v2805, 40
        %v3116 = vpop.permute.xlu0 %3115
        %3117 = vrot.lane.b32.xlu0 %v2806, 40
        %v3118 = vpop.permute.xlu0 %3117
        %3119 = vrot.lane.b32.xlu0 %v2807, 40
        %v3120 = vpop.permute.xlu0 %3119
        %3121 = vrot.lane.b32.xlu0 %v2808, 40
        %v3122 = vpop.permute.xlu0 %3121
        %3123 = vrot.lane.b32.xlu0 %v2809, 40
        %v3124 = vpop.permute.xlu0 %3123
        %3125 = vrot.lane.b32.xlu0 %v2810, 40
        %v3126 = vpop.permute.xlu0 %3125
        %3127 = vrot.lane.b32.xlu0 %v2811, 40
        %v3128 = vpop.permute.xlu0 %3127
        %3129 = vrot.lane.b32.xlu0 %v2812, 40
        %v3130 = vpop.permute.xlu0 %3129
        %3131 = vrot.lane.b32.xlu0 %v2813, 40
        %v3132 = vpop.permute.xlu0 %3131
        %3133 = vrot.lane.b32.xlu0 %v2814, 40
        %v3134 = vpop.permute.xlu0 %3133
        %3135 = vrot.lane.b32.xlu0 %v2815, 40
        %v3136 = vpop.permute.xlu0 %3135
        %3137 = vrot.lane.b32.xlu0 %v2816, 40
        %v3138 = vpop.permute.xlu0 %3137
        %3139 = vrot.lane.b32.xlu0 %v2850, 40
        %v3140 = vpop.permute.xlu0 %3139
        %3158 = vrot.lane.b32.xlu0 %v2818, 48
        %v3159 = vpop.permute.xlu0 %3158
        %3160 = vrot.lane.b32.xlu0 %v2819, 48
        %v3161 = vpop.permute.xlu0 %3160
        %3162 = vrot.lane.b32.xlu0 %v2820, 48
        %v3163 = vpop.permute.xlu0 %3162
        %3164 = vrot.lane.b32.xlu0 %v2821, 48
        %v3165 = vpop.permute.xlu0 %3164
        %3166 = vrot.lane.b32.xlu0 %v2822, 48
        %v3167 = vpop.permute.xlu0 %3166
        %3168 = vrot.lane.b32.xlu0 %v2823, 48
        %v3169 = vpop.permute.xlu0 %3168
        %3170 = vrot.lane.b32.xlu0 %v2824, 48
        %v3171 = vpop.permute.xlu0 %3170
        %3172 = vrot.lane.b32.xlu0 %v2825, 48
        %v3173 = vpop.permute.xlu0 %3172
        %3174 = vrot.lane.b32.xlu0 %v2826, 48
        %v3175 = vpop.permute.xlu0 %3174
        %3176 = vrot.lane.b32.xlu0 %v2827, 48
        %v3177 = vpop.permute.xlu0 %3176
        %3178 = vrot.lane.b32.xlu0 %v2828, 48
        %v3179 = vpop.permute.xlu0 %3178
        %3180 = vrot.lane.b32.xlu0 %v2829, 48
        %v3181 = vpop.permute.xlu0 %3180
        %3182 = vrot.lane.b32.xlu0 %v2830, 48
        %v3183 = vpop.permute.xlu0 %3182
        %3184 = vrot.lane.b32.xlu0 %v2831, 48
        %v3185 = vpop.permute.xlu0 %3184
        %3186 = vrot.lane.b32.xlu0 %v2832, 48
        %v3187 = vpop.permute.xlu0 %3186
        %3188 = vrot.lane.b32.xlu0 %v2851, 48
        %v3189 = vpop.permute.xlu0 %3188
        %v3206 = vsel %vm561, %v2785, %v2869
        %v3207 = vsel %vm561, %v2786, %v2871
        %v3208 = vsel %vm561, %v2787, %v2873
        %v3209 = vsel %vm561, %v2788, %v2875
        %v3210 = vsel %vm561, %v2789, %v2877
        %v3211 = vsel %vm561, %v2790, %v2879
        %v3212 = vsel %vm561, %v2791, %v2881
        %v3213 = vsel %vm561, %v2792, %v2883
        %v3214 = vsel %vm561, %v2793, %v2885
        %v3215 = vsel %vm561, %v2794, %v2887
        %v3216 = vsel %vm561, %v2795, %v2889
        %v3217 = vsel %vm561, %v2796, %v2891
        %v3218 = vsel %vm561, %v2797, %v2893
        %v3219 = vsel %vm561, %v2798, %v2895
        %v3220 = vsel %vm561, %v2799, %v2897
        %v3221 = vsel %vm561, %v2800, %v2899
        %vm3222 = vcmask 130048
        %v3223 = vsel %vm3222, %v3206, %v2933
        %v3224 = vsel %vm3222, %v3207, %v2935
        %v3225 = vsel %vm3222, %v3208, %v2937
        %v3226 = vsel %vm3222, %v3209, %v2939
        %v3227 = vsel %vm3222, %v3210, %v2941
        %v3228 = vsel %vm3222, %v3211, %v2943
        %v3229 = vsel %vm3222, %v3212, %v2945
        %v3230 = vsel %vm3222, %v3213, %v2947
        %v3231 = vsel %vm3222, %v3214, %v2949
        %v3232 = vsel %vm3222, %v3215, %v2951
        %v3233 = vsel %vm3222, %v3216, %v2953
        %v3234 = vsel %vm3222, %v3217, %v2955
        %v3235 = vsel %vm3222, %v3218, %v2957
        %v3236 = vsel %vm3222, %v3219, %v2959
        %v3237 = vsel %vm3222, %v3220, %v2961
        %v3238 = vsel %vm3222, %v3221, %v2963
        %vm3239 = vcmask 195584
        %v3240 = vsel %vm3239, %v3223, %v2997
        %v3241 = vsel %vm3239, %v3224, %v2999
        %v3242 = vsel %vm3239, %v3225, %v3001
        %v3243 = vsel %vm3239, %v3226, %v3003
        %v3244 = vsel %vm3239, %v3227, %v3005
        %v3245 = vsel %vm3239, %v3228, %v3007
        %v3246 = vsel %vm3239, %v3229, %v3009
        %v3247 = vsel %vm3239, %v3230, %v3011
        %v3248 = vsel %vm3239, %v3231, %v3013
        %v3249 = vsel %vm3239, %v3232, %v3015
        %v3250 = vsel %vm3239, %v3233, %v3017
        %v3251 = vsel %vm3239, %v3234, %v3019
        %v3252 = vsel %vm3239, %v3235, %v3021
        %v3253 = vsel %vm3239, %v3236, %v3023
        %v3254 = vsel %vm3239, %v3237, %v3025
        %v3255 = vsel %vm3239, %v3238, %v3027
        %vm3256 = vcmask 261120
        %v3257 = vsel %vm3256, %v3240, %v3061
        %v3258 = vsel %vm3256, %v3241, %v3063
        %v3259 = vsel %vm3256, %v3242, %v3065
        %v3260 = vsel %vm3256, %v3243, %v3067
        %v3261 = vsel %vm3256, %v3244, %v3069
        %v3262 = vsel %vm3256, %v3245, %v3071
        %v3263 = vsel %vm3256, %v3246, %v3073
        %v3264 = vsel %vm3256, %v3247, %v3075
        %v3265 = vsel %vm3256, %v3248, %v3077
        %v3266 = vsel %vm3256, %v3249, %v3079
        %v3267 = vsel %vm3256, %v3250, %v3081
        %v3268 = vsel %vm3256, %v3251, %v3083
        %v3269 = vsel %vm3256, %v3252, %v3085
        %v3270 = vsel %vm3256, %v3253, %v3087
        %v3271 = vsel %vm3256, %v3254, %v3089
        %v3272 = vsel %vm3256, %v3255, %v3091
        %vm3273 = vcmask 326656
        %v3274 = vsel %vm3273, %v3257, %v3110
        %v3275 = vsel %vm3273, %v3258, %v3112
        %v3276 = vsel %vm3273, %v3259, %v3114
        %v3277 = vsel %vm3273, %v3260, %v3116
        %v3278 = vsel %vm3273, %v3261, %v3118
        %v3279 = vsel %vm3273, %v3262, %v3120
        %v3280 = vsel %vm3273, %v3263, %v3122
        %v3281 = vsel %vm3273, %v3264, %v3124
        %v3282 = vsel %vm3273, %v3265, %v3126
        %v3283 = vsel %vm3273, %v3266, %v3128
        %v3284 = vsel %vm3273, %v3267, %v3130
        %v3285 = vsel %vm3273, %v3268, %v3132
        %v3286 = vsel %vm3273, %v3269, %v3134
        %v3287 = vsel %vm3273, %v3270, %v3136
        %v3288 = vsel %vm3273, %v3271, %v3138
        %v3289 = vsel %vm3273, %v3272, %v3140
        %vm3290 = vcmask 392192
        %v3291 = vsel %vm3290, %v3274, %v3159
        %v3292 = vsel %vm3290, %v3275, %v3161
        %v3293 = vsel %vm3290, %v3276, %v3163
        %v3294 = vsel %vm3290, %v3277, %v3165
        %v3295 = vsel %vm3290, %v3278, %v3167
        %v3296 = vsel %vm3290, %v3279, %v3169
        %v3297 = vsel %vm3290, %v3280, %v3171
        %v3298 = vsel %vm3290, %v3281, %v3173
        %v3299 = vsel %vm3290, %v3282, %v3175
        %v3300 = vsel %vm3290, %v3283, %v3177
        %v3301 = vsel %vm3290, %v3284, %v3179
        %v3302 = vsel %vm3290, %v3285, %v3181
        %v3303 = vsel %vm3290, %v3286, %v3183
        %v3304 = vsel %vm3290, %v3287, %v3185
        %v3305 = vsel %vm3290, %v3288, %v3187
        %v3306 = vsel %vm3290, %v3289, %v3189
        %v3307 = vld [vmem:[%s418 + $0x2] sm:$0xff]
        %v3308 = vld [vmem:[%s418 + $0xa] sm:$0xff]
        %v3309 = vld [vmem:[%s418 + $0x12] sm:$0xff]
        %v3310 = vld [vmem:[%s418 + $0x1a] sm:$0xff]
        %v3311 = vld [vmem:[%s418 + $0x22] sm:$0xff]
        %v3312 = vld [vmem:[%s418 + $0x2a] sm:$0xff]
        %v3313 = vld [vmem:[%s418 + $0x32] sm:$0xff]
        %v3314 = vld [vmem:[%s418 + $0x3a] sm:$0xff]
        %v3315 = vld [vmem:[%s418 + $0x42] sm:$0xff]
        %v3316 = vld [vmem:[%s418 + $0x4a] sm:$0xff]
        %v3317 = vld [vmem:[%s418 + $0x52] sm:$0xff]
        %v3318 = vld [vmem:[%s418 + $0x5a] sm:$0xff]
        %v3319 = vld [vmem:[%s418 + $0x62] sm:$0xff]
        %v3320 = vld [vmem:[%s418 + $0x6a] sm:$0xff]
        %v3321 = vld [vmem:[%s418 + $0x72] sm:$0xff]
        %v3322 = vld [vmem:[%s418 + $0x7a] sm:$0xff]
        %v3323 = vld [vmem:[%s418 + $0x4] sm:$0xff]
        %v3324 = vld [vmem:[%s418 + $0xc] sm:$0xff]
        %v3325 = vld [vmem:[%s418 + $0x14] sm:$0xff]
        %v3326 = vld [vmem:[%s418 + $0x1c] sm:$0xff]
        %v3327 = vld [vmem:[%s418 + $0x24] sm:$0xff]
        %v3328 = vld [vmem:[%s418 + $0x2c] sm:$0xff]
        %v3329 = vld [vmem:[%s418 + $0x34] sm:$0xff]
        %v3330 = vld [vmem:[%s418 + $0x3c] sm:$0xff]
        %v3331 = vld [vmem:[%s418 + $0x44] sm:$0xff]
        %v3332 = vld [vmem:[%s418 + $0x4c] sm:$0xff]
        %v3333 = vld [vmem:[%s418 + $0x54] sm:$0xff]
        %v3334 = vld [vmem:[%s418 + $0x5c] sm:$0xff]
        %v3335 = vld [vmem:[%s418 + $0x64] sm:$0xff]
        %v3336 = vld [vmem:[%s418 + $0x6c] sm:$0xff]
        %v3337 = vld [vmem:[%s418 + $0x74] sm:$0xff]
        %v3338 = vld [vmem:[%s418 + $0x7c] sm:$0xff]
        %v3339 = vld [vmem:[%s418 + $0x6] sm:$0xff]
        %v3340 = vld [vmem:[%s418 + $0xe] sm:$0xff]
        %v3341 = vld [vmem:[%s418 + $0x16] sm:$0xff]
        %v3342 = vld [vmem:[%s418 + $0x1e] sm:$0xff]
        %v3343 = vld [vmem:[%s418 + $0x26] sm:$0xff]
        %v3344 = vld [vmem:[%s418 + $0x2e] sm:$0xff]
        %v3345 = vld [vmem:[%s418 + $0x36] sm:$0xff]
        %v3346 = vld [vmem:[%s418 + $0x3e] sm:$0xff]
        %v3347 = vld [vmem:[%s418 + $0x46] sm:$0xff]
        %v3348 = vld [vmem:[%s418 + $0x4e] sm:$0xff]
        %v3349 = vld [vmem:[%s418 + $0x56] sm:$0xff]
        %v3350 = vld [vmem:[%s418 + $0x5e] sm:$0xff]
        %v3351 = vld [vmem:[%s418 + $0x66] sm:$0xff]
        %v3352 = vld [vmem:[%s418 + $0x6e] sm:$0xff]
        %v3353 = vld [vmem:[%s418 + $0x76] sm:$0xff]
        %v3354 = vld [vmem:[%s418 + $0x7e] sm:$0xff]
        %v3355 = vld [vmem:[%s418 + $0x8] sm:$0xff]
        %v3356 = vld [vmem:[%s418 + $0x10] sm:$0xff]
        %v3357 = vld [vmem:[%s418 + $0x18] sm:$0xff]
        %v3358 = vld [vmem:[%s418 + $0x20] sm:$0xff]
        %v3359 = vld [vmem:[%s418 + $0x28] sm:$0xff]
        %v3360 = vld [vmem:[%s418 + $0x30] sm:$0xff]
        %v3361 = vld [vmem:[%s418 + $0x38] sm:$0xff]
        %v3362 = vld [vmem:[%s418 + $0x40] sm:$0xff]
        %v3363 = vld [vmem:[%s418 + $0x48] sm:$0xff]
        %v3364 = vld [vmem:[%s418 + $0x50] sm:$0xff]
        %v3365 = vld [vmem:[%s418 + $0x58] sm:$0xff]
        %v3366 = vld [vmem:[%s418 + $0x60] sm:$0xff]
        %v3367 = vld [vmem:[%s418 + $0x68] sm:$0xff]
        %v3368 = vld [vmem:[%s418 + $0x70] sm:$0xff]
        %v3369 = vld [vmem:[%s418 + $0x78] sm:$0xff]
        %v3370 = vld [vmem:[%s418 + $0x80] sm:$0xff]
        %v3371 = vld [vmem:[%s418 + $0x82] sm:$0xff]
        %v3372 = vld [vmem:[%s418 + $0x84] sm:$0xff]
        %v3373 = vld [vmem:[%s418 + $0x86] sm:$0xff]
        %3390 = vrot.lane.b32.xlu0 %v3323, 4
        %v3391 = vpop.permute.xlu0 %3390
        %3392 = vrot.lane.b32.xlu0 %v3324, 4
        %v3393 = vpop.permute.xlu0 %3392
        %3394 = vrot.lane.b32.xlu0 %v3325, 4
        %v3395 = vpop.permute.xlu0 %3394
        %3396 = vrot.lane.b32.xlu0 %v3326, 4
        %v3397 = vpop.permute.xlu0 %3396
        %3398 = vrot.lane.b32.xlu0 %v3327, 4
        %v3399 = vpop.permute.xlu0 %3398
        %3400 = vrot.lane.b32.xlu0 %v3328, 4
        %v3401 = vpop.permute.xlu0 %3400
        %3402 = vrot.lane.b32.xlu0 %v3329, 4
        %v3403 = vpop.permute.xlu0 %3402
        %3404 = vrot.lane.b32.xlu0 %v3330, 4
        %v3405 = vpop.permute.xlu0 %3404
        %3406 = vrot.lane.b32.xlu0 %v3331, 4
        %v3407 = vpop.permute.xlu0 %3406
        %3408 = vrot.lane.b32.xlu0 %v3332, 4
        %v3409 = vpop.permute.xlu0 %3408
        %3410 = vrot.lane.b32.xlu0 %v3333, 4
        %v3411 = vpop.permute.xlu0 %3410
        %3412 = vrot.lane.b32.xlu0 %v3334, 4
        %v3413 = vpop.permute.xlu0 %3412
        %3414 = vrot.lane.b32.xlu0 %v3335, 4
        %v3415 = vpop.permute.xlu0 %3414
        %3416 = vrot.lane.b32.xlu0 %v3336, 4
        %v3417 = vpop.permute.xlu0 %3416
        %3418 = vrot.lane.b32.xlu0 %v3337, 4
        %v3419 = vpop.permute.xlu0 %3418
        %3420 = vrot.lane.b32.xlu0 %v3338, 4
        %v3421 = vpop.permute.xlu0 %3420
        %3454 = vrot.lane.b32.xlu0 %v3339, 8
        %v3455 = vpop.permute.xlu0 %3454
        %3456 = vrot.lane.b32.xlu0 %v3340, 8
        %v3457 = vpop.permute.xlu0 %3456
        %3458 = vrot.lane.b32.xlu0 %v3341, 8
        %v3459 = vpop.permute.xlu0 %3458
        %3460 = vrot.lane.b32.xlu0 %v3342, 8
        %v3461 = vpop.permute.xlu0 %3460
        %3462 = vrot.lane.b32.xlu0 %v3343, 8
        %v3463 = vpop.permute.xlu0 %3462
        %3464 = vrot.lane.b32.xlu0 %v3344, 8
        %v3465 = vpop.permute.xlu0 %3464
        %3466 = vrot.lane.b32.xlu0 %v3345, 8
        %v3467 = vpop.permute.xlu0 %3466
        %3468 = vrot.lane.b32.xlu0 %v3346, 8
        %v3469 = vpop.permute.xlu0 %3468
        %3470 = vrot.lane.b32.xlu0 %v3347, 8
        %v3471 = vpop.permute.xlu0 %3470
        %3472 = vrot.lane.b32.xlu0 %v3348, 8
        %v3473 = vpop.permute.xlu0 %3472
        %3474 = vrot.lane.b32.xlu0 %v3349, 8
        %v3475 = vpop.permute.xlu0 %3474
        %3476 = vrot.lane.b32.xlu0 %v3350, 8
        %v3477 = vpop.permute.xlu0 %3476
        %3478 = vrot.lane.b32.xlu0 %v3351, 8
        %v3479 = vpop.permute.xlu0 %3478
        %3480 = vrot.lane.b32.xlu0 %v3352, 8
        %v3481 = vpop.permute.xlu0 %3480
        %3482 = vrot.lane.b32.xlu0 %v3353, 8
        %v3483 = vpop.permute.xlu0 %3482
        %3484 = vrot.lane.b32.xlu0 %v3354, 8
        %v3485 = vpop.permute.xlu0 %3484
        %3518 = vrot.lane.b32.xlu0 %v3355, 12
        %v3519 = vpop.permute.xlu0 %3518
        %3520 = vrot.lane.b32.xlu0 %v3356, 12
        %v3521 = vpop.permute.xlu0 %3520
        %3522 = vrot.lane.b32.xlu0 %v3357, 12
        %v3523 = vpop.permute.xlu0 %3522
        %3524 = vrot.lane.b32.xlu0 %v3358, 12
        %v3525 = vpop.permute.xlu0 %3524
        %3526 = vrot.lane.b32.xlu0 %v3359, 12
        %v3527 = vpop.permute.xlu0 %3526
        %3528 = vrot.lane.b32.xlu0 %v3360, 12
        %v3529 = vpop.permute.xlu0 %3528
        %3530 = vrot.lane.b32.xlu0 %v3361, 12
        %v3531 = vpop.permute.xlu0 %3530
        %3532 = vrot.lane.b32.xlu0 %v3362, 12
        %v3533 = vpop.permute.xlu0 %3532
        %3534 = vrot.lane.b32.xlu0 %v3363, 12
        %v3535 = vpop.permute.xlu0 %3534
        %3536 = vrot.lane.b32.xlu0 %v3364, 12
        %v3537 = vpop.permute.xlu0 %3536
        %3538 = vrot.lane.b32.xlu0 %v3365, 12
        %v3539 = vpop.permute.xlu0 %3538
        %3540 = vrot.lane.b32.xlu0 %v3366, 12
        %v3541 = vpop.permute.xlu0 %3540
        %3542 = vrot.lane.b32.xlu0 %v3367, 12
        %v3543 = vpop.permute.xlu0 %3542
        %3544 = vrot.lane.b32.xlu0 %v3368, 12
        %v3545 = vpop.permute.xlu0 %3544
        %3546 = vrot.lane.b32.xlu0 %v3369, 12
        %v3547 = vpop.permute.xlu0 %3546
        %3548 = vrot.lane.b32.xlu0 %v3370, 12
        %v3549 = vpop.permute.xlu0 %3548
        %3582 = vrot.lane.b32.xlu0 %v3308, 16
        %v3583 = vpop.permute.xlu0 %3582
        %3584 = vrot.lane.b32.xlu0 %v3309, 16
        %v3585 = vpop.permute.xlu0 %3584
        %3586 = vrot.lane.b32.xlu0 %v3310, 16
        %v3587 = vpop.permute.xlu0 %3586
        %3588 = vrot.lane.b32.xlu0 %v3311, 16
        %v3589 = vpop.permute.xlu0 %3588
        %3590 = vrot.lane.b32.xlu0 %v3312, 16
        %v3591 = vpop.permute.xlu0 %3590
        %3592 = vrot.lane.b32.xlu0 %v3313, 16
        %v3593 = vpop.permute.xlu0 %3592
        %3594 = vrot.lane.b32.xlu0 %v3314, 16
        %v3595 = vpop.permute.xlu0 %3594
        %3596 = vrot.lane.b32.xlu0 %v3315, 16
        %v3597 = vpop.permute.xlu0 %3596
        %3598 = vrot.lane.b32.xlu0 %v3316, 16
        %v3599 = vpop.permute.xlu0 %3598
        %3600 = vrot.lane.b32.xlu0 %v3317, 16
        %v3601 = vpop.permute.xlu0 %3600
        %3602 = vrot.lane.b32.xlu0 %v3318, 16
        %v3603 = vpop.permute.xlu0 %3602
        %3604 = vrot.lane.b32.xlu0 %v3319, 16
        %v3605 = vpop.permute.xlu0 %3604
        %3606 = vrot.lane.b32.xlu0 %v3320, 16
        %v3607 = vpop.permute.xlu0 %3606
        %3608 = vrot.lane.b32.xlu0 %v3321, 16
        %v3609 = vpop.permute.xlu0 %3608
        %3610 = vrot.lane.b32.xlu0 %v3322, 16
        %v3611 = vpop.permute.xlu0 %3610
        %3612 = vrot.lane.b32.xlu0 %v3371, 16
        %v3613 = vpop.permute.xlu0 %3612
        %3631 = vrot.lane.b32.xlu0 %v3324, 20
        %v3632 = vpop.permute.xlu0 %3631
        %3633 = vrot.lane.b32.xlu0 %v3325, 20
        %v3634 = vpop.permute.xlu0 %3633
        %3635 = vrot.lane.b32.xlu0 %v3326, 20
        %v3636 = vpop.permute.xlu0 %3635
        %3637 = vrot.lane.b32.xlu0 %v3327, 20
        %v3638 = vpop.permute.xlu0 %3637
        %3639 = vrot.lane.b32.xlu0 %v3328, 20
        %v3640 = vpop.permute.xlu0 %3639
        %3641 = vrot.lane.b32.xlu0 %v3329, 20
        %v3642 = vpop.permute.xlu0 %3641
        %3643 = vrot.lane.b32.xlu0 %v3330, 20
        %v3644 = vpop.permute.xlu0 %3643
        %3645 = vrot.lane.b32.xlu0 %v3331, 20
        %v3646 = vpop.permute.xlu0 %3645
        %3647 = vrot.lane.b32.xlu0 %v3332, 20
        %v3648 = vpop.permute.xlu0 %3647
        %3649 = vrot.lane.b32.xlu0 %v3333, 20
        %v3650 = vpop.permute.xlu0 %3649
        %3651 = vrot.lane.b32.xlu0 %v3334, 20
        %v3652 = vpop.permute.xlu0 %3651
        %3653 = vrot.lane.b32.xlu0 %v3335, 20
        %v3654 = vpop.permute.xlu0 %3653
        %3655 = vrot.lane.b32.xlu0 %v3336, 20
        %v3656 = vpop.permute.xlu0 %3655
        %3657 = vrot.lane.b32.xlu0 %v3337, 20
        %v3658 = vpop.permute.xlu0 %3657
        %3659 = vrot.lane.b32.xlu0 %v3338, 20
        %v3660 = vpop.permute.xlu0 %3659
        %3661 = vrot.lane.b32.xlu0 %v3372, 20
        %v3662 = vpop.permute.xlu0 %3661
        %3680 = vrot.lane.b32.xlu0 %v3340, 24
        %v3681 = vpop.permute.xlu0 %3680
        %3682 = vrot.lane.b32.xlu0 %v3341, 24
        %v3683 = vpop.permute.xlu0 %3682
        %3684 = vrot.lane.b32.xlu0 %v3342, 24
        %v3685 = vpop.permute.xlu0 %3684
        %3686 = vrot.lane.b32.xlu0 %v3343, 24
        %v3687 = vpop.permute.xlu0 %3686
        %3688 = vrot.lane.b32.xlu0 %v3344, 24
        %v3689 = vpop.permute.xlu0 %3688
        %3690 = vrot.lane.b32.xlu0 %v3345, 24
        %v3691 = vpop.permute.xlu0 %3690
        %3692 = vrot.lane.b32.xlu0 %v3346, 24
        %v3693 = vpop.permute.xlu0 %3692
        %3694 = vrot.lane.b32.xlu0 %v3347, 24
        %v3695 = vpop.permute.xlu0 %3694
        %3696 = vrot.lane.b32.xlu0 %v3348, 24
        %v3697 = vpop.permute.xlu0 %3696
        %3698 = vrot.lane.b32.xlu0 %v3349, 24
        %v3699 = vpop.permute.xlu0 %3698
        %3700 = vrot.lane.b32.xlu0 %v3350, 24
        %v3701 = vpop.permute.xlu0 %3700
        %3702 = vrot.lane.b32.xlu0 %v3351, 24
        %v3703 = vpop.permute.xlu0 %3702
        %3704 = vrot.lane.b32.xlu0 %v3352, 24
        %v3705 = vpop.permute.xlu0 %3704
        %3706 = vrot.lane.b32.xlu0 %v3353, 24
        %v3707 = vpop.permute.xlu0 %3706
        %3708 = vrot.lane.b32.xlu0 %v3354, 24
        %v3709 = vpop.permute.xlu0 %3708
        %3710 = vrot.lane.b32.xlu0 %v3373, 24
        %v3711 = vpop.permute.xlu0 %3710
        %vm3728 = vcmask 31744
        %v3729 = vsel %vm3728, %v3307, %v3391
        %v3730 = vsel %vm3728, %v3308, %v3393
        %v3731 = vsel %vm3728, %v3309, %v3395
        %v3732 = vsel %vm3728, %v3310, %v3397
        %v3733 = vsel %vm3728, %v3311, %v3399
        %v3734 = vsel %vm3728, %v3312, %v3401
        %v3735 = vsel %vm3728, %v3313, %v3403
        %v3736 = vsel %vm3728, %v3314, %v3405
        %v3737 = vsel %vm3728, %v3315, %v3407
        %v3738 = vsel %vm3728, %v3316, %v3409
        %v3739 = vsel %vm3728, %v3317, %v3411
        %v3740 = vsel %vm3728, %v3318, %v3413
        %v3741 = vsel %vm3728, %v3319, %v3415
        %v3742 = vsel %vm3728, %v3320, %v3417
        %v3743 = vsel %vm3728, %v3321, %v3419
        %v3744 = vsel %vm3728, %v3322, %v3421
        %v3745 = vsel %vm561, %v3729, %v3455
        %v3746 = vsel %vm561, %v3730, %v3457
        %v3747 = vsel %vm561, %v3731, %v3459
        %v3748 = vsel %vm561, %v3732, %v3461
        %v3749 = vsel %vm561, %v3733, %v3463
        %v3750 = vsel %vm561, %v3734, %v3465
        %v3751 = vsel %vm561, %v3735, %v3467
        %v3752 = vsel %vm561, %v3736, %v3469
        %v3753 = vsel %vm561, %v3737, %v3471
        %v3754 = vsel %vm561, %v3738, %v3473
        %v3755 = vsel %vm561, %v3739, %v3475
        %v3756 = vsel %vm561, %v3740, %v3477
        %v3757 = vsel %vm561, %v3741, %v3479
        %v3758 = vsel %vm561, %v3742, %v3481
        %v3759 = vsel %vm561, %v3743, %v3483
        %v3760 = vsel %vm561, %v3744, %v3485
        %vm3761 = vcmask 97280
        %v3762 = vsel %vm3761, %v3745, %v3519
        %v3763 = vsel %vm3761, %v3746, %v3521
        %v3764 = vsel %vm3761, %v3747, %v3523
        %v3765 = vsel %vm3761, %v3748, %v3525
        %v3766 = vsel %vm3761, %v3749, %v3527
        %v3767 = vsel %vm3761, %v3750, %v3529
        %v3768 = vsel %vm3761, %v3751, %v3531
        %v3769 = vsel %vm3761, %v3752, %v3533
        %v3770 = vsel %vm3761, %v3753, %v3535
        %v3771 = vsel %vm3761, %v3754, %v3537
        %v3772 = vsel %vm3761, %v3755, %v3539
        %v3773 = vsel %vm3761, %v3756, %v3541
        %v3774 = vsel %vm3761, %v3757, %v3543
        %v3775 = vsel %vm3761, %v3758, %v3545
        %v3776 = vsel %vm3761, %v3759, %v3547
        %v3777 = vsel %vm3761, %v3760, %v3549
        %v3778 = vsel %vm3222, %v3762, %v3583
        %v3779 = vsel %vm3222, %v3763, %v3585
        %v3780 = vsel %vm3222, %v3764, %v3587
        %v3781 = vsel %vm3222, %v3765, %v3589
        %v3782 = vsel %vm3222, %v3766, %v3591
        %v3783 = vsel %vm3222, %v3767, %v3593
        %v3784 = vsel %vm3222, %v3768, %v3595
        %v3785 = vsel %vm3222, %v3769, %v3597
        %v3786 = vsel %vm3222, %v3770, %v3599
        %v3787 = vsel %vm3222, %v3771, %v3601
        %v3788 = vsel %vm3222, %v3772, %v3603
        %v3789 = vsel %vm3222, %v3773, %v3605
        %v3790 = vsel %vm3222, %v3774, %v3607
        %v3791 = vsel %vm3222, %v3775, %v3609
        %v3792 = vsel %vm3222, %v3776, %v3611
        %v3793 = vsel %vm3222, %v3777, %v3613
        %vm3794 = vcmask 162816
        %v3795 = vsel %vm3794, %v3778, %v3632
        %v3796 = vsel %vm3794, %v3779, %v3634
        %v3797 = vsel %vm3794, %v3780, %v3636
        %v3798 = vsel %vm3794, %v3781, %v3638
        %v3799 = vsel %vm3794, %v3782, %v3640
        %v3800 = vsel %vm3794, %v3783, %v3642
        %v3801 = vsel %vm3794, %v3784, %v3644
        %v3802 = vsel %vm3794, %v3785, %v3646
        %v3803 = vsel %vm3794, %v3786, %v3648
        %v3804 = vsel %vm3794, %v3787, %v3650
        %v3805 = vsel %vm3794, %v3788, %v3652
        %v3806 = vsel %vm3794, %v3789, %v3654
        %v3807 = vsel %vm3794, %v3790, %v3656
        %v3808 = vsel %vm3794, %v3791, %v3658
        %v3809 = vsel %vm3794, %v3792, %v3660
        %v3810 = vsel %vm3794, %v3793, %v3662
        %v3811 = vsel %vm3239, %v3795, %v3681
        %v3812 = vsel %vm3239, %v3796, %v3683
        %v3813 = vsel %vm3239, %v3797, %v3685
        %v3814 = vsel %vm3239, %v3798, %v3687
        %v3815 = vsel %vm3239, %v3799, %v3689
        %v3816 = vsel %vm3239, %v3800, %v3691
        %v3817 = vsel %vm3239, %v3801, %v3693
        %v3818 = vsel %vm3239, %v3802, %v3695
        %v3819 = vsel %vm3239, %v3803, %v3697
        %v3820 = vsel %vm3239, %v3804, %v3699
        %v3821 = vsel %vm3239, %v3805, %v3701
        %v3822 = vsel %vm3239, %v3806, %v3703
        %v3823 = vsel %vm3239, %v3807, %v3705
        %v3824 = vsel %vm3239, %v3808, %v3707
        %v3825 = vsel %vm3239, %v3809, %v3709
        %v3826 = vsel %vm3239, %v3810, %v3711
        %v3827 = vld [vmem:[%s430] sm:$0xff]
        %v3828 = vld [vmem:[%s430 + $0x8] sm:$0xff]
        %v3829 = vld [vmem:[%s430 + $0x10] sm:$0xff]
        %v3830 = vld [vmem:[%s430 + $0x18] sm:$0xff]
        %v3831 = vld [vmem:[%s430 + $0x20] sm:$0xff]
        %v3832 = vld [vmem:[%s430 + $0x28] sm:$0xff]
        %v3833 = vld [vmem:[%s430 + $0x30] sm:$0xff]
        %v3834 = vld [vmem:[%s435] sm:$0xff]
        %v3835 = vld [vmem:[%s435 + $0x8] sm:$0xff]
        %v3836 = vld [vmem:[%s435 + $0x10] sm:$0xff]
        %v3837 = vld [vmem:[%s435 + $0x18] sm:$0xf]
        %vm3838 = vcmask 228352
        %v3840 = vsel %vm3838, %v3811, 0
        %v3843 = vsel %vm3838, %v3812, 0
        %v3846 = vsel %vm3838, %v3813, 0
        %v3849 = vsel %vm3838, %v3814, 0
        %v3852 = vsel %vm3838, %v3815, 0
        %v3855 = vsel %vm3838, %v3816, 0
        %v3858 = vsel %vm3838, %v3817, 0
        %v3861 = vsel %vm3838, %v3818, 0
        %v3864 = vsel %vm3838, %v3819, 0
        %v3867 = vsel %vm3838, %v3820, 0
        %v3870 = vsel %vm3838, %v3821, 0
        %v3873 = vsel %vm3838, %v3822, 0
        %v3876 = vsel %vm3838, %v3823, 0
        %v3879 = vsel %vm3838, %v3824, 0
        %v3882 = vsel %vm3838, %v3825, 0
        %v3885 = vsel %vm3838, %v3826, 0
        %vm3887 = vcmask 1043456
        %v3889 = vsel %vm3887, %v3837, 0
        %3891 = vmatprep.subr.mxu0 0.0
        %3892 = vmatpush1.msra.mxu0 0.0
        %3893 = vmatprep.subr.mxu0 0.0
        %3894 = vmatpush1.msra.mxu0 0.0
        %3895 = vmatprep.subr.mxu0 0.0
        %3896 = vmatpush1.msra.mxu0 0.0
        %3897 = vmatprep.subr.mxu0 0.0
        %3898 = vmatpush1.msra.mxu0 0.0
        %3899 = vmatprep.subr.mxu0 0.0
        %3900 = vmatpush1.msra.mxu0 0.0
        %3901 = vmatprep.subr.mxu0 0.0
        %3902 = vmatpush1.msra.mxu0 0.0
        %3903 = vmatprep.subr.mxu0 0.0
        %3904 = vmatpush1.msra.mxu0 0.0
        %3905 = vmatprep.subr.mxu0 0.0
        %3906 = vmatpush1.msra.mxu0 0.0
        %3907 = vmatprep.subr.mxu0 0.0
        %3908 = vmatpush1.msra.mxu0 0.0
        %3909 = vmatprep.subr.mxu0 0.0
        %3910 = vmatpush1.msra.mxu0 0.0
        %3911 = vmatprep.subr.mxu0 0.0
        %3912 = vmatpush1.msra.mxu0 0.0
        %3913 = vmatprep.subr.mxu0 0.0
        %3914 = vmatpush1.msra.mxu0 0.0
        %3915 = vmatprep.subr.mxu0 0.0
        %3916 = vmatpush1.msra.mxu0 %v3889
        %3917 = vmatprep.subr.mxu0 0.0
        %3918 = vmatpush1.msra.mxu0 %v3836
        %3919 = vmatprep.subr.mxu0 0.0
        %3920 = vmatpush1.msra.mxu0 %v3835
        %3921 = vmatprep.subr.mxu0 0.0
        %3922 = vmatpush1.msra.mxu0 %v3834
        %3923 = vmatprep.subr.mxu0 0.0
        %3924 = vmatpush2.msra.mxu0 0.0
        %3925 = vmatprep.subr.mxu0 0.0
        %3926 = vmatpush2.msra.mxu0 0.0
        %3927 = vmatprep.subr.mxu0 0.0
        %3928 = vmatpush2.msra.mxu0 0.0
        %3929 = vmatprep.subr.mxu0 0.0
        %3930 = vmatpush2.msra.mxu0 0.0
        %3931 = vmatprep.subr.mxu0 0.0
        %3932 = vmatpush2.msra.mxu0 0.0
        %3933 = vmatprep.subr.mxu0 0.0
        %3934 = vmatpush2.msra.mxu0 0.0
        %3935 = vmatprep.subr.mxu0 0.0
        %3936 = vmatpush2.msra.mxu0 0.0
        %3937 = vmatprep.subr.mxu0 0.0
        %3938 = vmatpush2.msra.mxu0 0.0
        %3939 = vmatprep.subr.mxu0 0.0
        %3940 = vmatpush2.msra.mxu0 0.0
        %3941 = vmatprep.subr.mxu0 0.0
        %3942 = vmatpush2.msra.mxu0 0.0
        %3943 = vmatprep.subr.mxu0 0.0
        %3944 = vmatpush2.msra.mxu0 0.0
        %3945 = vmatprep.subr.mxu0 0.0
        %3946 = vmatpush2.msra.mxu0 0.0
        %3947 = vmatprep.subr.mxu0 0.0
        %3948 = vmatpush2.msra.mxu0 0.0
        %3949 = vmatprep.subr.mxu0 0.0
        %3950 = vmatpush2.msra.mxu0 0.0
        %3951 = vmatprep.subr.mxu0 0.0
        %3952 = vmatpush2.msra.mxu0 0.0
        %3953 = vmatprep.subr.mxu0 0.0
        %3954 = vmatpush2.msra.mxu0 0.0
        %3955 = vmatprep.mubr.f32.mxu0 0.0
        %3956 = vmatmul.mubr.f32.gmra.mxu0 %v3840
        %v3957 = vpop.f32.mrf.mxu0
        %v3958 = vadd.f32 0.0, %v3957
        %v3959 = vpop.f32.mrf.mxu0
        %3960 = vmatprep.mubr.f32.mxu0 0.0
        %3961 = vmatmul.mubr.f32.gmra.mxu0 %v3843
        %v3962 = vpop.f32.mrf.mxu0
        %v3963 = vadd.f32 0.0, %v3962
        %v3964 = vpop.f32.mrf.mxu0
        %3965 = vmatprep.mubr.f32.mxu0 0.0
        %3966 = vmatmul.mubr.f32.gmra.mxu0 %v3846
        %v3967 = vpop.f32.mrf.mxu0
        %v3968 = vadd.f32 0.0, %v3967
        %v3969 = vpop.f32.mrf.mxu0
        %3970 = vmatprep.mubr.f32.mxu0 0.0
        %3971 = vmatmul.mubr.f32.gmra.mxu0 %v3849
        %v3972 = vpop.f32.mrf.mxu0
        %v3973 = vadd.f32 0.0, %v3972
        %v3974 = vpop.f32.mrf.mxu0
        %3975 = vmatprep.mubr.f32.mxu0 0.0
        %3976 = vmatmul.mubr.f32.gmra.mxu0 %v3852
        %v3977 = vpop.f32.mrf.mxu0
        %v3978 = vadd.f32 0.0, %v3977
        %v3979 = vpop.f32.mrf.mxu0
        %3980 = vmatprep.mubr.f32.mxu0 0.0
        %3981 = vmatmul.mubr.f32.gmra.mxu0 %v3855
        %v3982 = vpop.f32.mrf.mxu0
        %v3983 = vadd.f32 0.0, %v3982
        %v3984 = vpop.f32.mrf.mxu0
        %3985 = vmatprep.mubr.f32.mxu0 0.0
        %3986 = vmatmul.mubr.f32.gmra.mxu0 %v3858
        %v3987 = vpop.f32.mrf.mxu0
        %v3988 = vadd.f32 0.0, %v3987
        %v3989 = vpop.f32.mrf.mxu0
        %3990 = vmatprep.mubr.f32.mxu0 0.0
        %3991 = vmatmul.mubr.f32.gmra.mxu0 %v3861
        %v3992 = vpop.f32.mrf.mxu0
        %v3993 = vadd.f32 0.0, %v3992
        %v3994 = vpop.f32.mrf.mxu0
        %3995 = vmatprep.mubr.f32.mxu0 0.0
        %3996 = vmatmul.mubr.f32.gmra.mxu0 %v3864
        %v3997 = vpop.f32.mrf.mxu0
        %v3998 = vadd.f32 0.0, %v3997
        %v3999 = vpop.f32.mrf.mxu0
        %4000 = vmatprep.mubr.f32.mxu0 0.0
        %4001 = vmatmul.mubr.f32.gmra.mxu0 %v3867
        %v4002 = vpop.f32.mrf.mxu0
        %v4003 = vadd.f32 0.0, %v4002
        %v4004 = vpop.f32.mrf.mxu0
        %4005 = vmatprep.mubr.f32.mxu0 0.0
        %4006 = vmatmul.mubr.f32.gmra.mxu0 %v3870
        %v4007 = vpop.f32.mrf.mxu0
        %v4008 = vadd.f32 0.0, %v4007
        %v4009 = vpop.f32.mrf.mxu0
        %4010 = vmatprep.mubr.f32.mxu0 0.0
        %4011 = vmatmul.mubr.f32.gmra.mxu0 %v3873
        %v4012 = vpop.f32.mrf.mxu0
        %v4013 = vadd.f32 0.0, %v4012
        %v4014 = vpop.f32.mrf.mxu0
        %4015 = vmatprep.mubr.f32.mxu0 0.0
        %4016 = vmatmul.mubr.f32.gmra.mxu0 %v3876
        %v4017 = vpop.f32.mrf.mxu0
        %v4018 = vadd.f32 0.0, %v4017
        %v4019 = vpop.f32.mrf.mxu0
        %4020 = vmatprep.mubr.f32.mxu0 0.0
        %4021 = vmatmul.mubr.f32.gmra.mxu0 %v3879
        %v4022 = vpop.f32.mrf.mxu0
        %v4023 = vadd.f32 0.0, %v4022
        %v4024 = vpop.f32.mrf.mxu0
        %4025 = vmatprep.mubr.f32.mxu0 0.0
        %4026 = vmatmul.mubr.f32.gmra.mxu0 %v3882
        %v4027 = vpop.f32.mrf.mxu0
        %v4028 = vadd.f32 0.0, %v4027
        %v4029 = vpop.f32.mrf.mxu0
        %4030 = vmatprep.mubr.f32.mxu0 0.0
        %4031 = vmatmul.mubr.f32.gmra.mxu0 %v3885
        %v4032 = vpop.f32.mrf.mxu0
        %v4033 = vadd.f32 0.0, %v4032
        %v4034 = vpop.f32.mrf.mxu0
        %4035 = vdwg.mxu0
        %vm4036 = vcmask 457728
        %v4038 = vsel %vm4036, %v3291, 0
        %v4041 = vsel %vm4036, %v3292, 0
        %v4044 = vsel %vm4036, %v3293, 0
        %v4047 = vsel %vm4036, %v3294, 0
        %v4050 = vsel %vm4036, %v3295, 0
        %v4053 = vsel %vm4036, %v3296, 0
        %v4056 = vsel %vm4036, %v3297, 0
        %v4059 = vsel %vm4036, %v3298, 0
        %v4062 = vsel %vm4036, %v3299, 0
        %v4065 = vsel %vm4036, %v3300, 0
        %v4068 = vsel %vm4036, %v3301, 0
        %v4071 = vsel %vm4036, %v3302, 0
        %v4074 = vsel %vm4036, %v3303, 0
        %v4077 = vsel %vm4036, %v3304, 0
        %v4080 = vsel %vm4036, %v3305, 0
        %v4083 = vsel %vm4036, %v3306, 0
        %4085 = vmatprep.subr.mxu0 0.0
        %4086 = vmatpush1.msra.mxu0 0.0
        %4087 = vmatprep.subr.mxu0 0.0
        %4088 = vmatpush1.msra.mxu0 0.0
        %4089 = vmatprep.subr.mxu0 0.0
        %4090 = vmatpush1.msra.mxu0 0.0
        %4091 = vmatprep.subr.mxu0 0.0
        %4092 = vmatpush1.msra.mxu0 0.0
        %4093 = vmatprep.subr.mxu0 0.0
        %4094 = vmatpush1.msra.mxu0 0.0
        %4095 = vmatprep.subr.mxu0 0.0
        %4096 = vmatpush1.msra.mxu0 0.0
        %4097 = vmatprep.subr.mxu0 0.0
        %4098 = vmatpush1.msra.mxu0 0.0
        %4099 = vmatprep.subr.mxu0 0.0
        %4100 = vmatpush1.msra.mxu0 0.0
        %4101 = vmatprep.subr.mxu0 0.0
        %4102 = vmatpush1.msra.mxu0 0.0
        %4103 = vmatprep.subr.mxu0 0.0
        %4104 = vmatpush1.msra.mxu0 %v3833
        %4105 = vmatprep.subr.mxu0 0.0
        %4106 = vmatpush1.msra.mxu0 %v3832
        %4107 = vmatprep.subr.mxu0 0.0
        %4108 = vmatpush1.msra.mxu0 %v3831
        %4109 = vmatprep.subr.mxu0 0.0
        %4110 = vmatpush1.msra.mxu0 %v3830
        %4111 = vmatprep.subr.mxu0 0.0
        %4112 = vmatpush1.msra.mxu0 %v3829
        %4113 = vmatprep.subr.mxu0 0.0
        %4114 = vmatpush1.msra.mxu0 %v3828
        %4115 = vmatprep.subr.mxu0 0.0
        %4116 = vmatpush1.msra.mxu0 %v3827
        %4117 = vmatprep.subr.mxu0 0.0
        %4118 = vmatpush2.msra.mxu0 0.0
        %4119 = vmatprep.subr.mxu0 0.0
        %4120 = vmatpush2.msra.mxu0 0.0
        %4121 = vmatprep.subr.mxu0 0.0
        %4122 = vmatpush2.msra.mxu0 0.0
        %4123 = vmatprep.subr.mxu0 0.0
        %4124 = vmatpush2.msra.mxu0 0.0
        %4125 = vmatprep.subr.mxu0 0.0
        %4126 = vmatpush2.msra.mxu0 0.0
        %4127 = vmatprep.subr.mxu0 0.0
        %4128 = vmatpush2.msra.mxu0 0.0
        %4129 = vmatprep.subr.mxu0 0.0
        %4130 = vmatpush2.msra.mxu0 0.0
        %4131 = vmatprep.subr.mxu0 0.0
        %4132 = vmatpush2.msra.mxu0 0.0
        %4133 = vmatprep.subr.mxu0 0.0
        %4134 = vmatpush2.msra.mxu0 0.0
        %4135 = vmatprep.subr.mxu0 0.0
        %4136 = vmatpush2.msra.mxu0 0.0
        %4137 = vmatprep.subr.mxu0 0.0
        %4138 = vmatpush2.msra.mxu0 0.0
        %4139 = vmatprep.subr.mxu0 0.0
        %4140 = vmatpush2.msra.mxu0 0.0
        %4141 = vmatprep.subr.mxu0 0.0
        %4142 = vmatpush2.msra.mxu0 0.0
        %4143 = vmatprep.subr.mxu0 0.0
        %4144 = vmatpush2.msra.mxu0 0.0
        %4145 = vmatprep.subr.mxu0 0.0
        %4146 = vmatpush2.msra.mxu0 0.0
        %4147 = vmatprep.subr.mxu0 0.0
        %4148 = vmatpush2.msra.mxu0 0.0
        %4149 = vmatprep.mubr.f32.mxu0 0.0
        %4150 = vmatmul.mubr.f32.gmra.mxu0 %v4038
        %v4151 = vpop.f32.mrf.mxu0
        %v4152 = vadd.f32 %v3958, %v4151
        %v4153 = vpop.f32.mrf.mxu0
        %4154 = vmatprep.mubr.f32.mxu0 0.0
        %4155 = vmatmul.mubr.f32.gmra.mxu0 %v4041
        %v4156 = vpop.f32.mrf.mxu0
        %v4157 = vadd.f32 %v3963, %v4156
        %v4158 = vpop.f32.mrf.mxu0
        %4159 = vmatprep.mubr.f32.mxu0 0.0
        %4160 = vmatmul.mubr.f32.gmra.mxu0 %v4044
        %v4161 = vpop.f32.mrf.mxu0
        %v4162 = vadd.f32 %v3968, %v4161
        %v4163 = vpop.f32.mrf.mxu0
        %4164 = vmatprep.mubr.f32.mxu0 0.0
        %4165 = vmatmul.mubr.f32.gmra.mxu0 %v4047
        %v4166 = vpop.f32.mrf.mxu0
        %v4167 = vadd.f32 %v3973, %v4166
        %v4168 = vpop.f32.mrf.mxu0
        %4169 = vmatprep.mubr.f32.mxu0 0.0
        %4170 = vmatmul.mubr.f32.gmra.mxu0 %v4050
        %v4171 = vpop.f32.mrf.mxu0
        %v4172 = vadd.f32 %v3978, %v4171
        %v4173 = vpop.f32.mrf.mxu0
        %4174 = vmatprep.mubr.f32.mxu0 0.0
        %4175 = vmatmul.mubr.f32.gmra.mxu0 %v4053
        %v4176 = vpop.f32.mrf.mxu0
        %v4177 = vadd.f32 %v3983, %v4176
        %v4178 = vpop.f32.mrf.mxu0
        %4179 = vmatprep.mubr.f32.mxu0 0.0
        %4180 = vmatmul.mubr.f32.gmra.mxu0 %v4056
        %v4181 = vpop.f32.mrf.mxu0
        %v4182 = vadd.f32 %v3988, %v4181
        %v4183 = vpop.f32.mrf.mxu0
        %4184 = vmatprep.mubr.f32.mxu0 0.0
        %4185 = vmatmul.mubr.f32.gmra.mxu0 %v4059
        %v4186 = vpop.f32.mrf.mxu0
        %v4187 = vadd.f32 %v3993, %v4186
        %v4188 = vpop.f32.mrf.mxu0
        %4189 = vmatprep.mubr.f32.mxu0 0.0
        %4190 = vmatmul.mubr.f32.gmra.mxu0 %v4062
        %v4191 = vpop.f32.mrf.mxu0
        %v4192 = vadd.f32 %v3998, %v4191
        %v4193 = vpop.f32.mrf.mxu0
        %4194 = vmatprep.mubr.f32.mxu0 0.0
        %4195 = vmatmul.mubr.f32.gmra.mxu0 %v4065
        %v4196 = vpop.f32.mrf.mxu0
        %v4197 = vadd.f32 %v4003, %v4196
        %v4198 = vpop.f32.mrf.mxu0
        %4199 = vmatprep.mubr.f32.mxu0 0.0
        %4200 = vmatmul.mubr.f32.gmra.mxu0 %v4068
        %v4201 = vpop.f32.mrf.mxu0
        %v4202 = vadd.f32 %v4008, %v4201
        %v4203 = vpop.f32.mrf.mxu0
        %4204 = vmatprep.mubr.f32.mxu0 0.0
        %4205 = vmatmul.mubr.f32.gmra.mxu0 %v4071
        %v4206 = vpop.f32.mrf.mxu0
        %v4207 = vadd.f32 %v4013, %v4206
        %v4208 = vpop.f32.mrf.mxu0
        %4209 = vmatprep.mubr.f32.mxu0 0.0
        %4210 = vmatmul.mubr.f32.gmra.mxu0 %v4074
        %v4211 = vpop.f32.mrf.mxu0
        %v4212 = vadd.f32 %v4018, %v4211
        %v4213 = vpop.f32.mrf.mxu0
        %4214 = vmatprep.mubr.f32.mxu0 0.0
        %4215 = vmatmul.mubr.f32.gmra.mxu0 %v4077
        %v4216 = vpop.f32.mrf.mxu0
        %v4217 = vadd.f32 %v4023, %v4216
        %v4218 = vpop.f32.mrf.mxu0
        %4219 = vmatprep.mubr.f32.mxu0 0.0
        %4220 = vmatmul.mubr.f32.gmra.mxu0 %v4080
        %v4221 = vpop.f32.mrf.mxu0
        %v4222 = vadd.f32 %v4028, %v4221
        %v4223 = vpop.f32.mrf.mxu0
        %4224 = vmatprep.mubr.f32.mxu0 0.0
        %4225 = vmatmul.mubr.f32.gmra.mxu0 %v4083
        %v4226 = vpop.f32.mrf.mxu0
        %v4227 = vadd.f32 %v4033, %v4226
        %v4228 = vpop.f32.mrf.mxu0
        %4229 = vdwg.mxu0
        %v4230 = vld [vmem:[%s438] sm:$0x1]
        %v4232 = vlaneseq
        %v4233 = vshrl.u32 %v4232, 7
        %v4234 = vsub.s32 0, %v4233
        %v4235 = vrot.slane %v4230, %v4234
        %v4237 = vadd.f32 %v4152, %v4235
        %v4238 = vadd.f32 %v4157, %v4235
        %v4239 = vadd.f32 %v4162, %v4235
        %v4240 = vadd.f32 %v4167, %v4235
        %v4241 = vadd.f32 %v4172, %v4235
        %v4242 = vadd.f32 %v4177, %v4235
        %v4243 = vadd.f32 %v4182, %v4235
        %v4244 = vadd.f32 %v4187, %v4235
        %v4245 = vadd.f32 %v4192, %v4235
        %v4246 = vadd.f32 %v4197, %v4235
        %v4247 = vadd.f32 %v4202, %v4235
        %v4248 = vadd.f32 %v4207, %v4235
        %v4249 = vadd.f32 %v4212, %v4235
        %v4250 = vadd.f32 %v4217, %v4235
        %v4251 = vadd.f32 %v4222, %v4235
        %v4252 = vadd.f32 %v4227, %v4235
        %v4253 = vxor.u32 %v4237, 2147483648
        %v4254 = vxor.u32 %v4238, 2147483648
        %v4255 = vxor.u32 %v4239, 2147483648
        %v4256 = vxor.u32 %v4240, 2147483648
        %v4257 = vxor.u32 %v4241, 2147483648
        %v4258 = vxor.u32 %v4242, 2147483648
        %v4259 = vxor.u32 %v4243, 2147483648
        %v4260 = vxor.u32 %v4244, 2147483648
        %v4261 = vxor.u32 %v4245, 2147483648
        %v4262 = vxor.u32 %v4246, 2147483648
        %v4263 = vxor.u32 %v4247, 2147483648
        %v4264 = vxor.u32 %v4248, 2147483648
        %v4265 = vxor.u32 %v4249, 2147483648
        %v4266 = vxor.u32 %v4250, 2147483648
        %v4267 = vxor.u32 %v4251, 2147483648
        %v4268 = vxor.u32 %v4252, 2147483648
        %v4269 = vmul.f32 %v4253, 1.442695
        %v4270 = vpow.pop %v4269
        %v4271 = vmul.f32 %v4254, 1.442695
        %v4272 = vpow.pop %v4271
        %v4273 = vmul.f32 %v4255, 1.442695
        %v4274 = vpow.pop %v4273
        %v4275 = vmul.f32 %v4256, 1.442695
        %v4276 = vpow.pop %v4275
        %v4277 = vmul.f32 %v4257, 1.442695
        %v4278 = vpow.pop %v4277
        %v4279 = vmul.f32 %v4258, 1.442695
        %v4280 = vpow.pop %v4279
        %v4281 = vmul.f32 %v4259, 1.442695
        %v4282 = vpow.pop %v4281
        %v4283 = vmul.f32 %v4260, 1.442695
        %v4284 = vpow.pop %v4283
        %v4285 = vmul.f32 %v4261, 1.442695
        %v4286 = vpow.pop %v4285
        %v4287 = vmul.f32 %v4262, 1.442695
        %v4288 = vpow.pop %v4287
        %v4289 = vmul.f32 %v4263, 1.442695
        %v4290 = vpow.pop %v4289
        %v4291 = vmul.f32 %v4264, 1.442695
        %v4292 = vpow.pop %v4291
        %v4293 = vmul.f32 %v4265, 1.442695
        %v4294 = vpow.pop %v4293
        %v4295 = vmul.f32 %v4266, 1.442695
        %v4296 = vpow.pop %v4295
        %v4297 = vmul.f32 %v4267, 1.442695
        %v4298 = vpow.pop %v4297
        %v4299 = vmul.f32 %v4268, 1.442695
        %v4300 = vpow.pop %v4299
        %v4301 = vadd.f32 %v4270, 1.0
        %v4302 = vadd.f32 %v4272, 1.0
        %v4303 = vadd.f32 %v4274, 1.0
        %v4304 = vadd.f32 %v4276, 1.0
        %v4305 = vadd.f32 %v4278, 1.0
        %v4306 = vadd.f32 %v4280, 1.0
        %v4307 = vadd.f32 %v4282, 1.0
        %v4308 = vadd.f32 %v4284, 1.0
        %v4309 = vadd.f32 %v4286, 1.0
        %v4310 = vadd.f32 %v4288, 1.0
        %v4311 = vadd.f32 %v4290, 1.0
        %v4312 = vadd.f32 %v4292, 1.0
        %v4313 = vadd.f32 %v4294, 1.0
        %v4314 = vadd.f32 %v4296, 1.0
        %v4315 = vadd.f32 %v4298, 1.0
        %v4316 = vadd.f32 %v4300, 1.0
        %v4317 = vrcp.pop %v4301
        %v4318 = vmul.f32 1.0, %v4317
        %v4319 = vrcp.pop %v4302
        %v4320 = vmul.f32 1.0, %v4319
        %v4321 = vrcp.pop %v4303
        %v4322 = vmul.f32 1.0, %v4321
        %v4323 = vrcp.pop %v4304
        %v4324 = vmul.f32 1.0, %v4323
        %v4325 = vrcp.pop %v4305
        %v4326 = vmul.f32 1.0, %v4325
        %v4327 = vrcp.pop %v4306
        %v4328 = vmul.f32 1.0, %v4327
        %v4329 = vrcp.pop %v4307
        %v4330 = vmul.f32 1.0, %v4329
        %v4331 = vrcp.pop %v4308
        %v4332 = vmul.f32 1.0, %v4331
        %v4333 = vrcp.pop %v4309
        %v4334 = vmul.f32 1.0, %v4333
        %v4335 = vrcp.pop %v4310
        %v4336 = vmul.f32 1.0, %v4335
        %v4337 = vrcp.pop %v4311
        %v4338 = vmul.f32 1.0, %v4337
        %v4339 = vrcp.pop %v4312
        %v4340 = vmul.f32 1.0, %v4339
        %v4341 = vrcp.pop %v4313
        %v4342 = vmul.f32 1.0, %v4341
        %v4343 = vrcp.pop %v4314
        %v4344 = vmul.f32 1.0, %v4343
        %v4345 = vrcp.pop %v4315
        %v4346 = vmul.f32 1.0, %v4345
        %v4347 = vrcp.pop %v4316
        %v4348 = vmul.f32 1.0, %v4347
        %v4349 = vtanh.pop %v4237
        %v4350 = vtanh.pop %v4238
        %v4351 = vtanh.pop %v4239
        %v4352 = vtanh.pop %v4240
        %v4353 = vtanh.pop %v4241
        %v4354 = vtanh.pop %v4242
        %v4355 = vtanh.pop %v4243
        %v4356 = vtanh.pop %v4244
        %v4357 = vtanh.pop %v4245
        %v4358 = vtanh.pop %v4246
        %v4359 = vtanh.pop %v4247
        %v4360 = vtanh.pop %v4248
        %v4361 = vtanh.pop %v4249
        %v4362 = vtanh.pop %v4250
        %v4363 = vtanh.pop %v4251
        %v4364 = vtanh.pop %v4252
        %4381 = vrot.lane.b32.xlu0 %v4349, 120
        %v4382 = vpop.permute.xlu0 %4381
        %4383 = vrot.lane.b32.xlu0 %v4350, 120
        %v4384 = vpop.permute.xlu0 %4383
        %4385 = vrot.lane.b32.xlu0 %v4351, 120
        %v4386 = vpop.permute.xlu0 %4385
        %4387 = vrot.lane.b32.xlu0 %v4352, 120
        %v4388 = vpop.permute.xlu0 %4387
        %4389 = vrot.lane.b32.xlu0 %v4353, 120
        %v4390 = vpop.permute.xlu0 %4389
        %4391 = vrot.lane.b32.xlu0 %v4354, 120
        %v4392 = vpop.permute.xlu0 %4391
        %4393 = vrot.lane.b32.xlu0 %v4355, 120
        %v4394 = vpop.permute.xlu0 %4393
        %4395 = vrot.lane.b32.xlu0 %v4356, 120
        %v4396 = vpop.permute.xlu0 %4395
        %4397 = vrot.lane.b32.xlu0 %v4357, 120
        %v4398 = vpop.permute.xlu0 %4397
        %4399 = vrot.lane.b32.xlu0 %v4358, 120
        %v4400 = vpop.permute.xlu0 %4399
        %4401 = vrot.lane.b32.xlu0 %v4359, 120
        %v4402 = vpop.permute.xlu0 %4401
        %4403 = vrot.lane.b32.xlu0 %v4360, 120
        %v4404 = vpop.permute.xlu0 %4403
        %4405 = vrot.lane.b32.xlu0 %v4361, 120
        %v4406 = vpop.permute.xlu0 %4405
        %4407 = vrot.lane.b32.xlu0 %v4362, 120
        %v4408 = vpop.permute.xlu0 %4407
        %4409 = vrot.lane.b32.xlu0 %v4363, 120
        %v4410 = vpop.permute.xlu0 %4409
        %4411 = vrot.lane.b32.xlu0 %v4364, 120
        %v4412 = vpop.permute.xlu0 %4411
        %v4429 = vmul.f32 %v4318, %v4382
        %v4430 = vmul.f32 %v4320, %v4384
        %v4431 = vmul.f32 %v4322, %v4386
        %v4432 = vmul.f32 %v4324, %v4388
        %v4433 = vmul.f32 %v4326, %v4390
        %v4434 = vmul.f32 %v4328, %v4392
        %v4435 = vmul.f32 %v4330, %v4394
        %v4436 = vmul.f32 %v4332, %v4396
        %v4437 = vmul.f32 %v4334, %v4398
        %v4438 = vmul.f32 %v4336, %v4400
        %v4439 = vmul.f32 %v4338, %v4402
        %v4440 = vmul.f32 %v4340, %v4404
        %v4441 = vmul.f32 %v4342, %v4406
        %v4442 = vmul.f32 %v4344, %v4408
        %v4443 = vmul.f32 %v4346, %v4410
        %v4444 = vmul.f32 %v4348, %v4412
        %v4445 = vld [vmem:[%s442] sm:$0xff]
        %v4446 = vld [vmem:[%s445] sm:$0x1]
        %v4448 = vlaneseq
        %v4449 = vshrl.u32 %v4448, 7
        %v4450 = vsub.s32 0, %v4449
        %v4451 = vrot.slane %v4446, %v4450
        %v4454 = vsel %vm561, %v4429, 0
        %v4457 = vsel %vm561, %v4430, 0
        %v4460 = vsel %vm561, %v4431, 0
        %v4463 = vsel %vm561, %v4432, 0
        %v4466 = vsel %vm561, %v4433, 0
        %v4469 = vsel %vm561, %v4434, 0
        %v4472 = vsel %vm561, %v4435, 0
        %v4475 = vsel %vm561, %v4436, 0
        %v4478 = vsel %vm561, %v4437, 0
        %v4481 = vsel %vm561, %v4438, 0
        %v4484 = vsel %vm561, %v4439, 0
        %v4487 = vsel %vm561, %v4440, 0
        %v4490 = vsel %vm561, %v4441, 0
        %v4493 = vsel %vm561, %v4442, 0
        %v4496 = vsel %vm561, %v4443, 0
        %v4499 = vsel %vm561, %v4444, 0
        %4501 = vmatprep.subr.mxu0 0.0
        %4502 = vmatpush1.msra.mxu0 0.0
        %4503 = vmatprep.subr.mxu0 0.0
        %4504 = vmatpush1.msra.mxu0 0.0
        %4505 = vmatprep.subr.mxu0 0.0
        %4506 = vmatpush1.msra.mxu0 0.0
        %4507 = vmatprep.subr.mxu0 0.0
        %4508 = vmatpush1.msra.mxu0 0.0
        %4509 = vmatprep.subr.mxu0 0.0
        %4510 = vmatpush1.msra.mxu0 0.0
        %4511 = vmatprep.subr.mxu0 0.0
        %4512 = vmatpush1.msra.mxu0 0.0
        %4513 = vmatprep.subr.mxu0 0.0
        %4514 = vmatpush1.msra.mxu0 0.0
        %4515 = vmatprep.subr.mxu0 0.0
        %4516 = vmatpush1.msra.mxu0 0.0
        %4517 = vmatprep.subr.mxu0 0.0
        %4518 = vmatpush1.msra.mxu0 0.0
        %4519 = vmatprep.subr.mxu0 0.0
        %4520 = vmatpush1.msra.mxu0 0.0
        %4521 = vmatprep.subr.mxu0 0.0
        %4522 = vmatpush1.msra.mxu0 0.0
        %4523 = vmatprep.subr.mxu0 0.0
        %4524 = vmatpush1.msra.mxu0 0.0
        %4525 = vmatprep.subr.mxu0 0.0
        %4526 = vmatpush1.msra.mxu0 0.0
        %4527 = vmatprep.subr.mxu0 0.0
        %4528 = vmatpush1.msra.mxu0 0.0
        %4529 = vmatprep.subr.mxu0 0.0
        %4530 = vmatpush1.msra.mxu0 0.0
        %4531 = vmatprep.subr.mxu0 0.0
        %4532 = vmatpush1.msra.mxu0 %v4445
        %4533 = vmatprep.subr.mxu0 0.0
        %4534 = vmatpush2.msra.mxu0 0.0
        %4535 = vmatprep.subr.mxu0 0.0
        %4536 = vmatpush2.msra.mxu0 0.0
        %4537 = vmatprep.subr.mxu0 0.0
        %4538 = vmatpush2.msra.mxu0 0.0
        %4539 = vmatprep.subr.mxu0 0.0
        %4540 = vmatpush2.msra.mxu0 0.0
        %4541 = vmatprep.subr.mxu0 0.0
        %4542 = vmatpush2.msra.mxu0 0.0
        %4543 = vmatprep.subr.mxu0 0.0
        %4544 = vmatpush2.msra.mxu0 0.0
        %4545 = vmatprep.subr.mxu0 0.0
        %4546 = vmatpush2.msra.mxu0 0.0
        %4547 = vmatprep.subr.mxu0 0.0
        %4548 = vmatpush2.msra.mxu0 0.0
        %4549 = vmatprep.subr.mxu0 0.0
        %4550 = vmatpush2.msra.mxu0 0.0
        %4551 = vmatprep.subr.mxu0 0.0
        %4552 = vmatpush2.msra.mxu0 0.0
        %4553 = vmatprep.subr.mxu0 0.0
        %4554 = vmatpush2.msra.mxu0 0.0
        %4555 = vmatprep.subr.mxu0 0.0
        %4556 = vmatpush2.msra.mxu0 0.0
        %4557 = vmatprep.subr.mxu0 0.0
        %4558 = vmatpush2.msra.mxu0 0.0
        %4559 = vmatprep.subr.mxu0 0.0
        %4560 = vmatpush2.msra.mxu0 0.0
        %4561 = vmatprep.subr.mxu0 0.0
        %4562 = vmatpush2.msra.mxu0 0.0
        %4563 = vmatprep.subr.mxu0 0.0
        %4564 = vmatpush2.msra.mxu0 0.0
        %4565 = vmatprep.mubr.f32.mxu0 0.0
        %4566 = vmatmul.mubr.f32.gmra.mxu0 %v4454
        %v4567 = vpop.f32.mrf.mxu0
        %v4568 = vadd.f32 %v4451, %v4567
        %v4569 = vpop.f32.mrf.mxu0
        %4570 = vmatprep.mubr.f32.mxu0 0.0
        %4571 = vmatmul.mubr.f32.gmra.mxu0 %v4457
        %v4572 = vpop.f32.mrf.mxu0
        %v4573 = vadd.f32 %v4451, %v4572
        %v4574 = vpop.f32.mrf.mxu0
        %4575 = vmatprep.mubr.f32.mxu0 0.0
        %4576 = vmatmul.mubr.f32.gmra.mxu0 %v4460
        %v4577 = vpop.f32.mrf.mxu0
        %v4578 = vadd.f32 %v4451, %v4577
        %v4579 = vpop.f32.mrf.mxu0
        %4580 = vmatprep.mubr.f32.mxu0 0.0
        %4581 = vmatmul.mubr.f32.gmra.mxu0 %v4463
        %v4582 = vpop.f32.mrf.mxu0
        %v4583 = vadd.f32 %v4451, %v4582
        %v4584 = vpop.f32.mrf.mxu0
        %4585 = vmatprep.mubr.f32.mxu0 0.0
        %4586 = vmatmul.mubr.f32.gmra.mxu0 %v4466
        %v4587 = vpop.f32.mrf.mxu0
        %v4588 = vadd.f32 %v4451, %v4587
        %v4589 = vpop.f32.mrf.mxu0
        %4590 = vmatprep.mubr.f32.mxu0 0.0
        %4591 = vmatmul.mubr.f32.gmra.mxu0 %v4469
        %v4592 = vpop.f32.mrf.mxu0
        %v4593 = vadd.f32 %v4451, %v4592
        %v4594 = vpop.f32.mrf.mxu0
        %4595 = vmatprep.mubr.f32.mxu0 0.0
        %4596 = vmatmul.mubr.f32.gmra.mxu0 %v4472
        %v4597 = vpop.f32.mrf.mxu0
        %v4598 = vadd.f32 %v4451, %v4597
        %v4599 = vpop.f32.mrf.mxu0
        %4600 = vmatprep.mubr.f32.mxu0 0.0
        %4601 = vmatmul.mubr.f32.gmra.mxu0 %v4475
        %v4602 = vpop.f32.mrf.mxu0
        %v4603 = vadd.f32 %v4451, %v4602
        %v4604 = vpop.f32.mrf.mxu0
        %4605 = vmatprep.mubr.f32.mxu0 0.0
        %4606 = vmatmul.mubr.f32.gmra.mxu0 %v4478
        %v4607 = vpop.f32.mrf.mxu0
        %v4608 = vadd.f32 %v4451, %v4607
        %v4609 = vpop.f32.mrf.mxu0
        %4610 = vmatprep.mubr.f32.mxu0 0.0
        %4611 = vmatmul.mubr.f32.gmra.mxu0 %v4481
        %v4612 = vpop.f32.mrf.mxu0
        %v4613 = vadd.f32 %v4451, %v4612
        %v4614 = vpop.f32.mrf.mxu0
        %4615 = vmatprep.mubr.f32.mxu0 0.0
        %4616 = vmatmul.mubr.f32.gmra.mxu0 %v4484
        %v4617 = vpop.f32.mrf.mxu0
        %v4618 = vadd.f32 %v4451, %v4617
        %v4619 = vpop.f32.mrf.mxu0
        %4620 = vmatprep.mubr.f32.mxu0 0.0
        %4621 = vmatmul.mubr.f32.gmra.mxu0 %v4487
        %v4622 = vpop.f32.mrf.mxu0
        %v4623 = vadd.f32 %v4451, %v4622
        %v4624 = vpop.f32.mrf.mxu0
        %4625 = vmatprep.mubr.f32.mxu0 0.0
        %4626 = vmatmul.mubr.f32.gmra.mxu0 %v4490
        %v4627 = vpop.f32.mrf.mxu0
        %v4628 = vadd.f32 %v4451, %v4627
        %v4629 = vpop.f32.mrf.mxu0
        %4630 = vmatprep.mubr.f32.mxu0 0.0
        %4631 = vmatmul.mubr.f32.gmra.mxu0 %v4493
        %v4632 = vpop.f32.mrf.mxu0
        %v4633 = vadd.f32 %v4451, %v4632
        %v4634 = vpop.f32.mrf.mxu0
        %4635 = vmatprep.mubr.f32.mxu0 0.0
        %4636 = vmatmul.mubr.f32.gmra.mxu0 %v4496
        %v4637 = vpop.f32.mrf.mxu0
        %v4638 = vadd.f32 %v4451, %v4637
        %v4639 = vpop.f32.mrf.mxu0
        %4640 = vmatprep.mubr.f32.mxu0 0.0
        %4641 = vmatmul.mubr.f32.gmra.mxu0 %v4499
        %v4642 = vpop.f32.mrf.mxu0
        %v4643 = vadd.f32 %v4451, %v4642
        %v4644 = vpop.f32.mrf.mxu0
        %4645 = vdwg.mxu0
        %v4646 = vld [vmem:[#allocation2] sm:$0xff]
        %v4647 = vld [vmem:[#allocation2 + $0x8] sm:$0xff]
        %v4648 = vld [vmem:[#allocation2 + $0x10] sm:$0xff]
        %v4649 = vld [vmem:[#allocation2 + $0x18] sm:$0xff]
        %v4650 = vld [vmem:[#allocation2 + $0x20] sm:$0xff]
        %v4651 = vld [vmem:[#allocation2 + $0x28] sm:$0xff]
        %v4652 = vld [vmem:[#allocation2 + $0x30] sm:$0xff]
        %v4653 = vld [vmem:[#allocation2 + $0x38] sm:$0xff]
        %v4654 = vld [vmem:[#allocation2 + $0x40] sm:$0xff]
        %v4655 = vld [vmem:[#allocation2 + $0x48] sm:$0xff]
        %v4656 = vld [vmem:[#allocation2 + $0x50] sm:$0xff]
        %v4657 = vld [vmem:[#allocation2 + $0x58] sm:$0xff]
        %v4658 = vld [vmem:[#allocation2 + $0x60] sm:$0xff]
        %v4659 = vld [vmem:[#allocation2 + $0x68] sm:$0xff]
        %v4660 = vld [vmem:[#allocation2 + $0x70] sm:$0xff]
        %v4661 = vld [vmem:[#allocation2 + $0x78] sm:$0xff]
        %v4662 = vadd.f32 %v4646, %v4568
        %v4663 = vadd.f32 %v4647, %v4573
        %v4664 = vadd.f32 %v4648, %v4578
        %v4665 = vadd.f32 %v4649, %v4583
        %v4666 = vadd.f32 %v4650, %v4588
        %v4667 = vadd.f32 %v4651, %v4593
        %v4668 = vadd.f32 %v4652, %v4598
        %v4669 = vadd.f32 %v4653, %v4603
        %v4670 = vadd.f32 %v4654, %v4608
        %v4671 = vadd.f32 %v4655, %v4613
        %v4672 = vadd.f32 %v4656, %v4618
        %v4673 = vadd.f32 %v4657, %v4623
        %v4674 = vadd.f32 %v4658, %v4628
        %v4675 = vadd.f32 %v4659, %v4633
        %v4676 = vadd.f32 %v4660, %v4638
        %v4677 = vadd.f32 %v4661, %v4643
        %v4678 = vmul.f32 %v4662, 0.70710677
        %v4679 = vmul.f32 %v4663, 0.70710677
        %v4680 = vmul.f32 %v4664, 0.70710677
        %v4681 = vmul.f32 %v4665, 0.70710677
        %v4682 = vmul.f32 %v4666, 0.70710677
        %v4683 = vmul.f32 %v4667, 0.70710677
        %v4684 = vmul.f32 %v4668, 0.70710677
        %v4685 = vmul.f32 %v4669, 0.70710677
        %v4686 = vmul.f32 %v4670, 0.70710677
        %v4687 = vmul.f32 %v4671, 0.70710677
        %v4688 = vmul.f32 %v4672, 0.70710677
        %v4689 = vmul.f32 %v4673, 0.70710677
        %v4690 = vmul.f32 %v4674, 0.70710677
        %v4691 = vmul.f32 %v4675, 0.70710677
        %v4692 = vmul.f32 %v4676, 0.70710677
        %v4693 = vmul.f32 %v4677, 0.70710677
        %4694 = vst.msk [vmem:[#allocation2] sm:$0xff] %vm561, %v4678
        %4695 = vst.msk [vmem:[#allocation2 + $0x8] sm:$0xff] %vm561, %v4679
        %4696 = vst.msk [vmem:[#allocation2 + $0x10] sm:$0xff] %vm561, %v4680
        %4697 = vst.msk [vmem:[#allocation2 + $0x18] sm:$0xff] %vm561, %v4681
        %4698 = vst.msk [vmem:[#allocation2 + $0x20] sm:$0xff] %vm561, %v4682
        %4699 = vst.msk [vmem:[#allocation2 + $0x28] sm:$0xff] %vm561, %v4683
        %4700 = vst.msk [vmem:[#allocation2 + $0x30] sm:$0xff] %vm561, %v4684
        %4701 = vst.msk [vmem:[#allocation2 + $0x38] sm:$0xff] %vm561, %v4685
        %4702 = vst.msk [vmem:[#allocation2 + $0x40] sm:$0xff] %vm561, %v4686
        %4703 = vst.msk [vmem:[#allocation2 + $0x48] sm:$0xff] %vm561, %v4687
        %4704 = vst.msk [vmem:[#allocation2 + $0x50] sm:$0xff] %vm561, %v4688
        %4705 = vst.msk [vmem:[#allocation2 + $0x58] sm:$0xff] %vm561, %v4689
        %4706 = vst.msk [vmem:[#allocation2 + $0x60] sm:$0xff] %vm561, %v4690
        %4707 = vst.msk [vmem:[#allocation2 + $0x68] sm:$0xff] %vm561, %v4691
        %4708 = vst.msk [vmem:[#allocation2 + $0x70] sm:$0xff] %vm561, %v4692
        %4709 = vst.msk [vmem:[#allocation2 + $0x78] sm:$0xff] %vm561, %v4693
        %v4710 = vld [vmem:[%s450] sm:$0xff]
        %v4711 = vld [vmem:[%s450 + $0x8] sm:$0xff]
        %v4712 = vld [vmem:[%s450 + $0x10] sm:$0xff]
        %v4713 = vld [vmem:[%s450 + $0x18] sm:$0xff]
        %v4714 = vld [vmem:[%s450 + $0x20] sm:$0xff]
        %v4715 = vld [vmem:[%s450 + $0x28] sm:$0xff]
        %v4716 = vld [vmem:[%s450 + $0x30] sm:$0xff]
        %v4717 = vld [vmem:[%s450 + $0x38] sm:$0xff]
        %v4718 = vld [vmem:[%s450 + $0x40] sm:$0xff]
        %v4719 = vld [vmem:[%s450 + $0x48] sm:$0xff]
        %v4720 = vld [vmem:[%s450 + $0x50] sm:$0xff]
        %v4721 = vld [vmem:[%s450 + $0x58] sm:$0xff]
        %v4722 = vld [vmem:[%s450 + $0x60] sm:$0xff]
        %v4723 = vld [vmem:[%s450 + $0x68] sm:$0xff]
        %v4724 = vld [vmem:[%s450 + $0x70] sm:$0xff]
        %v4725 = vld [vmem:[%s450 + $0x78] sm:$0xff]
        %4742 = vrot.lane.b32.xlu0 %v4568, 120
        %v4743 = vpop.permute.xlu0 %4742
        %4744 = vrot.lane.b32.xlu0 %v4573, 120
        %v4745 = vpop.permute.xlu0 %4744
        %4746 = vrot.lane.b32.xlu0 %v4578, 120
        %v4747 = vpop.permute.xlu0 %4746
        %4748 = vrot.lane.b32.xlu0 %v4583, 120
        %v4749 = vpop.permute.xlu0 %4748
        %4750 = vrot.lane.b32.xlu0 %v4588, 120
        %v4751 = vpop.permute.xlu0 %4750
        %4752 = vrot.lane.b32.xlu0 %v4593, 120
        %v4753 = vpop.permute.xlu0 %4752
        %4754 = vrot.lane.b32.xlu0 %v4598, 120
        %v4755 = vpop.permute.xlu0 %4754
        %4756 = vrot.lane.b32.xlu0 %v4603, 120
        %v4757 = vpop.permute.xlu0 %4756
        %4758 = vrot.lane.b32.xlu0 %v4608, 120
        %v4759 = vpop.permute.xlu0 %4758
        %4760 = vrot.lane.b32.xlu0 %v4613, 120
        %v4761 = vpop.permute.xlu0 %4760
        %4762 = vrot.lane.b32.xlu0 %v4618, 120
        %v4763 = vpop.permute.xlu0 %4762
        %4764 = vrot.lane.b32.xlu0 %v4623, 120
        %v4765 = vpop.permute.xlu0 %4764
        %4766 = vrot.lane.b32.xlu0 %v4628, 120
        %v4767 = vpop.permute.xlu0 %4766
        %4768 = vrot.lane.b32.xlu0 %v4633, 120
        %v4769 = vpop.permute.xlu0 %4768
        %4770 = vrot.lane.b32.xlu0 %v4638, 120
        %v4771 = vpop.permute.xlu0 %4770
        %4772 = vrot.lane.b32.xlu0 %v4643, 120
        %v4773 = vpop.permute.xlu0 %4772
        %v4790 = vadd.f32 %v4710, %v4743
        %v4791 = vadd.f32 %v4711, %v4745
        %v4792 = vadd.f32 %v4712, %v4747
        %v4793 = vadd.f32 %v4713, %v4749
        %v4794 = vadd.f32 %v4714, %v4751
        %v4795 = vadd.f32 %v4715, %v4753
        %v4796 = vadd.f32 %v4716, %v4755
        %v4797 = vadd.f32 %v4717, %v4757
        %v4798 = vadd.f32 %v4718, %v4759
        %v4799 = vadd.f32 %v4719, %v4761
        %v4800 = vadd.f32 %v4720, %v4763
        %v4801 = vadd.f32 %v4721, %v4765
        %v4802 = vadd.f32 %v4722, %v4767
        %v4803 = vadd.f32 %v4723, %v4769
        %v4804 = vadd.f32 %v4724, %v4771
        %v4805 = vadd.f32 %v4725, %v4773
        %4806 = vst.msk [vmem:[%s450] sm:$0xff] %vm561, %v4790
        %4807 = vst.msk [vmem:[%s450 + $0x8] sm:$0xff] %vm561, %v4791
        %4808 = vst.msk [vmem:[%s450 + $0x10] sm:$0xff] %vm561, %v4792
        %4809 = vst.msk [vmem:[%s450 + $0x18] sm:$0xff] %vm561, %v4793
        %4810 = vst.msk [vmem:[%s450 + $0x20] sm:$0xff] %vm561, %v4794
        %4811 = vst.msk [vmem:[%s450 + $0x28] sm:$0xff] %vm561, %v4795
        %4812 = vst.msk [vmem:[%s450 + $0x30] sm:$0xff] %vm561, %v4796
        %4813 = vst.msk [vmem:[%s450 + $0x38] sm:$0xff] %vm561, %v4797
        %4814 = vst.msk [vmem:[%s450 + $0x40] sm:$0xff] %vm561, %v4798
        %4815 = vst.msk [vmem:[%s450 + $0x48] sm:$0xff] %vm561, %v4799
        %4816 = vst.msk [vmem:[%s450 + $0x50] sm:$0xff] %vm561, %v4800
        %4817 = vst.msk [vmem:[%s450 + $0x58] sm:$0xff] %vm561, %v4801
        %4818 = vst.msk [vmem:[%s450 + $0x60] sm:$0xff] %vm561, %v4802
        %4819 = vst.msk [vmem:[%s450 + $0x68] sm:$0xff] %vm561, %v4803
        %4820 = vst.msk [vmem:[%s450 + $0x70] sm:$0xff] %vm561, %v4804
        %4821 = vst.msk [vmem:[%s450 + $0x78] sm:$0xff] %vm561, %v4805
      $region64: #{tpu_custom_call.1} parent=51 // pred_fallthru
        _
      %p4822 = scmp.lt.s32.totalorder %s23, 3
      %s4823 = scalar_select %p4822, %s23, 3
      %s4824 = smul.addr %s4823, 16
      %s4825 = smul.addr %s4824, 8
      %s4826 = scalar_lea.vmem %s8, %s4825
      // Predicated region
      $region65: #{tpu_custom_call.1} parent=51 // pred_check
        %p4827 = pneg %p259
      $region66: #{tpu_custom_call.1} parent=51 // pred_check_branch
        %4829 = sbr.rel (%p4827) target = $region68
      $region67: #{tpu_custom_call.1} parent=51 // pred_region
        _
      $region68: #{tpu_custom_call.1} parent=51 // pred_fallthru
        _
    $region52: #{tpu_custom_call.1} parent=5 // pred_fallthru
      _
    %p4830 = scmp.le.s32.totalorder 2, %s14
    // Predicated region
    $region69: #{tpu_custom_call.1} parent=5 // pred_check
      %p4831 = pneg %p4830
    $region70: #{tpu_custom_call.1} parent=5 // pred_check_branch
      %4833 = sbr.rel (%p4831) target = $region72
    $region71: #{tpu_custom_call.1} parent=5 // pred_region
      %s4834 = ssub.s32 %s14, 2
      // Predicated region
      $region73: #{tpu_custom_call.1} parent=71 // pred_check
        %p4835 = pneg %p265
      $region74: #{tpu_custom_call.1} parent=71 // pred_check_branch
        %4837 = sbr.rel (%p4835) target = $region76
      $region75: #{tpu_custom_call.1} parent=71 // pred_region
        %p4838 = scmp.lt.s32.totalorder %s25, 3
        %s4839 = scalar_select %p4838, %s25, 3
        %s4840 = smul.addr %s4839, 16
        %s4841 = smul.addr %s4840, 8
        %s4842 = scalar_lea.vmem %s8, %s4841
      $region76: #{tpu_custom_call.1} parent=71 // pred_fallthru
        _
    $region72: #{tpu_custom_call.1} parent=5 // pred_fallthru
      _
  $region6: #{tpu_custom_call.1} parent=0 // loop_footer
    %s18 = sadd.s32 1, %s14
  $region7: #{tpu_custom_call.1} parent=0 // loop_footer_branch
    %13 = sbr.rel target = $region3
  $region8: #{tpu_custom_call.1} parent=0 // loop_exit
    _

</llo_original>
